<compile_context>
chip_gen: v7x
topology: tpu7x:2x2x1
jax: 0.10.0
libtpu: 0.0.40
codegen_flags: <defaults>
</compile_context>

<pallas_src>
import functools
import math

import jax
import jax.numpy as jnp
from jax import lax
from jax.experimental import pallas as pl
from jax.experimental.pallas import tpu as pltpu


# ----------------------------------------------------------------------------
# In-kernel helpers (all non-MXU math in f32)
# ----------------------------------------------------------------------------

def _layernorm(y, g, b, eps=1e-5):
    mean = jnp.mean(y, axis=-1, keepdims=True)
    var = jnp.mean((y - mean) ** 2, axis=-1, keepdims=True)
    return (y - mean) * lax.rsqrt(var + eps) * g + b


def _softmax_rows(s):
    s = s - jnp.max(s, axis=-1, keepdims=True)
    p = jnp.exp(s)
    # EUP reciprocal frees VALU slots vs. a divide.
    return p * pl.reciprocal(jnp.sum(p, axis=-1, keepdims=True), approx=True)


# ----------------------------------------------------------------------------
# Fused DecoderBlock kernel (single invocation; whole (B*S, D) slab in VMEM)
# ----------------------------------------------------------------------------

def _decoder_block_kernel(*refs, B, S, S_enc, h, d_k, d_v, has_cross):
    if has_cross:
        (x_ref, enc_ref,
         wqkv_s_ref, bqkv_s_ref, wo_s_ref, bo_s_ref, ln1_g_ref, ln1_b_ref,
         wq_c_ref, bq_c_ref, wkv_c_ref, bkv_c_ref, wo_c_ref, bo_c_ref,
         ln2_g_ref, ln2_b_ref,
         w1_ref, b1_ref, w2_ref, b2_ref, ln3_g_ref, ln3_b_ref,
         o_ref) = refs
    else:
        (x_ref,
         wqkv_s_ref, bqkv_s_ref, wo_s_ref, bo_s_ref, ln1_g_ref, ln1_b_ref,
         w1_ref, b1_ref, w2_ref, b2_ref, ln3_g_ref, ln3_b_ref,
         o_ref) = refs

    n_qk = h * d_k
    x = x_ref[...].astype(jnp.float32)                        # (B*S, D)

    # Causal additive bias, built once in-kernel (no HBM mask traffic).
    row = lax.broadcasted_iota(jnp.int32, (S, S), 0)
    col = lax.broadcasted_iota(jnp.int32, (S, S), 1)
    causal_bias = jnp.where(row >= col, jnp.float32(0.0), jnp.float32(-1e9))

    def proj(a, w_ref, b_ref):
        # bf16 MXU operands, f32 accumulation, f32 bias add.
        return (jnp.dot(a.astype(jnp.bfloat16), w_ref[...],
                        preferred_element_type=jnp.float32) + b_ref[...])

    def attn(q_all, k_all, v_all, Sq, Sk, bias):
        """q_all: (B*Sq, h*d_k) (already 1/sqrt(d_k)-scaled via fused Wq);
        k_all: (B*Sk, h*d_k); v_all: (B*Sk, h*d_v).  Returns (B*Sq, h*d_v)."""
        # TODO(synk): at production h use lax.fori_loop / a grid axis for heads
        # and 128-aligned head widths; at h=4, d_k=8 a static loop is fine.
        rows = []
        for b in range(B):
            q_b = q_all[b * Sq:(b + 1) * Sq, :]
            k_b = k_all[b * Sk:(b + 1) * Sk, :]
            v_b = v_all[b * Sk:(b + 1) * Sk, :]
            heads = []
            for hh in range(h):
                q_h = q_b[:, hh * d_k:(hh + 1) * d_k].astype(jnp.bfloat16)
                k_h = k_b[:, hh * d_k:(hh + 1) * d_k].astype(jnp.bfloat16)
                v_h = v_b[:, hh * d_v:(hh + 1) * d_v].astype(jnp.bfloat16)
                s = jnp.dot(q_h, k_h.T, preferred_element_type=jnp.float32)
                if bias is not None:
                    s = s + bias
                p = _softmax_rows(s)
                heads.append(jnp.dot(p.astype(jnp.bfloat16), v_h,
                                     preferred_element_type=jnp.float32))
            rows.append(jnp.concatenate(heads, axis=-1))       # (Sq, h*d_v)
        return jnp.concatenate(rows, axis=0)                   # (B*Sq, h*d_v)

    # ---- masked self-attention: fused QKV projection -------------------------
    qkv = proj(x, wqkv_s_ref, bqkv_s_ref)                      # (B*S, h*(2dk+dv))
    ctx = attn(qkv[:, :n_qk], qkv[:, n_qk:2 * n_qk], qkv[:, 2 * n_qk:],
               S, S, causal_bias)
    a = proj(ctx, wo_s_ref, bo_s_ref)                          # single fused Wo matmul
    x1 = _layernorm(a + x, ln1_g_ref[...], ln1_b_ref[...])

    # ---- cross-attention (unmasked, fused KV projection) ----------------------
    if has_cross:
        enc = enc_ref[...].astype(jnp.float32)                 # (B*S_enc, D)
        q_all = proj(x1, wq_c_ref, bq_c_ref)
        kv = proj(enc, wkv_c_ref, bkv_c_ref)                   # (B*S_enc, h*(dk+dv))
        ctx = attn(q_all, kv[:, :n_qk], kv[:, n_qk:], S, S_enc, None)
        c = proj(ctx, wo_c_ref, bo_c_ref)
        x2 = _layernorm(c + x1, ln2_g_ref[...], ln2_b_ref[...])
    else:
        x2 = x1

    # ---- position-wise FFN -----------------------------------------------------
    h1 = jnp.maximum(proj(x2, w1_ref, b1_ref), 0.0)
    f = proj(h1, w2_ref, b2_ref)
    o_ref[...] = _layernorm(f + x2, ln3_g_ref[...], ln3_b_ref[...]).astype(o_ref.dtype)


def decoder_block(x, enc, fp, h, d_k, d_v):
    """One fused pallas_call for the whole DecoderBlock. x: (B, S, D)."""
    B, S, D = x.shape
    has_cross = enc is not None

    x2d = x.reshape(B * S, D)                                  # fold batch into M
    in_arrays = [x2d]
    in_specs = [pl.BlockSpec((B * S, D), lambda i: (0, 0))]

    S_enc = 0
    if has_cross:
        S_enc = enc.shape[1]
        in_arrays.append(enc.reshape(B * S_enc, D))
        in_specs.append(pl.BlockSpec((B * S_enc, D), lambda i: (0, 0)))

    weight_names = ["wqkv_s", "bqkv_s", "wo_s", "bo_s", "ln1_g", "ln1_b"]
    if has_cross:
        weight_names += ["wq_c", "bq_c", "wkv_c", "bkv_c", "wo_c", "bo_c",
                         "ln2_g", "ln2_b"]
    weight_names += ["w1", "b1", "w2", "b2", "ln3_g", "ln3_b"]
    for name in weight_names:
        w = fp[name]
        in_arrays.append(w)
        in_specs.append(pl.BlockSpec(w.shape, lambda i: (0, 0)))  # full block

    kernel = functools.partial(_decoder_block_kernel, B=B, S=S, S_enc=S_enc,
                               h=h, d_k=d_k, d_v=d_v, has_cross=has_cross)
    out2d = pl.pallas_call(
        kernel,
        out_shape=jax.ShapeDtypeStruct((B * S, D), x.dtype),
        grid=(1,),
        in_specs=in_specs,
        out_specs=pl.BlockSpec((B * S, D), lambda i: (0, 0)),
        compiler_params=pltpu.CompilerParams(
            dimension_semantics=("arbitrary",),
            vmem_limit_bytes=64 * 1024 * 1024),
    )(*in_arrays)
    return out2d.reshape(B, S, D)


def decoder_forward(x, encoder_output, fused_params, h, d_k, d_v):
    """Mirrors Decoder.forward (causal tril mask is built inside the kernel)."""
    for fp in fused_params:
        x = decoder_block(x, encoder_output, fp, h, d_k, d_v)
    return x


# ----------------------------------------------------------------------------
# Deterministic parameter construction (PyTorch-style inits) + fusion
# ----------------------------------------------------------------------------

def make_mha_params(key, d_model, d_k, d_v, h):
    ks = jax.random.split(key, 8)
    s = 1.0 / math.sqrt(d_model)
    so = 1.0 / math.sqrt(h * d_v)
    return {
        "wq": jax.random.uniform(ks[0], (d_model, h * d_k), jnp.float32, -s, s),
        "bq": jax.random.uniform(ks[1], (h * d_k,), jnp.float32, -s, s),
        "wk": jax.random.uniform(ks[2], (d_model, h * d_k), jnp.float32, -s, s),
        "bk": jax.random.uniform(ks[3], (h * d_k,), jnp.float32, -s, s),
        "wv": jax.random.uniform(ks[4], (d_model, h * d_v), jnp.float32, -s, s),
        "bv": jax.random.uniform(ks[5], (h * d_v,), jnp.float32, -s, s),
        "wo": jax.random.uniform(ks[6], (h * d_v, d_model), jnp.float32, -so, so),
        "bo": jax.random.uniform(ks[7], (d_model,), jnp.float32, -so, so),
    }


def make_block_params(key, d_model, d_k, d_v, h, d_ff):
    ks = jax.random.split(key, 6)
    s1 = 1.0 / math.sqrt(d_model)
    s2 = 1.0 / math.sqrt(d_ff)
    return {
        "self_mha": make_mha_params(ks[0], d_model, d_k, d_v, h),
        "cross_mha": make_mha_params(ks[1], d_model, d_k, d_v, h),
        "w1": jax.random.uniform(ks[2], (d_model, d_ff), jnp.float32, -s1, s1),
        "b1": jax.random.uniform(ks[3], (d_ff,), jnp.float32, -s1, s1),
        "w2": jax.random.uniform(ks[4], (d_ff, d_model), jnp.float32, -s2, s2),
        "b2": jax.random.uniform(ks[5], (d_model,), jnp.float32, -s2, s2),
        "ln1_g": jnp.ones((d_model,), jnp.float32),
        "ln1_b": jnp.zeros((d_model,), jnp.float32),
        "ln2_g": jnp.ones((d_model,), jnp.float32),
        "ln2_b": jnp.zeros((d_model,), jnp.float32),
        "ln3_g": jnp.ones((d_model,), jnp.float32),
        "ln3_b": jnp.zeros((d_model,), jnp.float32),
    }


def fuse_block_params(p, d_k):
    """Fuse Wq|Wk|Wv (and cross Wk|Wv), fold 1/sqrt(d_k) into Wq/bq, store
    matmul weights in bf16 (MXU-native), biases / LN params in f32 as (1, N)
    rows for lane-broadcast inside the kernel."""
    scale = 1.0 / math.sqrt(d_k)
    bf = jnp.bfloat16
    sm, cm = p["self_mha"], p["cross_mha"]
    return {
        "wqkv_s": jnp.concatenate([sm["wq"] * scale, sm["wk"], sm["wv"]],
                                  axis=1).astype(bf),
        "bqkv_s": jnp.concatenate([sm["bq"] * scale, sm["bk"], sm["bv"]])[None, :],
        "wo_s": sm["wo"].astype(bf), "bo_s": sm["bo"][None, :],
        "ln1_g": p["ln1_g"][None, :], "ln1_b": p["ln1_b"][None, :],
        "wq_c": (cm["wq"] * scale).astype(bf),
        "bq_c": (cm["bq"] * scale)[None, :],
        "wkv_c": jnp.concatenate([cm["wk"], cm["wv"]], axis=1).astype(bf),
        "bkv_c": jnp.concatenate([cm["bk"], cm["bv"]])[None, :],
        "wo_c": cm["wo"].astype(bf), "bo_c": cm["bo"][None, :],
        "ln2_g": p["ln2_g"][None, :], "ln2_b": p["ln2_b"][None, :],
        "w1": p["w1"].astype(bf), "b1": p["b1"][None, :],
        "w2": p["w2"].astype(bf), "b2": p["b2"][None, :],
        "ln3_g": p["ln3_g"][None, :], "ln3_b": p["ln3_b"][None, :],
    }


if __name__ == "__main__":
    # Small config consistent with the module: n_layers=2, d_model=32,
    # d_k=d_v=8, h=4, d_ff=64; batch=2, seq=8, encoder seq=8.
    n_layers, d_model, d_k, d_v, h, d_ff = 2, 32, 8, 8, 4, 64
    B, S, S_enc = 2, 8, 8

    root = jax.random.PRNGKey(0)
    kx, kenc, kp = jax.random.split(root, 3)
    x = jax.random.normal(kx, (B, S, d_model), jnp.float32)
    encoder_output = jax.random.normal(kenc, (B, S_enc, d_model), jnp.float32)
    raw_params = [make_block_params(k, d_model, d_k, d_v, h, d_ff)
                  for k in jax.random.split(kp, n_layers)]
    fused_params = [fuse_block_params(p, d_k) for p in raw_params]

    fwd = jax.jit(functools.partial(decoder_forward, h=h, d_k=d_k, d_v=d_v))
    out = fwd(x, encoder_output, fused_params)
    out = jax.block_until_ready(out)
    assert out.shape == (B, S, d_model)
    assert bool(jnp.all(jnp.isfinite(out)))
    print("KERNEL_OK")
</pallas_src>

<mosaic_0001>
module attributes {stable_mosaic.version = 11 : i64} {
  func.func @_decoder_block_kernel(%arg0: i32, %arg1: memref<16x32xf32, #tpu.memory_space<vmem>>, %arg2: memref<16x32xf32, #tpu.memory_space<vmem>>, %arg3: memref<32x96xbf16, #tpu.memory_space<vmem>>, %arg4: memref<1x96xf32, #tpu.memory_space<vmem>>, %arg5: memref<32x32xbf16, #tpu.memory_space<vmem>>, %arg6: memref<1x32xf32, #tpu.memory_space<vmem>>, %arg7: memref<1x32xf32, #tpu.memory_space<vmem>>, %arg8: memref<1x32xf32, #tpu.memory_space<vmem>>, %arg9: memref<32x32xbf16, #tpu.memory_space<vmem>>, %arg10: memref<1x32xf32, #tpu.memory_space<vmem>>, %arg11: memref<32x64xbf16, #tpu.memory_space<vmem>>, %arg12: memref<1x64xf32, #tpu.memory_space<vmem>>, %arg13: memref<32x32xbf16, #tpu.memory_space<vmem>>, %arg14: memref<1x32xf32, #tpu.memory_space<vmem>>, %arg15: memref<1x32xf32, #tpu.memory_space<vmem>>, %arg16: memref<1x32xf32, #tpu.memory_space<vmem>>, %arg17: memref<32x64xbf16, #tpu.memory_space<vmem>>, %arg18: memref<1x64xf32, #tpu.memory_space<vmem>>, %arg19: memref<64x32xbf16, #tpu.memory_space<vmem>>, %arg20: memref<1x32xf32, #tpu.memory_space<vmem>>, %arg21: memref<1x32xf32, #tpu.memory_space<vmem>>, %arg22: memref<1x32xf32, #tpu.memory_space<vmem>>, %arg23: memref<16x32xf32, #tpu.memory_space<vmem>>) attributes {dimension_semantics = [#tpu.dimension_semantics<arbitrary>], iteration_bounds = array<i64: 1>, scalar_prefetch = 0 : i64, scratch_operands = 0 : i64, tpu.core_type = #tpu.core_type<tc>, window_params = [{pipeline_mode = #tpu.pipeline_mode<synchronous>, transform_indices = @transform_0, window_bounds = array<i64: 16, 32>}, {pipeline_mode = #tpu.pipeline_mode<synchronous>, transform_indices = @transform_1, window_bounds = array<i64: 16, 32>}, {pipeline_mode = #tpu.pipeline_mode<synchronous>, transform_indices = @transform_2, window_bounds = array<i64: 32, 96>}, {pipeline_mode = #tpu.pipeline_mode<synchronous>, transform_indices = @transform_3, window_bounds = array<i64: 1, 96>}, {pipeline_mode = #tpu.pipeline_mode<synchronous>, transform_indices = @transform_4, window_bounds = array<i64: 32, 32>}, {pipeline_mode = #tpu.pipeline_mode<synchronous>, transform_indices = @transform_5, window_bounds = array<i64: 1, 32>}, {pipeline_mode = #tpu.pipeline_mode<synchronous>, transform_indices = @transform_6, window_bounds = array<i64: 1, 32>}, {pipeline_mode = #tpu.pipeline_mode<synchronous>, transform_indices = @transform_7, window_bounds = array<i64: 1, 32>}, {pipeline_mode = #tpu.pipeline_mode<synchronous>, transform_indices = @transform_8, window_bounds = array<i64: 32, 32>}, {pipeline_mode = #tpu.pipeline_mode<synchronous>, transform_indices = @transform_9, window_bounds = array<i64: 1, 32>}, {pipeline_mode = #tpu.pipeline_mode<synchronous>, transform_indices = @transform_10, window_bounds = array<i64: 32, 64>}, {pipeline_mode = #tpu.pipeline_mode<synchronous>, transform_indices = @transform_11, window_bounds = array<i64: 1, 64>}, {pipeline_mode = #tpu.pipeline_mode<synchronous>, transform_indices = @transform_12, window_bounds = array<i64: 32, 32>}, {pipeline_mode = #tpu.pipeline_mode<synchronous>, transform_indices = @transform_13, window_bounds = array<i64: 1, 32>}, {pipeline_mode = #tpu.pipeline_mode<synchronous>, transform_indices = @transform_14, window_bounds = array<i64: 1, 32>}, {pipeline_mode = #tpu.pipeline_mode<synchronous>, transform_indices = @transform_15, window_bounds = array<i64: 1, 32>}, {pipeline_mode = #tpu.pipeline_mode<synchronous>, transform_indices = @transform_16, window_bounds = array<i64: 32, 64>}, {pipeline_mode = #tpu.pipeline_mode<synchronous>, transform_indices = @transform_17, window_bounds = array<i64: 1, 64>}, {pipeline_mode = #tpu.pipeline_mode<synchronous>, transform_indices = @transform_18, window_bounds = array<i64: 64, 32>}, {pipeline_mode = #tpu.pipeline_mode<synchronous>, transform_indices = @transform_19, window_bounds = array<i64: 1, 32>}, {pipeline_mode = #tpu.pipeline_mode<synchronous>, transform_indices = @transform_20, window_bounds = array<i64: 1, 32>}, {pipeline_mode = #tpu.pipeline_mode<synchronous>, transform_indices = @transform_21, window_bounds = array<i64: 1, 32>}, {pipeline_mode = #tpu.pipeline_mode<synchronous>, transform_indices = @transform_22, window_bounds = array<i64: 16, 32>}]} {
    %c0 = arith.constant 0 : index
    %c0_0 = arith.constant 0 : index
    %0 = vector.load %arg1[%c0, %c0_0] : memref<16x32xf32, #tpu.memory_space<vmem>>, vector<16x32xf32>
    %1 = tpu.iota {dimensions = array<i32: 0>} : vector<8x8xi32>
    %2 = tpu.iota {dimensions = array<i32: 1>} : vector<8x8xi32>
    %3 = arith.cmpi sge, %1, %2 : vector<8x8xi32>
    %cst = arith.constant 0.000000e+00 : f32
    %cst_1 = arith.constant -1.000000e+09 : f32
    %4 = vector.broadcast %cst : f32 to vector<8x8xf32>
    %5 = vector.broadcast %cst_1 : f32 to vector<8x8xf32>
    %6 = arith.select %3, %4, %5 : vector<8x8xi1>, vector<8x8xf32>
    %7 = arith.truncf %0 : vector<16x32xf32> to vector<16x32xbf16>
    %c0_2 = arith.constant 0 : index
    %c0_3 = arith.constant 0 : index
    %8 = vector.load %arg3[%c0_2, %c0_3] : memref<32x96xbf16, #tpu.memory_space<vmem>>, vector<32x96xbf16>
    %cst_4 = arith.constant dense<0.000000e+00> : vector<16x96xf32>
    %9 = tpu.matmul %7, %8, %cst_4 {dimension_numbers = #tpu.dot_dimension_numbers<[1], [0], [0], [1], [0, 0, 1, 1], [], []>} : vector<16x32xbf16>, vector<32x96xbf16>, vector<16x96xf32> -> vector<16x96xf32>
    %c0_5 = arith.constant 0 : index
    %c0_6 = arith.constant 0 : index
    %10 = vector.load %arg4[%c0_5, %c0_6] : memref<1x96xf32, #tpu.memory_space<vmem>>, vector<1x96xf32>
    %11 = vector.broadcast %10 : vector<1x96xf32> to vector<16x96xf32>
    %12 = arith.addf %9, %11 : vector<16x96xf32>
    %13 = vector.extract_strided_slice %12 {offsets = [0, 0], sizes = [16, 32], strides = [1, 1]} : vector<16x96xf32> to vector<16x32xf32>
    %14 = vector.extract_strided_slice %12 {offsets = [0, 32], sizes = [16, 32], strides = [1, 1]} : vector<16x96xf32> to vector<16x32xf32>
    %15 = vector.extract_strided_slice %12 {offsets = [0, 64], sizes = [16, 32], strides = [1, 1]} : vector<16x96xf32> to vector<16x32xf32>
    %16 = vector.extract_strided_slice %13 {offsets = [0, 0], sizes = [8, 32], strides = [1, 1]} : vector<16x32xf32> to vector<8x32xf32>
    %17 = vector.extract_strided_slice %14 {offsets = [0, 0], sizes = [8, 32], strides = [1, 1]} : vector<16x32xf32> to vector<8x32xf32>
    %18 = vector.extract_strided_slice %15 {offsets = [0, 0], sizes = [8, 32], strides = [1, 1]} : vector<16x32xf32> to vector<8x32xf32>
    %19 = vector.extract_strided_slice %16 {offsets = [0, 0], sizes = [8, 8], strides = [1, 1]} : vector<8x32xf32> to vector<8x8xf32>
    %20 = arith.truncf %19 : vector<8x8xf32> to vector<8x8xbf16>
    %21 = vector.extract_strided_slice %17 {offsets = [0, 0], sizes = [8, 8], strides = [1, 1]} : vector<8x32xf32> to vector<8x8xf32>
    %22 = arith.truncf %21 : vector<8x8xf32> to vector<8x8xbf16>
    %23 = vector.extract_strided_slice %18 {offsets = [0, 0], sizes = [8, 8], strides = [1, 1]} : vector<8x32xf32> to vector<8x8xf32>
    %24 = arith.truncf %23 : vector<8x8xf32> to vector<8x8xbf16>
    %25 = tpu.transpose %22, [1, 0] : vector<8x8xbf16> -> vector<8x8xbf16>
    %cst_7 = arith.constant dense<0.000000e+00> : vector<8x8xf32>
    %26 = tpu.matmul %20, %25, %cst_7 {dimension_numbers = #tpu.dot_dimension_numbers<[1], [0], [0], [1], [0, 0, 1, 1], [], []>} : vector<8x8xbf16>, vector<8x8xbf16>, vector<8x8xf32> -> vector<8x8xf32>
    %27 = arith.addf %26, %6 : vector<8x8xf32>
    %cst_8 = arith.constant dense<0xFF800000> : vector<8xf32>
    %28 = vector.multi_reduction <maximumf>, %27, %cst_8 [1] : vector<8x8xf32> to vector<8xf32>
    %29 = vector.shape_cast %28 : vector<8xf32> to vector<8x1xf32>
    %30 = vector.broadcast %29 : vector<8x1xf32> to vector<8x8xf32>
    %31 = arith.subf %27, %30 : vector<8x8xf32>
    %32 = math.exp %31 : vector<8x8xf32>
    %cst_9 = arith.constant dense<0.000000e+00> : vector<8xf32>
    %33 = vector.multi_reduction <add>, %32, %cst_9 [1] : vector<8x8xf32> to vector<8xf32>
    %34 = vector.shape_cast %33 : vector<8xf32> to vector<8x1xf32>
    %35 = tpu.reciprocal %34 {approx = true} : vector<8x1xf32> -> vector<8x1xf32>
    %36 = vector.broadcast %35 : vector<8x1xf32> to vector<8x8xf32>
    %37 = arith.mulf %32, %36 : vector<8x8xf32>
    %38 = arith.truncf %37 : vector<8x8xf32> to vector<8x8xbf16>
    %cst_10 = arith.constant dense<0.000000e+00> : vector<8x8xf32>
    %39 = tpu.matmul %38, %24, %cst_10 {dimension_numbers = #tpu.dot_dimension_numbers<[1], [0], [0], [1], [0, 0, 1, 1], [], []>} : vector<8x8xbf16>, vector<8x8xbf16>, vector<8x8xf32> -> vector<8x8xf32>
    %40 = vector.extract_strided_slice %16 {offsets = [0, 8], sizes = [8, 8], strides = [1, 1]} : vector<8x32xf32> to vector<8x8xf32>
    %41 = arith.truncf %40 : vector<8x8xf32> to vector<8x8xbf16>
    %42 = vector.extract_strided_slice %17 {offsets = [0, 8], sizes = [8, 8], strides = [1, 1]} : vector<8x32xf32> to vector<8x8xf32>
    %43 = arith.truncf %42 : vector<8x8xf32> to vector<8x8xbf16>
    %44 = vector.extract_strided_slice %18 {offsets = [0, 8], sizes = [8, 8], strides = [1, 1]} : vector<8x32xf32> to vector<8x8xf32>
    %45 = arith.truncf %44 : vector<8x8xf32> to vector<8x8xbf16>
    %46 = tpu.transpose %43, [1, 0] : vector<8x8xbf16> -> vector<8x8xbf16>
    %cst_11 = arith.constant dense<0.000000e+00> : vector<8x8xf32>
    %47 = tpu.matmul %41, %46, %cst_11 {dimension_numbers = #tpu.dot_dimension_numbers<[1], [0], [0], [1], [0, 0, 1, 1], [], []>} : vector<8x8xbf16>, vector<8x8xbf16>, vector<8x8xf32> -> vector<8x8xf32>
    %48 = arith.addf %47, %6 : vector<8x8xf32>
    %cst_12 = arith.constant dense<0xFF800000> : vector<8xf32>
    %49 = vector.multi_reduction <maximumf>, %48, %cst_12 [1] : vector<8x8xf32> to vector<8xf32>
    %50 = vector.shape_cast %49 : vector<8xf32> to vector<8x1xf32>
    %51 = vector.broadcast %50 : vector<8x1xf32> to vector<8x8xf32>
    %52 = arith.subf %48, %51 : vector<8x8xf32>
    %53 = math.exp %52 : vector<8x8xf32>
    %cst_13 = arith.constant dense<0.000000e+00> : vector<8xf32>
    %54 = vector.multi_reduction <add>, %53, %cst_13 [1] : vector<8x8xf32> to vector<8xf32>
    %55 = vector.shape_cast %54 : vector<8xf32> to vector<8x1xf32>
    %56 = tpu.reciprocal %55 {approx = true} : vector<8x1xf32> -> vector<8x1xf32>
    %57 = vector.broadcast %56 : vector<8x1xf32> to vector<8x8xf32>
    %58 = arith.mulf %53, %57 : vector<8x8xf32>
    %59 = arith.truncf %58 : vector<8x8xf32> to vector<8x8xbf16>
    %cst_14 = arith.constant dense<0.000000e+00> : vector<8x8xf32>
    %60 = tpu.matmul %59, %45, %cst_14 {dimension_numbers = #tpu.dot_dimension_numbers<[1], [0], [0], [1], [0, 0, 1, 1], [], []>} : vector<8x8xbf16>, vector<8x8xbf16>, vector<8x8xf32> -> vector<8x8xf32>
    %61 = vector.extract_strided_slice %16 {offsets = [0, 16], sizes = [8, 8], strides = [1, 1]} : vector<8x32xf32> to vector<8x8xf32>
    %62 = arith.truncf %61 : vector<8x8xf32> to vector<8x8xbf16>
    %63 = vector.extract_strided_slice %17 {offsets = [0, 16], sizes = [8, 8], strides = [1, 1]} : vector<8x32xf32> to vector<8x8xf32>
    %64 = arith.truncf %63 : vector<8x8xf32> to vector<8x8xbf16>
    %65 = vector.extract_strided_slice %18 {offsets = [0, 16], sizes = [8, 8], strides = [1, 1]} : vector<8x32xf32> to vector<8x8xf32>
    %66 = arith.truncf %65 : vector<8x8xf32> to vector<8x8xbf16>
    %67 = tpu.transpose %64, [1, 0] : vector<8x8xbf16> -> vector<8x8xbf16>
    %cst_15 = arith.constant dense<0.000000e+00> : vector<8x8xf32>
    %68 = tpu.matmul %62, %67, %cst_15 {dimension_numbers = #tpu.dot_dimension_numbers<[1], [0], [0], [1], [0, 0, 1, 1], [], []>} : vector<8x8xbf16>, vector<8x8xbf16>, vector<8x8xf32> -> vector<8x8xf32>
    %69 = arith.addf %68, %6 : vector<8x8xf32>
    %cst_16 = arith.constant dense<0xFF800000> : vector<8xf32>
    %70 = vector.multi_reduction <maximumf>, %69, %cst_16 [1] : vector<8x8xf32> to vector<8xf32>
    %71 = vector.shape_cast %70 : vector<8xf32> to vector<8x1xf32>
    %72 = vector.broadcast %71 : vector<8x1xf32> to vector<8x8xf32>
    %73 = arith.subf %69, %72 : vector<8x8xf32>
    %74 = math.exp %73 : vector<8x8xf32>
    %cst_17 = arith.constant dense<0.000000e+00> : vector<8xf32>
    %75 = vector.multi_reduction <add>, %74, %cst_17 [1] : vector<8x8xf32> to vector<8xf32>
    %76 = vector.shape_cast %75 : vector<8xf32> to vector<8x1xf32>
    %77 = tpu.reciprocal %76 {approx = true} : vector<8x1xf32> -> vector<8x1xf32>
    %78 = vector.broadcast %77 : vector<8x1xf32> to vector<8x8xf32>
    %79 = arith.mulf %74, %78 : vector<8x8xf32>
    %80 = arith.truncf %79 : vector<8x8xf32> to vector<8x8xbf16>
    %cst_18 = arith.constant dense<0.000000e+00> : vector<8x8xf32>
    %81 = tpu.matmul %80, %66, %cst_18 {dimension_numbers = #tpu.dot_dimension_numbers<[1], [0], [0], [1], [0, 0, 1, 1], [], []>} : vector<8x8xbf16>, vector<8x8xbf16>, vector<8x8xf32> -> vector<8x8xf32>
    %82 = vector.extract_strided_slice %16 {offsets = [0, 24], sizes = [8, 8], strides = [1, 1]} : vector<8x32xf32> to vector<8x8xf32>
    %83 = arith.truncf %82 : vector<8x8xf32> to vector<8x8xbf16>
    %84 = vector.extract_strided_slice %17 {offsets = [0, 24], sizes = [8, 8], strides = [1, 1]} : vector<8x32xf32> to vector<8x8xf32>
    %85 = arith.truncf %84 : vector<8x8xf32> to vector<8x8xbf16>
    %86 = vector.extract_strided_slice %18 {offsets = [0, 24], sizes = [8, 8], strides = [1, 1]} : vector<8x32xf32> to vector<8x8xf32>
    %87 = arith.truncf %86 : vector<8x8xf32> to vector<8x8xbf16>
    %88 = tpu.transpose %85, [1, 0] : vector<8x8xbf16> -> vector<8x8xbf16>
    %cst_19 = arith.constant dense<0.000000e+00> : vector<8x8xf32>
    %89 = tpu.matmul %83, %88, %cst_19 {dimension_numbers = #tpu.dot_dimension_numbers<[1], [0], [0], [1], [0, 0, 1, 1], [], []>} : vector<8x8xbf16>, vector<8x8xbf16>, vector<8x8xf32> -> vector<8x8xf32>
    %90 = arith.addf %89, %6 : vector<8x8xf32>
    %cst_20 = arith.constant dense<0xFF800000> : vector<8xf32>
    %91 = vector.multi_reduction <maximumf>, %90, %cst_20 [1] : vector<8x8xf32> to vector<8xf32>
    %92 = vector.shape_cast %91 : vector<8xf32> to vector<8x1xf32>
    %93 = vector.broadcast %92 : vector<8x1xf32> to vector<8x8xf32>
    %94 = arith.subf %90, %93 : vector<8x8xf32>
    %95 = math.exp %94 : vector<8x8xf32>
    %cst_21 = arith.constant dense<0.000000e+00> : vector<8xf32>
    %96 = vector.multi_reduction <add>, %95, %cst_21 [1] : vector<8x8xf32> to vector<8xf32>
    %97 = vector.shape_cast %96 : vector<8xf32> to vector<8x1xf32>
    %98 = tpu.reciprocal %97 {approx = true} : vector<8x1xf32> -> vector<8x1xf32>
    %99 = vector.broadcast %98 : vector<8x1xf32> to vector<8x8xf32>
    %100 = arith.mulf %95, %99 : vector<8x8xf32>
    %101 = arith.truncf %100 : vector<8x8xf32> to vector<8x8xbf16>
    %cst_22 = arith.constant dense<0.000000e+00> : vector<8x8xf32>
    %102 = tpu.matmul %101, %87, %cst_22 {dimension_numbers = #tpu.dot_dimension_numbers<[1], [0], [0], [1], [0, 0, 1, 1], [], []>} : vector<8x8xbf16>, vector<8x8xbf16>, vector<8x8xf32> -> vector<8x8xf32>
    %103 = tpu.concatenate %39, %60, %81, %102 in 1 : vector<8x8xf32>, vector<8x8xf32>, vector<8x8xf32>, vector<8x8xf32> -> vector<8x32xf32>
    %104 = vector.extract_strided_slice %13 {offsets = [8, 0], sizes = [8, 32], strides = [1, 1]} : vector<16x32xf32> to vector<8x32xf32>
    %105 = vector.extract_strided_slice %14 {offsets = [8, 0], sizes = [8, 32], strides = [1, 1]} : vector<16x32xf32> to vector<8x32xf32>
    %106 = vector.extract_strided_slice %15 {offsets = [8, 0], sizes = [8, 32], strides = [1, 1]} : vector<16x32xf32> to vector<8x32xf32>
    %107 = vector.extract_strided_slice %104 {offsets = [0, 0], sizes = [8, 8], strides = [1, 1]} : vector<8x32xf32> to vector<8x8xf32>
    %108 = arith.truncf %107 : vector<8x8xf32> to vector<8x8xbf16>
    %109 = vector.extract_strided_slice %105 {offsets = [0, 0], sizes = [8, 8], strides = [1, 1]} : vector<8x32xf32> to vector<8x8xf32>
    %110 = arith.truncf %109 : vector<8x8xf32> to vector<8x8xbf16>
    %111 = vector.extract_strided_slice %106 {offsets = [0, 0], sizes = [8, 8], strides = [1, 1]} : vector<8x32xf32> to vector<8x8xf32>
    %112 = arith.truncf %111 : vector<8x8xf32> to vector<8x8xbf16>
    %113 = tpu.transpose %110, [1, 0] : vector<8x8xbf16> -> vector<8x8xbf16>
    %cst_23 = arith.constant dense<0.000000e+00> : vector<8x8xf32>
    %114 = tpu.matmul %108, %113, %cst_23 {dimension_numbers = #tpu.dot_dimension_numbers<[1], [0], [0], [1], [0, 0, 1, 1], [], []>} : vector<8x8xbf16>, vector<8x8xbf16>, vector<8x8xf32> -> vector<8x8xf32>
    %115 = arith.addf %114, %6 : vector<8x8xf32>
    %cst_24 = arith.constant dense<0xFF800000> : vector<8xf32>
    %116 = vector.multi_reduction <maximumf>, %115, %cst_24 [1] : vector<8x8xf32> to vector<8xf32>
    %117 = vector.shape_cast %116 : vector<8xf32> to vector<8x1xf32>
    %118 = vector.broadcast %117 : vector<8x1xf32> to vector<8x8xf32>
    %119 = arith.subf %115, %118 : vector<8x8xf32>
    %120 = math.exp %119 : vector<8x8xf32>
    %cst_25 = arith.constant dense<0.000000e+00> : vector<8xf32>
    %121 = vector.multi_reduction <add>, %120, %cst_25 [1] : vector<8x8xf32> to vector<8xf32>
    %122 = vector.shape_cast %121 : vector<8xf32> to vector<8x1xf32>
    %123 = tpu.reciprocal %122 {approx = true} : vector<8x1xf32> -> vector<8x1xf32>
    %124 = vector.broadcast %123 : vector<8x1xf32> to vector<8x8xf32>
    %125 = arith.mulf %120, %124 : vector<8x8xf32>
    %126 = arith.truncf %125 : vector<8x8xf32> to vector<8x8xbf16>
    %cst_26 = arith.constant dense<0.000000e+00> : vector<8x8xf32>
    %127 = tpu.matmul %126, %112, %cst_26 {dimension_numbers = #tpu.dot_dimension_numbers<[1], [0], [0], [1], [0, 0, 1, 1], [], []>} : vector<8x8xbf16>, vector<8x8xbf16>, vector<8x8xf32> -> vector<8x8xf32>
    %128 = vector.extract_strided_slice %104 {offsets = [0, 8], sizes = [8, 8], strides = [1, 1]} : vector<8x32xf32> to vector<8x8xf32>
    %129 = arith.truncf %128 : vector<8x8xf32> to vector<8x8xbf16>
    %130 = vector.extract_strided_slice %105 {offsets = [0, 8], sizes = [8, 8], strides = [1, 1]} : vector<8x32xf32> to vector<8x8xf32>
    %131 = arith.truncf %130 : vector<8x8xf32> to vector<8x8xbf16>
    %132 = vector.extract_strided_slice %106 {offsets = [0, 8], sizes = [8, 8], strides = [1, 1]} : vector<8x32xf32> to vector<8x8xf32>
    %133 = arith.truncf %132 : vector<8x8xf32> to vector<8x8xbf16>
    %134 = tpu.transpose %131, [1, 0] : vector<8x8xbf16> -> vector<8x8xbf16>
    %cst_27 = arith.constant dense<0.000000e+00> : vector<8x8xf32>
    %135 = tpu.matmul %129, %134, %cst_27 {dimension_numbers = #tpu.dot_dimension_numbers<[1], [0], [0], [1], [0, 0, 1, 1], [], []>} : vector<8x8xbf16>, vector<8x8xbf16>, vector<8x8xf32> -> vector<8x8xf32>
    %136 = arith.addf %135, %6 : vector<8x8xf32>
    %cst_28 = arith.constant dense<0xFF800000> : vector<8xf32>
    %137 = vector.multi_reduction <maximumf>, %136, %cst_28 [1] : vector<8x8xf32> to vector<8xf32>
    %138 = vector.shape_cast %137 : vector<8xf32> to vector<8x1xf32>
    %139 = vector.broadcast %138 : vector<8x1xf32> to vector<8x8xf32>
    %140 = arith.subf %136, %139 : vector<8x8xf32>
    %141 = math.exp %140 : vector<8x8xf32>
    %cst_29 = arith.constant dense<0.000000e+00> : vector<8xf32>
    %142 = vector.multi_reduction <add>, %141, %cst_29 [1] : vector<8x8xf32> to vector<8xf32>
    %143 = vector.shape_cast %142 : vector<8xf32> to vector<8x1xf32>
    %144 = tpu.reciprocal %143 {approx = true} : vector<8x1xf32> -> vector<8x1xf32>
    %145 = vector.broadcast %144 : vector<8x1xf32> to vector<8x8xf32>
    %146 = arith.mulf %141, %145 : vector<8x8xf32>
    %147 = arith.truncf %146 : vector<8x8xf32> to vector<8x8xbf16>
    %cst_30 = arith.constant dense<0.000000e+00> : vector<8x8xf32>
    %148 = tpu.matmul %147, %133, %cst_30 {dimension_numbers = #tpu.dot_dimension_numbers<[1], [0], [0], [1], [0, 0, 1, 1], [], []>} : vector<8x8xbf16>, vector<8x8xbf16>, vector<8x8xf32> -> vector<8x8xf32>
    %149 = vector.extract_strided_slice %104 {offsets = [0, 16], sizes = [8, 8], strides = [1, 1]} : vector<8x32xf32> to vector<8x8xf32>
    %150 = arith.truncf %149 : vector<8x8xf32> to vector<8x8xbf16>
    %151 = vector.extract_strided_slice %105 {offsets = [0, 16], sizes = [8, 8], strides = [1, 1]} : vector<8x32xf32> to vector<8x8xf32>
    %152 = arith.truncf %151 : vector<8x8xf32> to vector<8x8xbf16>
    %153 = vector.extract_strided_slice %106 {offsets = [0, 16], sizes = [8, 8], strides = [1, 1]} : vector<8x32xf32> to vector<8x8xf32>
    %154 = arith.truncf %153 : vector<8x8xf32> to vector<8x8xbf16>
    %155 = tpu.transpose %152, [1, 0] : vector<8x8xbf16> -> vector<8x8xbf16>
    %cst_31 = arith.constant dense<0.000000e+00> : vector<8x8xf32>
    %156 = tpu.matmul %150, %155, %cst_31 {dimension_numbers = #tpu.dot_dimension_numbers<[1], [0], [0], [1], [0, 0, 1, 1], [], []>} : vector<8x8xbf16>, vector<8x8xbf16>, vector<8x8xf32> -> vector<8x8xf32>
    %157 = arith.addf %156, %6 : vector<8x8xf32>
    %cst_32 = arith.constant dense<0xFF800000> : vector<8xf32>
    %158 = vector.multi_reduction <maximumf>, %157, %cst_32 [1] : vector<8x8xf32> to vector<8xf32>
    %159 = vector.shape_cast %158 : vector<8xf32> to vector<8x1xf32>
    %160 = vector.broadcast %159 : vector<8x1xf32> to vector<8x8xf32>
    %161 = arith.subf %157, %160 : vector<8x8xf32>
    %162 = math.exp %161 : vector<8x8xf32>
    %cst_33 = arith.constant dense<0.000000e+00> : vector<8xf32>
    %163 = vector.multi_reduction <add>, %162, %cst_33 [1] : vector<8x8xf32> to vector<8xf32>
    %164 = vector.shape_cast %163 : vector<8xf32> to vector<8x1xf32>
    %165 = tpu.reciprocal %164 {approx = true} : vector<8x1xf32> -> vector<8x1xf32>
    %166 = vector.broadcast %165 : vector<8x1xf32> to vector<8x8xf32>
    %167 = arith.mulf %162, %166 : vector<8x8xf32>
    %168 = arith.truncf %167 : vector<8x8xf32> to vector<8x8xbf16>
    %cst_34 = arith.constant dense<0.000000e+00> : vector<8x8xf32>
    %169 = tpu.matmul %168, %154, %cst_34 {dimension_numbers = #tpu.dot_dimension_numbers<[1], [0], [0], [1], [0, 0, 1, 1], [], []>} : vector<8x8xbf16>, vector<8x8xbf16>, vector<8x8xf32> -> vector<8x8xf32>
    %170 = vector.extract_strided_slice %104 {offsets = [0, 24], sizes = [8, 8], strides = [1, 1]} : vector<8x32xf32> to vector<8x8xf32>
    %171 = arith.truncf %170 : vector<8x8xf32> to vector<8x8xbf16>
    %172 = vector.extract_strided_slice %105 {offsets = [0, 24], sizes = [8, 8], strides = [1, 1]} : vector<8x32xf32> to vector<8x8xf32>
    %173 = arith.truncf %172 : vector<8x8xf32> to vector<8x8xbf16>
    %174 = vector.extract_strided_slice %106 {offsets = [0, 24], sizes = [8, 8], strides = [1, 1]} : vector<8x32xf32> to vector<8x8xf32>
    %175 = arith.truncf %174 : vector<8x8xf32> to vector<8x8xbf16>
    %176 = tpu.transpose %173, [1, 0] : vector<8x8xbf16> -> vector<8x8xbf16>
    %cst_35 = arith.constant dense<0.000000e+00> : vector<8x8xf32>
    %177 = tpu.matmul %171, %176, %cst_35 {dimension_numbers = #tpu.dot_dimension_numbers<[1], [0], [0], [1], [0, 0, 1, 1], [], []>} : vector<8x8xbf16>, vector<8x8xbf16>, vector<8x8xf32> -> vector<8x8xf32>
    %178 = arith.addf %177, %6 : vector<8x8xf32>
    %cst_36 = arith.constant dense<0xFF800000> : vector<8xf32>
    %179 = vector.multi_reduction <maximumf>, %178, %cst_36 [1] : vector<8x8xf32> to vector<8xf32>
    %180 = vector.shape_cast %179 : vector<8xf32> to vector<8x1xf32>
    %181 = vector.broadcast %180 : vector<8x1xf32> to vector<8x8xf32>
    %182 = arith.subf %178, %181 : vector<8x8xf32>
    %183 = math.exp %182 : vector<8x8xf32>
    %cst_37 = arith.constant dense<0.000000e+00> : vector<8xf32>
    %184 = vector.multi_reduction <add>, %183, %cst_37 [1] : vector<8x8xf32> to vector<8xf32>
    %185 = vector.shape_cast %184 : vector<8xf32> to vector<8x1xf32>
    %186 = tpu.reciprocal %185 {approx = true} : vector<8x1xf32> -> vector<8x1xf32>
    %187 = vector.broadcast %186 : vector<8x1xf32> to vector<8x8xf32>
    %188 = arith.mulf %183, %187 : vector<8x8xf32>
    %189 = arith.truncf %188 : vector<8x8xf32> to vector<8x8xbf16>
    %cst_38 = arith.constant dense<0.000000e+00> : vector<8x8xf32>
    %190 = tpu.matmul %189, %175, %cst_38 {dimension_numbers = #tpu.dot_dimension_numbers<[1], [0], [0], [1], [0, 0, 1, 1], [], []>} : vector<8x8xbf16>, vector<8x8xbf16>, vector<8x8xf32> -> vector<8x8xf32>
    %191 = tpu.concatenate %127, %148, %169, %190 in 1 : vector<8x8xf32>, vector<8x8xf32>, vector<8x8xf32>, vector<8x8xf32> -> vector<8x32xf32>
    %192 = tpu.concatenate %103, %191 in 0 : vector<8x32xf32>, vector<8x32xf32> -> vector<16x32xf32>
    %193 = arith.truncf %192 : vector<16x32xf32> to vector<16x32xbf16>
    %c0_39 = arith.constant 0 : index
    %c0_40 = arith.constant 0 : index
    %194 = vector.load %arg5[%c0_39, %c0_40] : memref<32x32xbf16, #tpu.memory_space<vmem>>, vector<32x32xbf16>
    %cst_41 = arith.constant dense<0.000000e+00> : vector<16x32xf32>
    %195 = tpu.matmul %193, %194, %cst_41 {dimension_numbers = #tpu.dot_dimension_numbers<[1], [0], [0], [1], [0, 0, 1, 1], [], []>} : vector<16x32xbf16>, vector<32x32xbf16>, vector<16x32xf32> -> vector<16x32xf32>
    %c0_42 = arith.constant 0 : index
    %c0_43 = arith.constant 0 : index
    %196 = vector.load %arg6[%c0_42, %c0_43] : memref<1x32xf32, #tpu.memory_space<vmem>>, vector<1x32xf32>
    %197 = vector.broadcast %196 : vector<1x32xf32> to vector<16x32xf32>
    %198 = arith.addf %195, %197 : vector<16x32xf32>
    %199 = arith.addf %198, %0 : vector<16x32xf32>
    %c0_44 = arith.constant 0 : index
    %c0_45 = arith.constant 0 : index
    %200 = vector.load %arg7[%c0_44, %c0_45] : memref<1x32xf32, #tpu.memory_space<vmem>>, vector<1x32xf32>
    %c0_46 = arith.constant 0 : index
    %c0_47 = arith.constant 0 : index
    %201 = vector.load %arg8[%c0_46, %c0_47] : memref<1x32xf32, #tpu.memory_space<vmem>>, vector<1x32xf32>
    %cst_48 = arith.constant dense<0.000000e+00> : vector<16xf32>
    %202 = vector.multi_reduction <add>, %199, %cst_48 [1] : vector<16x32xf32> to vector<16xf32>
    %203 = vector.shape_cast %202 : vector<16xf32> to vector<16x1xf32>
    %cst_49 = arith.constant 3.200000e+01 : f32
    %204 = vector.broadcast %cst_49 : f32 to vector<16x1xf32>
    %205 = arith.divf %203, %204 : vector<16x1xf32>
    %206 = vector.broadcast %205 : vector<16x1xf32> to vector<16x32xf32>
    %207 = arith.subf %199, %206 : vector<16x32xf32>
    %208 = arith.mulf %207, %207 : vector<16x32xf32>
    %cst_50 = arith.constant dense<0.000000e+00> : vector<16xf32>
    %209 = vector.multi_reduction <add>, %208, %cst_50 [1] : vector<16x32xf32> to vector<16xf32>
    %210 = vector.shape_cast %209 : vector<16xf32> to vector<16x1xf32>
    %cst_51 = arith.constant 3.200000e+01 : f32
    %211 = vector.broadcast %cst_51 : f32 to vector<16x1xf32>
    %212 = arith.divf %210, %211 : vector<16x1xf32>
    %213 = vector.broadcast %205 : vector<16x1xf32> to vector<16x32xf32>
    %214 = arith.subf %199, %213 : vector<16x32xf32>
    %cst_52 = arith.constant 9.99999974E-6 : f32
    %215 = vector.broadcast %cst_52 : f32 to vector<16x1xf32>
    %216 = arith.addf %212, %215 : vector<16x1xf32>
    %217 = math.rsqrt %216 : vector<16x1xf32>
    %218 = vector.broadcast %217 : vector<16x1xf32> to vector<16x32xf32>
    %219 = arith.mulf %214, %218 : vector<16x32xf32>
    %220 = vector.broadcast %200 : vector<1x32xf32> to vector<16x32xf32>
    %221 = arith.mulf %219, %220 : vector<16x32xf32>
    %222 = vector.broadcast %201 : vector<1x32xf32> to vector<16x32xf32>
    %223 = arith.addf %221, %222 : vector<16x32xf32>
    %c0_53 = arith.constant 0 : index
    %c0_54 = arith.constant 0 : index
    %224 = vector.load %arg2[%c0_53, %c0_54] : memref<16x32xf32, #tpu.memory_space<vmem>>, vector<16x32xf32>
    %225 = arith.truncf %223 : vector<16x32xf32> to vector<16x32xbf16>
    %c0_55 = arith.constant 0 : index
    %c0_56 = arith.constant 0 : index
    %226 = vector.load %arg9[%c0_55, %c0_56] : memref<32x32xbf16, #tpu.memory_space<vmem>>, vector<32x32xbf16>
    %cst_57 = arith.constant dense<0.000000e+00> : vector<16x32xf32>
    %227 = tpu.matmul %225, %226, %cst_57 {dimension_numbers = #tpu.dot_dimension_numbers<[1], [0], [0], [1], [0, 0, 1, 1], [], []>} : vector<16x32xbf16>, vector<32x32xbf16>, vector<16x32xf32> -> vector<16x32xf32>
    %c0_58 = arith.constant 0 : index
    %c0_59 = arith.constant 0 : index
    %228 = vector.load %arg10[%c0_58, %c0_59] : memref<1x32xf32, #tpu.memory_space<vmem>>, vector<1x32xf32>
    %229 = vector.broadcast %228 : vector<1x32xf32> to vector<16x32xf32>
    %230 = arith.addf %227, %229 : vector<16x32xf32>
    %231 = arith.truncf %224 : vector<16x32xf32> to vector<16x32xbf16>
    %c0_60 = arith.constant 0 : index
    %c0_61 = arith.constant 0 : index
    %232 = vector.load %arg11[%c0_60, %c0_61] : memref<32x64xbf16, #tpu.memory_space<vmem>>, vector<32x64xbf16>
    %cst_62 = arith.constant dense<0.000000e+00> : vector<16x64xf32>
    %233 = tpu.matmul %231, %232, %cst_62 {dimension_numbers = #tpu.dot_dimension_numbers<[1], [0], [0], [1], [0, 0, 1, 1], [], []>} : vector<16x32xbf16>, vector<32x64xbf16>, vector<16x64xf32> -> vector<16x64xf32>
    %c0_63 = arith.constant 0 : index
    %c0_64 = arith.constant 0 : index
    %234 = vector.load %arg12[%c0_63, %c0_64] : memref<1x64xf32, #tpu.memory_space<vmem>>, vector<1x64xf32>
    %235 = vector.broadcast %234 : vector<1x64xf32> to vector<16x64xf32>
    %236 = arith.addf %233, %235 : vector<16x64xf32>
    %237 = vector.extract_strided_slice %236 {offsets = [0, 0], sizes = [16, 32], strides = [1, 1]} : vector<16x64xf32> to vector<16x32xf32>
    %238 = vector.extract_strided_slice %236 {offsets = [0, 32], sizes = [16, 32], strides = [1, 1]} : vector<16x64xf32> to vector<16x32xf32>
    %239 = vector.extract_strided_slice %230 {offsets = [0, 0], sizes = [8, 32], strides = [1, 1]} : vector<16x32xf32> to vector<8x32xf32>
    %240 = vector.extract_strided_slice %237 {offsets = [0, 0], sizes = [8, 32], strides = [1, 1]} : vector<16x32xf32> to vector<8x32xf32>
    %241 = vector.extract_strided_slice %238 {offsets = [0, 0], sizes = [8, 32], strides = [1, 1]} : vector<16x32xf32> to vector<8x32xf32>
    %242 = vector.extract_strided_slice %239 {offsets = [0, 0], sizes = [8, 8], strides = [1, 1]} : vector<8x32xf32> to vector<8x8xf32>
    %243 = arith.truncf %242 : vector<8x8xf32> to vector<8x8xbf16>
    %244 = vector.extract_strided_slice %240 {offsets = [0, 0], sizes = [8, 8], strides = [1, 1]} : vector<8x32xf32> to vector<8x8xf32>
    %245 = arith.truncf %244 : vector<8x8xf32> to vector<8x8xbf16>
    %246 = vector.extract_strided_slice %241 {offsets = [0, 0], sizes = [8, 8], strides = [1, 1]} : vector<8x32xf32> to vector<8x8xf32>
    %247 = arith.truncf %246 : vector<8x8xf32> to vector<8x8xbf16>
    %248 = tpu.transpose %245, [1, 0] : vector<8x8xbf16> -> vector<8x8xbf16>
    %cst_65 = arith.constant dense<0.000000e+00> : vector<8x8xf32>
    %249 = tpu.matmul %243, %248, %cst_65 {dimension_numbers = #tpu.dot_dimension_numbers<[1], [0], [0], [1], [0, 0, 1, 1], [], []>} : vector<8x8xbf16>, vector<8x8xbf16>, vector<8x8xf32> -> vector<8x8xf32>
    %cst_66 = arith.constant dense<0xFF800000> : vector<8xf32>
    %250 = vector.multi_reduction <maximumf>, %249, %cst_66 [1] : vector<8x8xf32> to vector<8xf32>
    %251 = vector.shape_cast %250 : vector<8xf32> to vector<8x1xf32>
    %252 = vector.broadcast %251 : vector<8x1xf32> to vector<8x8xf32>
    %253 = arith.subf %249, %252 : vector<8x8xf32>
    %254 = math.exp %253 : vector<8x8xf32>
    %cst_67 = arith.constant dense<0.000000e+00> : vector<8xf32>
    %255 = vector.multi_reduction <add>, %254, %cst_67 [1] : vector<8x8xf32> to vector<8xf32>
    %256 = vector.shape_cast %255 : vector<8xf32> to vector<8x1xf32>
    %257 = tpu.reciprocal %256 {approx = true} : vector<8x1xf32> -> vector<8x1xf32>
    %258 = vector.broadcast %257 : vector<8x1xf32> to vector<8x8xf32>
    %259 = arith.mulf %254, %258 : vector<8x8xf32>
    %260 = arith.truncf %259 : vector<8x8xf32> to vector<8x8xbf16>
    %cst_68 = arith.constant dense<0.000000e+00> : vector<8x8xf32>
    %261 = tpu.matmul %260, %247, %cst_68 {dimension_numbers = #tpu.dot_dimension_numbers<[1], [0], [0], [1], [0, 0, 1, 1], [], []>} : vector<8x8xbf16>, vector<8x8xbf16>, vector<8x8xf32> -> vector<8x8xf32>
    %262 = vector.extract_strided_slice %239 {offsets = [0, 8], sizes = [8, 8], strides = [1, 1]} : vector<8x32xf32> to vector<8x8xf32>
    %263 = arith.truncf %262 : vector<8x8xf32> to vector<8x8xbf16>
    %264 = vector.extract_strided_slice %240 {offsets = [0, 8], sizes = [8, 8], strides = [1, 1]} : vector<8x32xf32> to vector<8x8xf32>
    %265 = arith.truncf %264 : vector<8x8xf32> to vector<8x8xbf16>
    %266 = vector.extract_strided_slice %241 {offsets = [0, 8], sizes = [8, 8], strides = [1, 1]} : vector<8x32xf32> to vector<8x8xf32>
    %267 = arith.truncf %266 : vector<8x8xf32> to vector<8x8xbf16>
    %268 = tpu.transpose %265, [1, 0] : vector<8x8xbf16> -> vector<8x8xbf16>
    %cst_69 = arith.constant dense<0.000000e+00> : vector<8x8xf32>
    %269 = tpu.matmul %263, %268, %cst_69 {dimension_numbers = #tpu.dot_dimension_numbers<[1], [0], [0], [1], [0, 0, 1, 1], [], []>} : vector<8x8xbf16>, vector<8x8xbf16>, vector<8x8xf32> -> vector<8x8xf32>
    %cst_70 = arith.constant dense<0xFF800000> : vector<8xf32>
    %270 = vector.multi_reduction <maximumf>, %269, %cst_70 [1] : vector<8x8xf32> to vector<8xf32>
    %271 = vector.shape_cast %270 : vector<8xf32> to vector<8x1xf32>
    %272 = vector.broadcast %271 : vector<8x1xf32> to vector<8x8xf32>
    %273 = arith.subf %269, %272 : vector<8x8xf32>
    %274 = math.exp %273 : vector<8x8xf32>
    %cst_71 = arith.constant dense<0.000000e+00> : vector<8xf32>
    %275 = vector.multi_reduction <add>, %274, %cst_71 [1] : vector<8x8xf32> to vector<8xf32>
    %276 = vector.shape_cast %275 : vector<8xf32> to vector<8x1xf32>
    %277 = tpu.reciprocal %276 {approx = true} : vector<8x1xf32> -> vector<8x1xf32>
    %278 = vector.broadcast %277 : vector<8x1xf32> to vector<8x8xf32>
    %279 = arith.mulf %274, %278 : vector<8x8xf32>
    %280 = arith.truncf %279 : vector<8x8xf32> to vector<8x8xbf16>
    %cst_72 = arith.constant dense<0.000000e+00> : vector<8x8xf32>
    %281 = tpu.matmul %280, %267, %cst_72 {dimension_numbers = #tpu.dot_dimension_numbers<[1], [0], [0], [1], [0, 0, 1, 1], [], []>} : vector<8x8xbf16>, vector<8x8xbf16>, vector<8x8xf32> -> vector<8x8xf32>
    %282 = vector.extract_strided_slice %239 {offsets = [0, 16], sizes = [8, 8], strides = [1, 1]} : vector<8x32xf32> to vector<8x8xf32>
    %283 = arith.truncf %282 : vector<8x8xf32> to vector<8x8xbf16>
    %284 = vector.extract_strided_slice %240 {offsets = [0, 16], sizes = [8, 8], strides = [1, 1]} : vector<8x32xf32> to vector<8x8xf32>
    %285 = arith.truncf %284 : vector<8x8xf32> to vector<8x8xbf16>
    %286 = vector.extract_strided_slice %241 {offsets = [0, 16], sizes = [8, 8], strides = [1, 1]} : vector<8x32xf32> to vector<8x8xf32>
    %287 = arith.truncf %286 : vector<8x8xf32> to vector<8x8xbf16>
    %288 = tpu.transpose %285, [1, 0] : vector<8x8xbf16> -> vector<8x8xbf16>
    %cst_73 = arith.constant dense<0.000000e+00> : vector<8x8xf32>
    %289 = tpu.matmul %283, %288, %cst_73 {dimension_numbers = #tpu.dot_dimension_numbers<[1], [0], [0], [1], [0, 0, 1, 1], [], []>} : vector<8x8xbf16>, vector<8x8xbf16>, vector<8x8xf32> -> vector<8x8xf32>
    %cst_74 = arith.constant dense<0xFF800000> : vector<8xf32>
    %290 = vector.multi_reduction <maximumf>, %289, %cst_74 [1] : vector<8x8xf32> to vector<8xf32>
    %291 = vector.shape_cast %290 : vector<8xf32> to vector<8x1xf32>
    %292 = vector.broadcast %291 : vector<8x1xf32> to vector<8x8xf32>
    %293 = arith.subf %289, %292 : vector<8x8xf32>
    %294 = math.exp %293 : vector<8x8xf32>
    %cst_75 = arith.constant dense<0.000000e+00> : vector<8xf32>
    %295 = vector.multi_reduction <add>, %294, %cst_75 [1] : vector<8x8xf32> to vector<8xf32>
    %296 = vector.shape_cast %295 : vector<8xf32> to vector<8x1xf32>
    %297 = tpu.reciprocal %296 {approx = true} : vector<8x1xf32> -> vector<8x1xf32>
    %298 = vector.broadcast %297 : vector<8x1xf32> to vector<8x8xf32>
    %299 = arith.mulf %294, %298 : vector<8x8xf32>
    %300 = arith.truncf %299 : vector<8x8xf32> to vector<8x8xbf16>
    %cst_76 = arith.constant dense<0.000000e+00> : vector<8x8xf32>
    %301 = tpu.matmul %300, %287, %cst_76 {dimension_numbers = #tpu.dot_dimension_numbers<[1], [0], [0], [1], [0, 0, 1, 1], [], []>} : vector<8x8xbf16>, vector<8x8xbf16>, vector<8x8xf32> -> vector<8x8xf32>
    %302 = vector.extract_strided_slice %239 {offsets = [0, 24], sizes = [8, 8], strides = [1, 1]} : vector<8x32xf32> to vector<8x8xf32>
    %303 = arith.truncf %302 : vector<8x8xf32> to vector<8x8xbf16>
    %304 = vector.extract_strided_slice %240 {offsets = [0, 24], sizes = [8, 8], strides = [1, 1]} : vector<8x32xf32> to vector<8x8xf32>
    %305 = arith.truncf %304 : vector<8x8xf32> to vector<8x8xbf16>
    %306 = vector.extract_strided_slice %241 {offsets = [0, 24], sizes = [8, 8], strides = [1, 1]} : vector<8x32xf32> to vector<8x8xf32>
    %307 = arith.truncf %306 : vector<8x8xf32> to vector<8x8xbf16>
    %308 = tpu.transpose %305, [1, 0] : vector<8x8xbf16> -> vector<8x8xbf16>
    %cst_77 = arith.constant dense<0.000000e+00> : vector<8x8xf32>
    %309 = tpu.matmul %303, %308, %cst_77 {dimension_numbers = #tpu.dot_dimension_numbers<[1], [0], [0], [1], [0, 0, 1, 1], [], []>} : vector<8x8xbf16>, vector<8x8xbf16>, vector<8x8xf32> -> vector<8x8xf32>
    %cst_78 = arith.constant dense<0xFF800000> : vector<8xf32>
    %310 = vector.multi_reduction <maximumf>, %309, %cst_78 [1] : vector<8x8xf32> to vector<8xf32>
    %311 = vector.shape_cast %310 : vector<8xf32> to vector<8x1xf32>
    %312 = vector.broadcast %311 : vector<8x1xf32> to vector<8x8xf32>
    %313 = arith.subf %309, %312 : vector<8x8xf32>
    %314 = math.exp %313 : vector<8x8xf32>
    %cst_79 = arith.constant dense<0.000000e+00> : vector<8xf32>
    %315 = vector.multi_reduction <add>, %314, %cst_79 [1] : vector<8x8xf32> to vector<8xf32>
    %316 = vector.shape_cast %315 : vector<8xf32> to vector<8x1xf32>
    %317 = tpu.reciprocal %316 {approx = true} : vector<8x1xf32> -> vector<8x1xf32>
    %318 = vector.broadcast %317 : vector<8x1xf32> to vector<8x8xf32>
    %319 = arith.mulf %314, %318 : vector<8x8xf32>
    %320 = arith.truncf %319 : vector<8x8xf32> to vector<8x8xbf16>
    %cst_80 = arith.constant dense<0.000000e+00> : vector<8x8xf32>
    %321 = tpu.matmul %320, %307, %cst_80 {dimension_numbers = #tpu.dot_dimension_numbers<[1], [0], [0], [1], [0, 0, 1, 1], [], []>} : vector<8x8xbf16>, vector<8x8xbf16>, vector<8x8xf32> -> vector<8x8xf32>
    %322 = tpu.concatenate %261, %281, %301, %321 in 1 : vector<8x8xf32>, vector<8x8xf32>, vector<8x8xf32>, vector<8x8xf32> -> vector<8x32xf32>
    %323 = vector.extract_strided_slice %230 {offsets = [8, 0], sizes = [8, 32], strides = [1, 1]} : vector<16x32xf32> to vector<8x32xf32>
    %324 = vector.extract_strided_slice %237 {offsets = [8, 0], sizes = [8, 32], strides = [1, 1]} : vector<16x32xf32> to vector<8x32xf32>
    %325 = vector.extract_strided_slice %238 {offsets = [8, 0], sizes = [8, 32], strides = [1, 1]} : vector<16x32xf32> to vector<8x32xf32>
    %326 = vector.extract_strided_slice %323 {offsets = [0, 0], sizes = [8, 8], strides = [1, 1]} : vector<8x32xf32> to vector<8x8xf32>
    %327 = arith.truncf %326 : vector<8x8xf32> to vector<8x8xbf16>
    %328 = vector.extract_strided_slice %324 {offsets = [0, 0], sizes = [8, 8], strides = [1, 1]} : vector<8x32xf32> to vector<8x8xf32>
    %329 = arith.truncf %328 : vector<8x8xf32> to vector<8x8xbf16>
    %330 = vector.extract_strided_slice %325 {offsets = [0, 0], sizes = [8, 8], strides = [1, 1]} : vector<8x32xf32> to vector<8x8xf32>
    %331 = arith.truncf %330 : vector<8x8xf32> to vector<8x8xbf16>
    %332 = tpu.transpose %329, [1, 0] : vector<8x8xbf16> -> vector<8x8xbf16>
    %cst_81 = arith.constant dense<0.000000e+00> : vector<8x8xf32>
    %333 = tpu.matmul %327, %332, %cst_81 {dimension_numbers = #tpu.dot_dimension_numbers<[1], [0], [0], [1], [0, 0, 1, 1], [], []>} : vector<8x8xbf16>, vector<8x8xbf16>, vector<8x8xf32> -> vector<8x8xf32>
    %cst_82 = arith.constant dense<0xFF800000> : vector<8xf32>
    %334 = vector.multi_reduction <maximumf>, %333, %cst_82 [1] : vector<8x8xf32> to vector<8xf32>
    %335 = vector.shape_cast %334 : vector<8xf32> to vector<8x1xf32>
    %336 = vector.broadcast %335 : vector<8x1xf32> to vector<8x8xf32>
    %337 = arith.subf %333, %336 : vector<8x8xf32>
    %338 = math.exp %337 : vector<8x8xf32>
    %cst_83 = arith.constant dense<0.000000e+00> : vector<8xf32>
    %339 = vector.multi_reduction <add>, %338, %cst_83 [1] : vector<8x8xf32> to vector<8xf32>
    %340 = vector.shape_cast %339 : vector<8xf32> to vector<8x1xf32>
    %341 = tpu.reciprocal %340 {approx = true} : vector<8x1xf32> -> vector<8x1xf32>
    %342 = vector.broadcast %341 : vector<8x1xf32> to vector<8x8xf32>
    %343 = arith.mulf %338, %342 : vector<8x8xf32>
    %344 = arith.truncf %343 : vector<8x8xf32> to vector<8x8xbf16>
    %cst_84 = arith.constant dense<0.000000e+00> : vector<8x8xf32>
    %345 = tpu.matmul %344, %331, %cst_84 {dimension_numbers = #tpu.dot_dimension_numbers<[1], [0], [0], [1], [0, 0, 1, 1], [], []>} : vector<8x8xbf16>, vector<8x8xbf16>, vector<8x8xf32> -> vector<8x8xf32>
    %346 = vector.extract_strided_slice %323 {offsets = [0, 8], sizes = [8, 8], strides = [1, 1]} : vector<8x32xf32> to vector<8x8xf32>
    %347 = arith.truncf %346 : vector<8x8xf32> to vector<8x8xbf16>
    %348 = vector.extract_strided_slice %324 {offsets = [0, 8], sizes = [8, 8], strides = [1, 1]} : vector<8x32xf32> to vector<8x8xf32>
    %349 = arith.truncf %348 : vector<8x8xf32> to vector<8x8xbf16>
    %350 = vector.extract_strided_slice %325 {offsets = [0, 8], sizes = [8, 8], strides = [1, 1]} : vector<8x32xf32> to vector<8x8xf32>
    %351 = arith.truncf %350 : vector<8x8xf32> to vector<8x8xbf16>
    %352 = tpu.transpose %349, [1, 0] : vector<8x8xbf16> -> vector<8x8xbf16>
    %cst_85 = arith.constant dense<0.000000e+00> : vector<8x8xf32>
    %353 = tpu.matmul %347, %352, %cst_85 {dimension_numbers = #tpu.dot_dimension_numbers<[1], [0], [0], [1], [0, 0, 1, 1], [], []>} : vector<8x8xbf16>, vector<8x8xbf16>, vector<8x8xf32> -> vector<8x8xf32>
    %cst_86 = arith.constant dense<0xFF800000> : vector<8xf32>
    %354 = vector.multi_reduction <maximumf>, %353, %cst_86 [1] : vector<8x8xf32> to vector<8xf32>
    %355 = vector.shape_cast %354 : vector<8xf32> to vector<8x1xf32>
    %356 = vector.broadcast %355 : vector<8x1xf32> to vector<8x8xf32>
    %357 = arith.subf %353, %356 : vector<8x8xf32>
    %358 = math.exp %357 : vector<8x8xf32>
    %cst_87 = arith.constant dense<0.000000e+00> : vector<8xf32>
    %359 = vector.multi_reduction <add>, %358, %cst_87 [1] : vector<8x8xf32> to vector<8xf32>
    %360 = vector.shape_cast %359 : vector<8xf32> to vector<8x1xf32>
    %361 = tpu.reciprocal %360 {approx = true} : vector<8x1xf32> -> vector<8x1xf32>
    %362 = vector.broadcast %361 : vector<8x1xf32> to vector<8x8xf32>
    %363 = arith.mulf %358, %362 : vector<8x8xf32>
    %364 = arith.truncf %363 : vector<8x8xf32> to vector<8x8xbf16>
    %cst_88 = arith.constant dense<0.000000e+00> : vector<8x8xf32>
    %365 = tpu.matmul %364, %351, %cst_88 {dimension_numbers = #tpu.dot_dimension_numbers<[1], [0], [0], [1], [0, 0, 1, 1], [], []>} : vector<8x8xbf16>, vector<8x8xbf16>, vector<8x8xf32> -> vector<8x8xf32>
    %366 = vector.extract_strided_slice %323 {offsets = [0, 16], sizes = [8, 8], strides = [1, 1]} : vector<8x32xf32> to vector<8x8xf32>
    %367 = arith.truncf %366 : vector<8x8xf32> to vector<8x8xbf16>
    %368 = vector.extract_strided_slice %324 {offsets = [0, 16], sizes = [8, 8], strides = [1, 1]} : vector<8x32xf32> to vector<8x8xf32>
    %369 = arith.truncf %368 : vector<8x8xf32> to vector<8x8xbf16>
    %370 = vector.extract_strided_slice %325 {offsets = [0, 16], sizes = [8, 8], strides = [1, 1]} : vector<8x32xf32> to vector<8x8xf32>
    %371 = arith.truncf %370 : vector<8x8xf32> to vector<8x8xbf16>
    %372 = tpu.transpose %369, [1, 0] : vector<8x8xbf16> -> vector<8x8xbf16>
    %cst_89 = arith.constant dense<0.000000e+00> : vector<8x8xf32>
    %373 = tpu.matmul %367, %372, %cst_89 {dimension_numbers = #tpu.dot_dimension_numbers<[1], [0], [0], [1], [0, 0, 1, 1], [], []>} : vector<8x8xbf16>, vector<8x8xbf16>, vector<8x8xf32> -> vector<8x8xf32>
    %cst_90 = arith.constant dense<0xFF800000> : vector<8xf32>
    %374 = vector.multi_reduction <maximumf>, %373, %cst_90 [1] : vector<8x8xf32> to vector<8xf32>
    %375 = vector.shape_cast %374 : vector<8xf32> to vector<8x1xf32>
    %376 = vector.broadcast %375 : vector<8x1xf32> to vector<8x8xf32>
    %377 = arith.subf %373, %376 : vector<8x8xf32>
    %378 = math.exp %377 : vector<8x8xf32>
    %cst_91 = arith.constant dense<0.000000e+00> : vector<8xf32>
    %379 = vector.multi_reduction <add>, %378, %cst_91 [1] : vector<8x8xf32> to vector<8xf32>
    %380 = vector.shape_cast %379 : vector<8xf32> to vector<8x1xf32>
    %381 = tpu.reciprocal %380 {approx = true} : vector<8x1xf32> -> vector<8x1xf32>
    %382 = vector.broadcast %381 : vector<8x1xf32> to vector<8x8xf32>
    %383 = arith.mulf %378, %382 : vector<8x8xf32>
    %384 = arith.truncf %383 : vector<8x8xf32> to vector<8x8xbf16>
    %cst_92 = arith.constant dense<0.000000e+00> : vector<8x8xf32>
    %385 = tpu.matmul %384, %371, %cst_92 {dimension_numbers = #tpu.dot_dimension_numbers<[1], [0], [0], [1], [0, 0, 1, 1], [], []>} : vector<8x8xbf16>, vector<8x8xbf16>, vector<8x8xf32> -> vector<8x8xf32>
    %386 = vector.extract_strided_slice %323 {offsets = [0, 24], sizes = [8, 8], strides = [1, 1]} : vector<8x32xf32> to vector<8x8xf32>
    %387 = arith.truncf %386 : vector<8x8xf32> to vector<8x8xbf16>
    %388 = vector.extract_strided_slice %324 {offsets = [0, 24], sizes = [8, 8], strides = [1, 1]} : vector<8x32xf32> to vector<8x8xf32>
    %389 = arith.truncf %388 : vector<8x8xf32> to vector<8x8xbf16>
    %390 = vector.extract_strided_slice %325 {offsets = [0, 24], sizes = [8, 8], strides = [1, 1]} : vector<8x32xf32> to vector<8x8xf32>
    %391 = arith.truncf %390 : vector<8x8xf32> to vector<8x8xbf16>
    %392 = tpu.transpose %389, [1, 0] : vector<8x8xbf16> -> vector<8x8xbf16>
    %cst_93 = arith.constant dense<0.000000e+00> : vector<8x8xf32>
    %393 = tpu.matmul %387, %392, %cst_93 {dimension_numbers = #tpu.dot_dimension_numbers<[1], [0], [0], [1], [0, 0, 1, 1], [], []>} : vector<8x8xbf16>, vector<8x8xbf16>, vector<8x8xf32> -> vector<8x8xf32>
    %cst_94 = arith.constant dense<0xFF800000> : vector<8xf32>
    %394 = vector.multi_reduction <maximumf>, %393, %cst_94 [1] : vector<8x8xf32> to vector<8xf32>
    %395 = vector.shape_cast %394 : vector<8xf32> to vector<8x1xf32>
    %396 = vector.broadcast %395 : vector<8x1xf32> to vector<8x8xf32>
    %397 = arith.subf %393, %396 : vector<8x8xf32>
    %398 = math.exp %397 : vector<8x8xf32>
    %cst_95 = arith.constant dense<0.000000e+00> : vector<8xf32>
    %399 = vector.multi_reduction <add>, %398, %cst_95 [1] : vector<8x8xf32> to vector<8xf32>
    %400 = vector.shape_cast %399 : vector<8xf32> to vector<8x1xf32>
    %401 = tpu.reciprocal %400 {approx = true} : vector<8x1xf32> -> vector<8x1xf32>
    %402 = vector.broadcast %401 : vector<8x1xf32> to vector<8x8xf32>
    %403 = arith.mulf %398, %402 : vector<8x8xf32>
    %404 = arith.truncf %403 : vector<8x8xf32> to vector<8x8xbf16>
    %cst_96 = arith.constant dense<0.000000e+00> : vector<8x8xf32>
    %405 = tpu.matmul %404, %391, %cst_96 {dimension_numbers = #tpu.dot_dimension_numbers<[1], [0], [0], [1], [0, 0, 1, 1], [], []>} : vector<8x8xbf16>, vector<8x8xbf16>, vector<8x8xf32> -> vector<8x8xf32>
    %406 = tpu.concatenate %345, %365, %385, %405 in 1 : vector<8x8xf32>, vector<8x8xf32>, vector<8x8xf32>, vector<8x8xf32> -> vector<8x32xf32>
    %407 = tpu.concatenate %322, %406 in 0 : vector<8x32xf32>, vector<8x32xf32> -> vector<16x32xf32>
    %408 = arith.truncf %407 : vector<16x32xf32> to vector<16x32xbf16>
    %c0_97 = arith.constant 0 : index
    %c0_98 = arith.constant 0 : index
    %409 = vector.load %arg13[%c0_97, %c0_98] : memref<32x32xbf16, #tpu.memory_space<vmem>>, vector<32x32xbf16>
    %cst_99 = arith.constant dense<0.000000e+00> : vector<16x32xf32>
    %410 = tpu.matmul %408, %409, %cst_99 {dimension_numbers = #tpu.dot_dimension_numbers<[1], [0], [0], [1], [0, 0, 1, 1], [], []>} : vector<16x32xbf16>, vector<32x32xbf16>, vector<16x32xf32> -> vector<16x32xf32>
    %c0_100 = arith.constant 0 : index
    %c0_101 = arith.constant 0 : index
    %411 = vector.load %arg14[%c0_100, %c0_101] : memref<1x32xf32, #tpu.memory_space<vmem>>, vector<1x32xf32>
    %412 = vector.broadcast %411 : vector<1x32xf32> to vector<16x32xf32>
    %413 = arith.addf %410, %412 : vector<16x32xf32>
    %414 = arith.addf %413, %223 : vector<16x32xf32>
    %c0_102 = arith.constant 0 : index
    %c0_103 = arith.constant 0 : index
    %415 = vector.load %arg15[%c0_102, %c0_103] : memref<1x32xf32, #tpu.memory_space<vmem>>, vector<1x32xf32>
    %c0_104 = arith.constant 0 : index
    %c0_105 = arith.constant 0 : index
    %416 = vector.load %arg16[%c0_104, %c0_105] : memref<1x32xf32, #tpu.memory_space<vmem>>, vector<1x32xf32>
    %cst_106 = arith.constant dense<0.000000e+00> : vector<16xf32>
    %417 = vector.multi_reduction <add>, %414, %cst_106 [1] : vector<16x32xf32> to vector<16xf32>
    %418 = vector.shape_cast %417 : vector<16xf32> to vector<16x1xf32>
    %cst_107 = arith.constant 3.200000e+01 : f32
    %419 = vector.broadcast %cst_107 : f32 to vector<16x1xf32>
    %420 = arith.divf %418, %419 : vector<16x1xf32>
    %421 = vector.broadcast %420 : vector<16x1xf32> to vector<16x32xf32>
    %422 = arith.subf %414, %421 : vector<16x32xf32>
    %423 = arith.mulf %422, %422 : vector<16x32xf32>
    %cst_108 = arith.constant dense<0.000000e+00> : vector<16xf32>
    %424 = vector.multi_reduction <add>, %423, %cst_108 [1] : vector<16x32xf32> to vector<16xf32>
    %425 = vector.shape_cast %424 : vector<16xf32> to vector<16x1xf32>
    %cst_109 = arith.constant 3.200000e+01 : f32
    %426 = vector.broadcast %cst_109 : f32 to vector<16x1xf32>
    %427 = arith.divf %425, %426 : vector<16x1xf32>
    %428 = vector.broadcast %420 : vector<16x1xf32> to vector<16x32xf32>
    %429 = arith.subf %414, %428 : vector<16x32xf32>
    %cst_110 = arith.constant 9.99999974E-6 : f32
    %430 = vector.broadcast %cst_110 : f32 to vector<16x1xf32>
    %431 = arith.addf %427, %430 : vector<16x1xf32>
    %432 = math.rsqrt %431 : vector<16x1xf32>
    %433 = vector.broadcast %432 : vector<16x1xf32> to vector<16x32xf32>
    %434 = arith.mulf %429, %433 : vector<16x32xf32>
    %435 = vector.broadcast %415 : vector<1x32xf32> to vector<16x32xf32>
    %436 = arith.mulf %434, %435 : vector<16x32xf32>
    %437 = vector.broadcast %416 : vector<1x32xf32> to vector<16x32xf32>
    %438 = arith.addf %436, %437 : vector<16x32xf32>
    %439 = arith.truncf %438 : vector<16x32xf32> to vector<16x32xbf16>
    %c0_111 = arith.constant 0 : index
    %c0_112 = arith.constant 0 : index
    %440 = vector.load %arg17[%c0_111, %c0_112] : memref<32x64xbf16, #tpu.memory_space<vmem>>, vector<32x64xbf16>
    %cst_113 = arith.constant dense<0.000000e+00> : vector<16x64xf32>
    %441 = tpu.matmul %439, %440, %cst_113 {dimension_numbers = #tpu.dot_dimension_numbers<[1], [0], [0], [1], [0, 0, 1, 1], [], []>} : vector<16x32xbf16>, vector<32x64xbf16>, vector<16x64xf32> -> vector<16x64xf32>
    %c0_114 = arith.constant 0 : index
    %c0_115 = arith.constant 0 : index
    %442 = vector.load %arg18[%c0_114, %c0_115] : memref<1x64xf32, #tpu.memory_space<vmem>>, vector<1x64xf32>
    %443 = vector.broadcast %442 : vector<1x64xf32> to vector<16x64xf32>
    %444 = arith.addf %441, %443 : vector<16x64xf32>
    %cst_116 = arith.constant 0.000000e+00 : f32
    %445 = vector.broadcast %cst_116 : f32 to vector<16x64xf32>
    %446 = arith.maximumf %444, %445 : vector<16x64xf32>
    %447 = arith.truncf %446 : vector<16x64xf32> to vector<16x64xbf16>
    %c0_117 = arith.constant 0 : index
    %c0_118 = arith.constant 0 : index
    %448 = vector.load %arg19[%c0_117, %c0_118] : memref<64x32xbf16, #tpu.memory_space<vmem>>, vector<64x32xbf16>
    %cst_119 = arith.constant dense<0.000000e+00> : vector<16x32xf32>
    %449 = tpu.matmul %447, %448, %cst_119 {dimension_numbers = #tpu.dot_dimension_numbers<[1], [0], [0], [1], [0, 0, 1, 1], [], []>} : vector<16x64xbf16>, vector<64x32xbf16>, vector<16x32xf32> -> vector<16x32xf32>
    %c0_120 = arith.constant 0 : index
    %c0_121 = arith.constant 0 : index
    %450 = vector.load %arg20[%c0_120, %c0_121] : memref<1x32xf32, #tpu.memory_space<vmem>>, vector<1x32xf32>
    %451 = vector.broadcast %450 : vector<1x32xf32> to vector<16x32xf32>
    %452 = arith.addf %449, %451 : vector<16x32xf32>
    %453 = arith.addf %452, %438 : vector<16x32xf32>
    %c0_122 = arith.constant 0 : index
    %c0_123 = arith.constant 0 : index
    %454 = vector.load %arg21[%c0_122, %c0_123] : memref<1x32xf32, #tpu.memory_space<vmem>>, vector<1x32xf32>
    %c0_124 = arith.constant 0 : index
    %c0_125 = arith.constant 0 : index
    %455 = vector.load %arg22[%c0_124, %c0_125] : memref<1x32xf32, #tpu.memory_space<vmem>>, vector<1x32xf32>
    %cst_126 = arith.constant dense<0.000000e+00> : vector<16xf32>
    %456 = vector.multi_reduction <add>, %453, %cst_126 [1] : vector<16x32xf32> to vector<16xf32>
    %457 = vector.shape_cast %456 : vector<16xf32> to vector<16x1xf32>
    %cst_127 = arith.constant 3.200000e+01 : f32
    %458 = vector.broadcast %cst_127 : f32 to vector<16x1xf32>
    %459 = arith.divf %457, %458 : vector<16x1xf32>
    %460 = vector.broadcast %459 : vector<16x1xf32> to vector<16x32xf32>
    %461 = arith.subf %453, %460 : vector<16x32xf32>
    %462 = arith.mulf %461, %461 : vector<16x32xf32>
    %cst_128 = arith.constant dense<0.000000e+00> : vector<16xf32>
    %463 = vector.multi_reduction <add>, %462, %cst_128 [1] : vector<16x32xf32> to vector<16xf32>
    %464 = vector.shape_cast %463 : vector<16xf32> to vector<16x1xf32>
    %cst_129 = arith.constant 3.200000e+01 : f32
    %465 = vector.broadcast %cst_129 : f32 to vector<16x1xf32>
    %466 = arith.divf %464, %465 : vector<16x1xf32>
    %467 = vector.broadcast %459 : vector<16x1xf32> to vector<16x32xf32>
    %468 = arith.subf %453, %467 : vector<16x32xf32>
    %cst_130 = arith.constant 9.99999974E-6 : f32
    %469 = vector.broadcast %cst_130 : f32 to vector<16x1xf32>
    %470 = arith.addf %466, %469 : vector<16x1xf32>
    %471 = math.rsqrt %470 : vector<16x1xf32>
    %472 = vector.broadcast %471 : vector<16x1xf32> to vector<16x32xf32>
    %473 = arith.mulf %468, %472 : vector<16x32xf32>
    %474 = vector.broadcast %454 : vector<1x32xf32> to vector<16x32xf32>
    %475 = arith.mulf %473, %474 : vector<16x32xf32>
    %476 = vector.broadcast %455 : vector<1x32xf32> to vector<16x32xf32>
    %477 = arith.addf %475, %476 : vector<16x32xf32>
    %c0_131 = arith.constant 0 : index
    %c0_132 = arith.constant 0 : index
    %478 = vector.load %arg23[%c0_131, %c0_132] : memref<16x32xf32, #tpu.memory_space<vmem>>, vector<16x32xf32>
    tpu.vector_store %arg23[%c0_131, %c0_132], %477 {strides = array<i32>} : memref<16x32xf32, #tpu.memory_space<vmem>>, vector<16x32xf32>,
    return
  }
  func.func @transform_0(%arg0: i32) -> (i32, i32) {
    %c0_i32 = arith.constant 0 : i32
    %c0_i32_0 = arith.constant 0 : i32
    %c0_i32_1 = arith.constant 0 : i32
    return %c0_i32, %c0_i32_0 : i32, i32
  }
  func.func @transform_1(%arg0: i32) -> (i32, i32) {
    %c0_i32 = arith.constant 0 : i32
    %c0_i32_0 = arith.constant 0 : i32
    %c0_i32_1 = arith.constant 0 : i32
    return %c0_i32, %c0_i32_0 : i32, i32
  }
  func.func @transform_2(%arg0: i32) -> (i32, i32) {
    %c0_i32 = arith.constant 0 : i32
    %c0_i32_0 = arith.constant 0 : i32
    %c0_i32_1 = arith.constant 0 : i32
    return %c0_i32, %c0_i32_0 : i32, i32
  }
  func.func @transform_3(%arg0: i32) -> (i32, i32) {
    %c0_i32 = arith.constant 0 : i32
    %c0_i32_0 = arith.constant 0 : i32
    %c0_i32_1 = arith.constant 0 : i32
    return %c0_i32, %c0_i32_0 : i32, i32
  }
  func.func @transform_4(%arg0: i32) -> (i32, i32) {
    %c0_i32 = arith.constant 0 : i32
    %c0_i32_0 = arith.constant 0 : i32
    %c0_i32_1 = arith.constant 0 : i32
    return %c0_i32, %c0_i32_0 : i32, i32
  }
  func.func @transform_5(%arg0: i32) -> (i32, i32) {
    %c0_i32 = arith.constant 0 : i32
    %c0_i32_0 = arith.constant 0 : i32
    %c0_i32_1 = arith.constant 0 : i32
    return %c0_i32, %c0_i32_0 : i32, i32
  }
  func.func @transform_6(%arg0: i32) -> (i32, i32) {
    %c0_i32 = arith.constant 0 : i32
    %c0_i32_0 = arith.constant 0 : i32
    %c0_i32_1 = arith.constant 0 : i32
    return %c0_i32, %c0_i32_0 : i32, i32
  }
  func.func @transform_7(%arg0: i32) -> (i32, i32) {
    %c0_i32 = arith.constant 0 : i32
    %c0_i32_0 = arith.constant 0 : i32
    %c0_i32_1 = arith.constant 0 : i32
    return %c0_i32, %c0_i32_0 : i32, i32
  }
  func.func @transform_8(%arg0: i32) -> (i32, i32) {
    %c0_i32 = arith.constant 0 : i32
    %c0_i32_0 = arith.constant 0 : i32
    %c0_i32_1 = arith.constant 0 : i32
    return %c0_i32, %c0_i32_0 : i32, i32
  }
  func.func @transform_9(%arg0: i32) -> (i32, i32) {
    %c0_i32 = arith.constant 0 : i32
    %c0_i32_0 = arith.constant 0 : i32
    %c0_i32_1 = arith.constant 0 : i32
    return %c0_i32, %c0_i32_0 : i32, i32
  }
  func.func @transform_10(%arg0: i32) -> (i32, i32) {
    %c0_i32 = arith.constant 0 : i32
    %c0_i32_0 = arith.constant 0 : i32
    %c0_i32_1 = arith.constant 0 : i32
    return %c0_i32, %c0_i32_0 : i32, i32
  }
  func.func @transform_11(%arg0: i32) -> (i32, i32) {
    %c0_i32 = arith.constant 0 : i32
    %c0_i32_0 = arith.constant 0 : i32
    %c0_i32_1 = arith.constant 0 : i32
    return %c0_i32, %c0_i32_0 : i32, i32
  }
  func.func @transform_12(%arg0: i32) -> (i32, i32) {
    %c0_i32 = arith.constant 0 : i32
    %c0_i32_0 = arith.constant 0 : i32
    %c0_i32_1 = arith.constant 0 : i32
    return %c0_i32, %c0_i32_0 : i32, i32
  }
  func.func @transform_13(%arg0: i32) -> (i32, i32) {
    %c0_i32 = arith.constant 0 : i32
    %c0_i32_0 = arith.constant 0 : i32
    %c0_i32_1 = arith.constant 0 : i32
    return %c0_i32, %c0_i32_0 : i32, i32
  }
  func.func @transform_14(%arg0: i32) -> (i32, i32) {
    %c0_i32 = arith.constant 0 : i32
    %c0_i32_0 = arith.constant 0 : i32
    %c0_i32_1 = arith.constant 0 : i32
    return %c0_i32, %c0_i32_0 : i32, i32
  }
  func.func @transform_15(%arg0: i32) -> (i32, i32) {
    %c0_i32 = arith.constant 0 : i32
    %c0_i32_0 = arith.constant 0 : i32
    %c0_i32_1 = arith.constant 0 : i32
    return %c0_i32, %c0_i32_0 : i32, i32
  }
  func.func @transform_16(%arg0: i32) -> (i32, i32) {
    %c0_i32 = arith.constant 0 : i32
    %c0_i32_0 = arith.constant 0 : i32
    %c0_i32_1 = arith.constant 0 : i32
    return %c0_i32, %c0_i32_0 : i32, i32
  }
  func.func @transform_17(%arg0: i32) -> (i32, i32) {
    %c0_i32 = arith.constant 0 : i32
    %c0_i32_0 = arith.constant 0 : i32
    %c0_i32_1 = arith.constant 0 : i32
    return %c0_i32, %c0_i32_0 : i32, i32
  }
  func.func @transform_18(%arg0: i32) -> (i32, i32) {
    %c0_i32 = arith.constant 0 : i32
    %c0_i32_0 = arith.constant 0 : i32
    %c0_i32_1 = arith.constant 0 : i32
    return %c0_i32, %c0_i32_0 : i32, i32
  }
  func.func @transform_19(%arg0: i32) -> (i32, i32) {
    %c0_i32 = arith.constant 0 : i32
    %c0_i32_0 = arith.constant 0 : i32
    %c0_i32_1 = arith.constant 0 : i32
    return %c0_i32, %c0_i32_0 : i32, i32
  }
  func.func @transform_20(%arg0: i32) -> (i32, i32) {
    %c0_i32 = arith.constant 0 : i32
    %c0_i32_0 = arith.constant 0 : i32
    %c0_i32_1 = arith.constant 0 : i32
    return %c0_i32, %c0_i32_0 : i32, i32
  }
  func.func @transform_21(%arg0: i32) -> (i32, i32) {
    %c0_i32 = arith.constant 0 : i32
    %c0_i32_0 = arith.constant 0 : i32
    %c0_i32_1 = arith.constant 0 : i32
    return %c0_i32, %c0_i32_0 : i32, i32
  }
  func.func @transform_22(%arg0: i32) -> (i32, i32) {
    %c0_i32 = arith.constant 0 : i32
    %c0_i32_0 = arith.constant 0 : i32
    %c0_i32_1 = arith.constant 0 : i32
    return %c0_i32, %c0_i32_0 : i32, i32
  }
}

</mosaic_0001>

<llo_original>
// kernel: decoder_forward.2
$region0: #{decoder_forward.2}
  #allocation0 [shape = 'u32[]', space=smem, size = 0x4, offset = 0x4, fixed_abs, tag = 'smem constant byte address 0x4 - core index']
  #allocation1 [shape = 'u32[144,128]{1,0:T(1,128)}', space=vmem, size = 0x12000, scoped, tag = 'internal scratch']
  %s0 = inlined_call_operand.hbm [shape: f32[16,32], index: 0, kind: input, shape index: {}]
  %s1 = inlined_call_operand.hbm [shape: f32[16,32], index: 1, kind: input, shape index: {}]
  %s2 = inlined_call_operand.hbm [shape: bf16[32,96], index: 2, kind: input, shape index: {}]
  %s3 = inlined_call_operand.hbm [shape: f32[1,96], index: 3, kind: input, shape index: {}]
  %s4 = inlined_call_operand.hbm [shape: bf16[32,32], index: 4, kind: input, shape index: {}]
  %s5 = inlined_call_operand.hbm [shape: f32[1,32], index: 5, kind: input, shape index: {}]
  %s6 = inlined_call_operand.hbm [shape: f32[1,32], index: 6, kind: input, shape index: {}]
  %s7 = inlined_call_operand.hbm [shape: f32[1,32], index: 7, kind: input, shape index: {}]
  %s8 = inlined_call_operand.hbm [shape: bf16[32,32], index: 8, kind: input, shape index: {}]
  %s9 = inlined_call_operand.hbm [shape: f32[1,32], index: 9, kind: input, shape index: {}]
  %s10 = inlined_call_operand.hbm [shape: bf16[32,64], index: 10, kind: input, shape index: {}]
  %s11 = inlined_call_operand.hbm [shape: f32[1,64], index: 11, kind: input, shape index: {}]
  %s12 = inlined_call_operand.hbm [shape: bf16[32,32], index: 12, kind: input, shape index: {}]
  %s13 = inlined_call_operand.hbm [shape: f32[1,32], index: 13, kind: input, shape index: {}]
  %s14 = inlined_call_operand.hbm [shape: f32[1,32], index: 14, kind: input, shape index: {}]
  %s15 = inlined_call_operand.hbm [shape: f32[1,32], index: 15, kind: input, shape index: {}]
  %s16 = inlined_call_operand.hbm [shape: bf16[32,64], index: 16, kind: input, shape index: {}]
  %s17 = inlined_call_operand.hbm [shape: f32[1,64], index: 17, kind: input, shape index: {}]
  %s18 = inlined_call_operand.hbm [shape: bf16[64,32], index: 18, kind: input, shape index: {}]
  %s19 = inlined_call_operand.hbm [shape: f32[1,32], index: 19, kind: input, shape index: {}]
  %s20 = inlined_call_operand.hbm [shape: f32[1,32], index: 20, kind: input, shape index: {}]
  %s21 = inlined_call_operand.hbm [shape: f32[1,32], index: 21, kind: input, shape index: {}]
  %s22 = inlined_call_operand.hbm [shape: f32[16,32], index: 22, kind: output, shape index: {}]
  %s23 = sld [smem:[#allocation0]]
  $region186: #{decoder_forward.2} parent=0
    _
  %s25 = ssub.s32 1, %s23
  %s26 = scalar_select 0, %s25, %s23
  $region1: #{decoder_forward.2} parent=0
    #allocation2 [shape = 'u8[8192]{0}', space=vmem, size = 0x2000, scoped, tag = 'input window, operand 0, single buffered']
    #allocation3 [shape = 's32[1]{0}', space=sflag, size = 0x4, scoped, tag = 'scoped memory for decoder_forward.2']
    #allocation4 [shape = 's32[1]{0}', space=sflag, size = 0x4, scoped, tag = 'scoped memory for decoder_forward.2']
    #allocation5 [shape = 'u8[8192]{0}', space=vmem, size = 0x2000, scoped, tag = 'input window, operand 1, single buffered']
    #allocation6 [shape = 's32[1]{0}', space=sflag, size = 0x4, scoped, tag = 'scoped memory for decoder_forward.2']
    #allocation7 [shape = 'u8[8192]{0}', space=vmem, size = 0x2000, scoped, tag = 'input window, operand 2, single buffered']
    #allocation8 [shape = 'u8[512]{0}', space=vmem, size = 0x400, scoped, tag = 'input window, operand 3, single buffered']
    #allocation9 [shape = 's32[1]{0}', space=sflag, size = 0x4, scoped, tag = 'scoped memory for decoder_forward.2']
    #allocation10 [shape = 'u8[8192]{0}', space=vmem, size = 0x2000, scoped, tag = 'input window, operand 4, single buffered']
    #allocation11 [shape = 'u8[512]{0}', space=vmem, size = 0x400, scoped, tag = 'input window, operand 5, single buffered']
    #allocation12 [shape = 's32[1]{0}', space=sflag, size = 0x4, scoped, tag = 'scoped memory for decoder_forward.2']
    #allocation13 [shape = 'u8[512]{0}', space=vmem, size = 0x400, scoped, tag = 'input window, operand 6, single buffered']
    #allocation14 [shape = 'u8[512]{0}', space=vmem, size = 0x400, scoped, tag = 'input window, operand 7, single buffered']
    #allocation15 [shape = 's32[1]{0}', space=sflag, size = 0x4, scoped, tag = 'scoped memory for decoder_forward.2']
    #allocation16 [shape = 'u8[8192]{0}', space=vmem, size = 0x2000, scoped, tag = 'input window, operand 8, single buffered']
    #allocation17 [shape = 'u8[512]{0}', space=vmem, size = 0x400, scoped, tag = 'input window, operand 9, single buffered']
    #allocation18 [shape = 's32[1]{0}', space=sflag, size = 0x4, scoped, tag = 'scoped memory for decoder_forward.2']
    #allocation19 [shape = 'u8[8192]{0}', space=vmem, size = 0x2000, scoped, tag = 'input window, operand 10, single buffered']
    #allocation20 [shape = 'u8[512]{0}', space=vmem, size = 0x400, scoped, tag = 'input window, operand 11, single buffered']
    #allocation21 [shape = 's32[1]{0}', space=sflag, size = 0x4, scoped, tag = 'scoped memory for decoder_forward.2']
    #allocation22 [shape = 'u8[8192]{0}', space=vmem, size = 0x2000, scoped, tag = 'input window, operand 12, single buffered']
    #allocation23 [shape = 'u8[512]{0}', space=vmem, size = 0x400, scoped, tag = 'input window, operand 13, single buffered']
    #allocation24 [shape = 's32[1]{0}', space=sflag, size = 0x4, scoped, tag = 'scoped memory for decoder_forward.2']
    #allocation25 [shape = 'u8[512]{0}', space=vmem, size = 0x400, scoped, tag = 'input window, operand 14, single buffered']
    #allocation26 [shape = 'u8[512]{0}', space=vmem, size = 0x400, scoped, tag = 'input window, operand 15, single buffered']
    #allocation27 [shape = 's32[1]{0}', space=sflag, size = 0x4, scoped, tag = 'scoped memory for decoder_forward.2']
    #allocation28 [shape = 'u8[8192]{0}', space=vmem, size = 0x2000, scoped, tag = 'input window, operand 16, single buffered']
    #allocation29 [shape = 'u8[512]{0}', space=vmem, size = 0x400, scoped, tag = 'input window, operand 17, single buffered']
    #allocation30 [shape = 's32[1]{0}', space=sflag, size = 0x4, scoped, tag = 'scoped memory for decoder_forward.2']
    #allocation31 [shape = 'u8[16384]{0}', space=vmem, size = 0x4000, scoped, tag = 'input window, operand 18, single buffered']
    #allocation32 [shape = 'u8[512]{0}', space=vmem, size = 0x400, scoped, tag = 'input window, operand 19, single buffered']
    #allocation33 [shape = 's32[1]{0}', space=sflag, size = 0x4, scoped, tag = 'scoped memory for decoder_forward.2']
    #allocation34 [shape = 'u8[512]{0}', space=vmem, size = 0x400, scoped, tag = 'input window, operand 20, single buffered']
    #allocation35 [shape = 'u8[512]{0}', space=vmem, size = 0x400, scoped, tag = 'input window, operand 21, single buffered']
    #allocation36 [shape = 's32[1]{0}', space=sflag, size = 0x4, scoped, tag = 'scoped memory for decoder_forward.2']
    #allocation37 [shape = 'u8[8192]{0}', space=vmem, size = 0x2000, scoped, tag = 'output window, operand 0, single buffered']
    %27 = vsyncpa [#allocation3], 0
    %28 = vsyncpa [#allocation6], 0
    %29 = vsyncpa [#allocation9], 0
    %30 = vsyncpa [#allocation12], 0
    %31 = vsyncpa [#allocation15], 0
    %32 = vsyncpa [#allocation18], 0
    %33 = vsyncpa [#allocation21], 0
    %34 = vsyncpa [#allocation24], 0
    %35 = vsyncpa [#allocation27], 0
    %36 = vsyncpa [#allocation30], 0
    %37 = vsyncpa [#allocation33], 0
    %38 = vsyncpa [#allocation36], 0
    %39 = vsyncpa [#allocation4], 0
    // Predicated region
    $region2: #{decoder_forward.2} parent=1 // pred_check
      _
    $region3: #{decoder_forward.2} parent=1 // pred_check_branch
      %41 = sbr.rel (0) target = $region5
    $region4: #{decoder_forward.2} parent=1 // pred_region
      %s43 = ssub.s32 256, 256
      %44 = vsyncadd [#allocation3], %s43
      %s45 = sshll.u32 [#allocation2], 4
      %s46 = int_to_ptr.vmem [resolvable:$true] %s45
      %51 = dma.hbm_to_vmem [thread:$0]  %s0, 256, %s46, [#allocation3], 128, 128, 8
    $region5: #{decoder_forward.2} parent=1 // pred_fallthru
      _
    // Predicated region
    $region6: #{decoder_forward.2} parent=1 // pred_check
      _
    $region7: #{decoder_forward.2} parent=1 // pred_check_branch
      %53 = sbr.rel (0) target = $region9
    $region8: #{decoder_forward.2} parent=1 // pred_region
      %s55 = ssub.s32 256, 256
      %56 = vsyncadd [#allocation6], %s55
      %s57 = sshll.u32 [#allocation5], 4
      %s58 = int_to_ptr.vmem [resolvable:$true] %s57
      %63 = dma.hbm_to_vmem [thread:$0]  %s1, 256, %s58, [#allocation6], 128, 128, 8
    $region9: #{decoder_forward.2} parent=1 // pred_fallthru
      _
    // Predicated region
    $region10: #{decoder_forward.2} parent=1 // pred_check
      _
    $region11: #{decoder_forward.2} parent=1 // pred_check_branch
      %65 = sbr.rel (0) target = $region13
    $region12: #{decoder_forward.2} parent=1 // pred_region
      %s67 = ssub.s32 256, 256
      %68 = vsyncadd [#allocation6], %s67
      %s69 = sshll.u32 [#allocation7], 4
      %s70 = int_to_ptr.vmem [resolvable:$true] %s69
      %75 = dma.hbm_to_vmem [thread:$0]  %s2, 256, %s70, [#allocation6], 64, 64, 4
    $region13: #{decoder_forward.2} parent=1 // pred_fallthru
      _
    // Predicated region
    $region14: #{decoder_forward.2} parent=1 // pred_check
      _
    $region15: #{decoder_forward.2} parent=1 // pred_check_branch
      %77 = sbr.rel (0) target = $region17
    $region16: #{decoder_forward.2} parent=1 // pred_region
      %s79 = ssub.s32 16, 16
      %80 = vsyncadd [#allocation9], %s79
      %s82 = sshll.u32 [#allocation8], 4
      %s83 = int_to_ptr.vmem [resolvable:$true] %s82
      %85 = dma.hbm_to_vmem [thread:$0]  %s3, 16, %s83, [#allocation9]
    $region17: #{decoder_forward.2} parent=1 // pred_fallthru
      _
    // Predicated region
    $region18: #{decoder_forward.2} parent=1 // pred_check
      _
    $region19: #{decoder_forward.2} parent=1 // pred_check_branch
      %87 = sbr.rel (0) target = $region21
    $region20: #{decoder_forward.2} parent=1 // pred_region
      %s89 = ssub.s32 256, 256
      %90 = vsyncadd [#allocation9], %s89
      %s91 = sshll.u32 [#allocation10], 4
      %s92 = int_to_ptr.vmem [resolvable:$true] %s91
      %97 = dma.hbm_to_vmem [thread:$0]  %s4, 256, %s92, [#allocation9], 64, 64, 4
    $region21: #{decoder_forward.2} parent=1 // pred_fallthru
      _
    // Predicated region
    $region22: #{decoder_forward.2} parent=1 // pred_check
      _
    $region23: #{decoder_forward.2} parent=1 // pred_check_branch
      %99 = sbr.rel (0) target = $region25
    $region24: #{decoder_forward.2} parent=1 // pred_region
      %s101 = ssub.s32 16, 16
      %102 = vsyncadd [#allocation12], %s101
      %s104 = sshll.u32 [#allocation11], 4
      %s105 = int_to_ptr.vmem [resolvable:$true] %s104
      %107 = dma.hbm_to_vmem [thread:$0]  %s5, 16, %s105, [#allocation12]
    $region25: #{decoder_forward.2} parent=1 // pred_fallthru
      _
    // Predicated region
    $region26: #{decoder_forward.2} parent=1 // pred_check
      _
    $region27: #{decoder_forward.2} parent=1 // pred_check_branch
      %109 = sbr.rel (0) target = $region29
    $region28: #{decoder_forward.2} parent=1 // pred_region
      %s111 = ssub.s32 16, 16
      %112 = vsyncadd [#allocation12], %s111
      %s114 = sshll.u32 [#allocation13], 4
      %s115 = int_to_ptr.vmem [resolvable:$true] %s114
      %117 = dma.hbm_to_vmem [thread:$0]  %s6, 16, %s115, [#allocation12]
    $region29: #{decoder_forward.2} parent=1 // pred_fallthru
      _
    // Predicated region
    $region30: #{decoder_forward.2} parent=1 // pred_check
      _
    $region31: #{decoder_forward.2} parent=1 // pred_check_branch
      %119 = sbr.rel (0) target = $region33
    $region32: #{decoder_forward.2} parent=1 // pred_region
      %s121 = ssub.s32 16, 16
      %122 = vsyncadd [#allocation15], %s121
      %s124 = sshll.u32 [#allocation14], 4
      %s125 = int_to_ptr.vmem [resolvable:$true] %s124
      %127 = dma.hbm_to_vmem [thread:$0]  %s7, 16, %s125, [#allocation15]
    $region33: #{decoder_forward.2} parent=1 // pred_fallthru
      _
    // Predicated region
    $region34: #{decoder_forward.2} parent=1 // pred_check
      _
    $region35: #{decoder_forward.2} parent=1 // pred_check_branch
      %129 = sbr.rel (0) target = $region37
    $region36: #{decoder_forward.2} parent=1 // pred_region
      %s131 = ssub.s32 256, 256
      %132 = vsyncadd [#allocation15], %s131
      %s133 = sshll.u32 [#allocation16], 4
      %s134 = int_to_ptr.vmem [resolvable:$true] %s133
      %139 = dma.hbm_to_vmem [thread:$0]  %s8, 256, %s134, [#allocation15], 64, 64, 4
    $region37: #{decoder_forward.2} parent=1 // pred_fallthru
      _
    // Predicated region
    $region38: #{decoder_forward.2} parent=1 // pred_check
      _
    $region39: #{decoder_forward.2} parent=1 // pred_check_branch
      %141 = sbr.rel (0) target = $region41
    $region40: #{decoder_forward.2} parent=1 // pred_region
      %s143 = ssub.s32 16, 16
      %144 = vsyncadd [#allocation18], %s143
      %s146 = sshll.u32 [#allocation17], 4
      %s147 = int_to_ptr.vmem [resolvable:$true] %s146
      %149 = dma.hbm_to_vmem [thread:$0]  %s9, 16, %s147, [#allocation18]
    $region41: #{decoder_forward.2} parent=1 // pred_fallthru
      _
    // Predicated region
    $region42: #{decoder_forward.2} parent=1 // pred_check
      _
    $region43: #{decoder_forward.2} parent=1 // pred_check_branch
      %151 = sbr.rel (0) target = $region45
    $region44: #{decoder_forward.2} parent=1 // pred_region
      %s153 = ssub.s32 256, 256
      %154 = vsyncadd [#allocation18], %s153
      %s155 = sshll.u32 [#allocation19], 4
      %s156 = int_to_ptr.vmem [resolvable:$true] %s155
      %161 = dma.hbm_to_vmem [thread:$0]  %s10, 256, %s156, [#allocation18], 64, 64, 4
    $region45: #{decoder_forward.2} parent=1 // pred_fallthru
      _
    // Predicated region
    $region46: #{decoder_forward.2} parent=1 // pred_check
      _
    $region47: #{decoder_forward.2} parent=1 // pred_check_branch
      %163 = sbr.rel (0) target = $region49
    $region48: #{decoder_forward.2} parent=1 // pred_region
      %s165 = ssub.s32 16, 16
      %166 = vsyncadd [#allocation21], %s165
      %s168 = sshll.u32 [#allocation20], 4
      %s169 = int_to_ptr.vmem [resolvable:$true] %s168
      %171 = dma.hbm_to_vmem [thread:$0]  %s11, 16, %s169, [#allocation21]
    $region49: #{decoder_forward.2} parent=1 // pred_fallthru
      _
    // Predicated region
    $region50: #{decoder_forward.2} parent=1 // pred_check
      _
    $region51: #{decoder_forward.2} parent=1 // pred_check_branch
      %173 = sbr.rel (0) target = $region53
    $region52: #{decoder_forward.2} parent=1 // pred_region
      %s175 = ssub.s32 256, 256
      %176 = vsyncadd [#allocation21], %s175
      %s177 = sshll.u32 [#allocation22], 4
      %s178 = int_to_ptr.vmem [resolvable:$true] %s177
      %183 = dma.hbm_to_vmem [thread:$0]  %s12, 256, %s178, [#allocation21], 64, 64, 4
    $region53: #{decoder_forward.2} parent=1 // pred_fallthru
      _
    // Predicated region
    $region54: #{decoder_forward.2} parent=1 // pred_check
      _
    $region55: #{decoder_forward.2} parent=1 // pred_check_branch
      %185 = sbr.rel (0) target = $region57
    $region56: #{decoder_forward.2} parent=1 // pred_region
      %s187 = ssub.s32 16, 16
      %188 = vsyncadd [#allocation24], %s187
      %s190 = sshll.u32 [#allocation23], 4
      %s191 = int_to_ptr.vmem [resolvable:$true] %s190
      %193 = dma.hbm_to_vmem [thread:$0]  %s13, 16, %s191, [#allocation24]
    $region57: #{decoder_forward.2} parent=1 // pred_fallthru
      _
    // Predicated region
    $region58: #{decoder_forward.2} parent=1 // pred_check
      _
    $region59: #{decoder_forward.2} parent=1 // pred_check_branch
      %195 = sbr.rel (0) target = $region61
    $region60: #{decoder_forward.2} parent=1 // pred_region
      %s197 = ssub.s32 16, 16
      %198 = vsyncadd [#allocation24], %s197
      %s200 = sshll.u32 [#allocation25], 4
      %s201 = int_to_ptr.vmem [resolvable:$true] %s200
      %203 = dma.hbm_to_vmem [thread:$0]  %s14, 16, %s201, [#allocation24]
    $region61: #{decoder_forward.2} parent=1 // pred_fallthru
      _
    // Predicated region
    $region62: #{decoder_forward.2} parent=1 // pred_check
      _
    $region63: #{decoder_forward.2} parent=1 // pred_check_branch
      %205 = sbr.rel (0) target = $region65
    $region64: #{decoder_forward.2} parent=1 // pred_region
      %s207 = ssub.s32 16, 16
      %208 = vsyncadd [#allocation27], %s207
      %s210 = sshll.u32 [#allocation26], 4
      %s211 = int_to_ptr.vmem [resolvable:$true] %s210
      %213 = dma.hbm_to_vmem [thread:$0]  %s15, 16, %s211, [#allocation27]
    $region65: #{decoder_forward.2} parent=1 // pred_fallthru
      _
    // Predicated region
    $region66: #{decoder_forward.2} parent=1 // pred_check
      _
    $region67: #{decoder_forward.2} parent=1 // pred_check_branch
      %215 = sbr.rel (0) target = $region69
    $region68: #{decoder_forward.2} parent=1 // pred_region
      %s217 = ssub.s32 256, 256
      %218 = vsyncadd [#allocation27], %s217
      %s219 = sshll.u32 [#allocation28], 4
      %s220 = int_to_ptr.vmem [resolvable:$true] %s219
      %225 = dma.hbm_to_vmem [thread:$0]  %s16, 256, %s220, [#allocation27], 64, 64, 4
    $region69: #{decoder_forward.2} parent=1 // pred_fallthru
      _
    // Predicated region
    $region70: #{decoder_forward.2} parent=1 // pred_check
      _
    $region71: #{decoder_forward.2} parent=1 // pred_check_branch
      %227 = sbr.rel (0) target = $region73
    $region72: #{decoder_forward.2} parent=1 // pred_region
      %s229 = ssub.s32 16, 16
      %230 = vsyncadd [#allocation30], %s229
      %s232 = sshll.u32 [#allocation29], 4
      %s233 = int_to_ptr.vmem [resolvable:$true] %s232
      %235 = dma.hbm_to_vmem [thread:$0]  %s17, 16, %s233, [#allocation30]
    $region73: #{decoder_forward.2} parent=1 // pred_fallthru
      _
    // Predicated region
    $region74: #{decoder_forward.2} parent=1 // pred_check
      _
    $region75: #{decoder_forward.2} parent=1 // pred_check_branch
      %237 = sbr.rel (0) target = $region77
    $region76: #{decoder_forward.2} parent=1 // pred_region
      %s239 = ssub.s32 512, 512
      %240 = vsyncadd [#allocation30], %s239
      %s241 = sshll.u32 [#allocation31], 4
      %s242 = int_to_ptr.vmem [resolvable:$true] %s241
      %247 = dma.hbm_to_vmem [thread:$0]  %s18, 512, %s242, [#allocation30], 64, 64, 4
    $region77: #{decoder_forward.2} parent=1 // pred_fallthru
      _
    // Predicated region
    $region78: #{decoder_forward.2} parent=1 // pred_check
      _
    $region79: #{decoder_forward.2} parent=1 // pred_check_branch
      %249 = sbr.rel (0) target = $region81
    $region80: #{decoder_forward.2} parent=1 // pred_region
      %s251 = ssub.s32 16, 16
      %252 = vsyncadd [#allocation33], %s251
      %s254 = sshll.u32 [#allocation32], 4
      %s255 = int_to_ptr.vmem [resolvable:$true] %s254
      %257 = dma.hbm_to_vmem [thread:$0]  %s19, 16, %s255, [#allocation33]
    $region81: #{decoder_forward.2} parent=1 // pred_fallthru
      _
    // Predicated region
    $region82: #{decoder_forward.2} parent=1 // pred_check
      _
    $region83: #{decoder_forward.2} parent=1 // pred_check_branch
      %259 = sbr.rel (0) target = $region85
    $region84: #{decoder_forward.2} parent=1 // pred_region
      %s261 = ssub.s32 16, 16
      %262 = vsyncadd [#allocation33], %s261
      %s264 = sshll.u32 [#allocation34], 4
      %s265 = int_to_ptr.vmem [resolvable:$true] %s264
      %267 = dma.hbm_to_vmem [thread:$0]  %s20, 16, %s265, [#allocation33]
    $region85: #{decoder_forward.2} parent=1 // pred_fallthru
      _
    // Predicated region
    $region86: #{decoder_forward.2} parent=1 // pred_check
      _
    $region87: #{decoder_forward.2} parent=1 // pred_check_branch
      %269 = sbr.rel (0) target = $region89
    $region88: #{decoder_forward.2} parent=1 // pred_region
      %s271 = ssub.s32 16, 16
      %272 = vsyncadd [#allocation36], %s271
      %s274 = sshll.u32 [#allocation35], 4
      %s275 = int_to_ptr.vmem [resolvable:$true] %s274
      %277 = dma.hbm_to_vmem [thread:$0]  %s21, 16, %s275, [#allocation36]
    $region89: #{decoder_forward.2} parent=1 // pred_fallthru
      _
    // Predicated region
    $region90: #{decoder_forward.2} parent=1 // pred_check
      _
    $region91: #{decoder_forward.2} parent=1 // pred_check_branch
      %279 = sbr.rel (0) target = $region93
    $region92: #{decoder_forward.2} parent=1 // pred_region
      %280 = dma.done [#allocation3], 256
    $region93: #{decoder_forward.2} parent=1 // pred_fallthru
      _
    // Predicated region
    $region94: #{decoder_forward.2} parent=1 // pred_check
      _
    $region95: #{decoder_forward.2} parent=1 // pred_check_branch
      %282 = sbr.rel (0) target = $region97
    $region96: #{decoder_forward.2} parent=1 // pred_region
      %283 = dma.done [#allocation6], 256
    $region97: #{decoder_forward.2} parent=1 // pred_fallthru
      _
    // Predicated region
    $region98: #{decoder_forward.2} parent=1 // pred_check
      _
    $region99: #{decoder_forward.2} parent=1 // pred_check_branch
      %285 = sbr.rel (0) target = $region101
    $region100: #{decoder_forward.2} parent=1 // pred_region
      %286 = dma.done [#allocation6], 256
    $region101: #{decoder_forward.2} parent=1 // pred_fallthru
      _
    // Predicated region
    $region102: #{decoder_forward.2} parent=1 // pred_check
      _
    $region103: #{decoder_forward.2} parent=1 // pred_check_branch
      %288 = sbr.rel (0) target = $region105
    $region104: #{decoder_forward.2} parent=1 // pred_region
      %289 = dma.done [#allocation9], 16
    $region105: #{decoder_forward.2} parent=1 // pred_fallthru
      _
    // Predicated region
    $region106: #{decoder_forward.2} parent=1 // pred_check
      _
    $region107: #{decoder_forward.2} parent=1 // pred_check_branch
      %291 = sbr.rel (0) target = $region109
    $region108: #{decoder_forward.2} parent=1 // pred_region
      %292 = dma.done [#allocation9], 256
    $region109: #{decoder_forward.2} parent=1 // pred_fallthru
      _
    // Predicated region
    $region110: #{decoder_forward.2} parent=1 // pred_check
      _
    $region111: #{decoder_forward.2} parent=1 // pred_check_branch
      %294 = sbr.rel (0) target = $region113
    $region112: #{decoder_forward.2} parent=1 // pred_region
      %295 = dma.done [#allocation12], 16
    $region113: #{decoder_forward.2} parent=1 // pred_fallthru
      _
    // Predicated region
    $region114: #{decoder_forward.2} parent=1 // pred_check
      _
    $region115: #{decoder_forward.2} parent=1 // pred_check_branch
      %297 = sbr.rel (0) target = $region117
    $region116: #{decoder_forward.2} parent=1 // pred_region
      %298 = dma.done [#allocation12], 16
    $region117: #{decoder_forward.2} parent=1 // pred_fallthru
      _
    // Predicated region
    $region118: #{decoder_forward.2} parent=1 // pred_check
      _
    $region119: #{decoder_forward.2} parent=1 // pred_check_branch
      %300 = sbr.rel (0) target = $region121
    $region120: #{decoder_forward.2} parent=1 // pred_region
      %301 = dma.done [#allocation15], 16
    $region121: #{decoder_forward.2} parent=1 // pred_fallthru
      _
    // Predicated region
    $region122: #{decoder_forward.2} parent=1 // pred_check
      _
    $region123: #{decoder_forward.2} parent=1 // pred_check_branch
      %303 = sbr.rel (0) target = $region125
    $region124: #{decoder_forward.2} parent=1 // pred_region
      %304 = dma.done [#allocation15], 256
    $region125: #{decoder_forward.2} parent=1 // pred_fallthru
      _
    // Predicated region
    $region126: #{decoder_forward.2} parent=1 // pred_check
      _
    $region127: #{decoder_forward.2} parent=1 // pred_check_branch
      %306 = sbr.rel (0) target = $region129
    $region128: #{decoder_forward.2} parent=1 // pred_region
      %307 = dma.done [#allocation18], 16
    $region129: #{decoder_forward.2} parent=1 // pred_fallthru
      _
    // Predicated region
    $region130: #{decoder_forward.2} parent=1 // pred_check
      _
    $region131: #{decoder_forward.2} parent=1 // pred_check_branch
      %309 = sbr.rel (0) target = $region133
    $region132: #{decoder_forward.2} parent=1 // pred_region
      %310 = dma.done [#allocation18], 256
    $region133: #{decoder_forward.2} parent=1 // pred_fallthru
      _
    // Predicated region
    $region134: #{decoder_forward.2} parent=1 // pred_check
      _
    $region135: #{decoder_forward.2} parent=1 // pred_check_branch
      %312 = sbr.rel (0) target = $region137
    $region136: #{decoder_forward.2} parent=1 // pred_region
      %313 = dma.done [#allocation21], 16
    $region137: #{decoder_forward.2} parent=1 // pred_fallthru
      _
    // Predicated region
    $region138: #{decoder_forward.2} parent=1 // pred_check
      _
    $region139: #{decoder_forward.2} parent=1 // pred_check_branch
      %315 = sbr.rel (0) target = $region141
    $region140: #{decoder_forward.2} parent=1 // pred_region
      %316 = dma.done [#allocation21], 256
    $region141: #{decoder_forward.2} parent=1 // pred_fallthru
      _
    // Predicated region
    $region142: #{decoder_forward.2} parent=1 // pred_check
      _
    $region143: #{decoder_forward.2} parent=1 // pred_check_branch
      %318 = sbr.rel (0) target = $region145
    $region144: #{decoder_forward.2} parent=1 // pred_region
      %319 = dma.done [#allocation24], 16
    $region145: #{decoder_forward.2} parent=1 // pred_fallthru
      _
    // Predicated region
    $region146: #{decoder_forward.2} parent=1 // pred_check
      _
    $region147: #{decoder_forward.2} parent=1 // pred_check_branch
      %321 = sbr.rel (0) target = $region149
    $region148: #{decoder_forward.2} parent=1 // pred_region
      %322 = dma.done [#allocation24], 16
    $region149: #{decoder_forward.2} parent=1 // pred_fallthru
      _
    // Predicated region
    $region150: #{decoder_forward.2} parent=1 // pred_check
      _
    $region151: #{decoder_forward.2} parent=1 // pred_check_branch
      %324 = sbr.rel (0) target = $region153
    $region152: #{decoder_forward.2} parent=1 // pred_region
      %325 = dma.done [#allocation27], 16
    $region153: #{decoder_forward.2} parent=1 // pred_fallthru
      _
    // Predicated region
    $region154: #{decoder_forward.2} parent=1 // pred_check
      _
    $region155: #{decoder_forward.2} parent=1 // pred_check_branch
      %327 = sbr.rel (0) target = $region157
    $region156: #{decoder_forward.2} parent=1 // pred_region
      %328 = dma.done [#allocation27], 256
    $region157: #{decoder_forward.2} parent=1 // pred_fallthru
      _
    // Predicated region
    $region158: #{decoder_forward.2} parent=1 // pred_check
      _
    $region159: #{decoder_forward.2} parent=1 // pred_check_branch
      %330 = sbr.rel (0) target = $region161
    $region160: #{decoder_forward.2} parent=1 // pred_region
      %331 = dma.done [#allocation30], 16
    $region161: #{decoder_forward.2} parent=1 // pred_fallthru
      _
    // Predicated region
    $region162: #{decoder_forward.2} parent=1 // pred_check
      _
    $region163: #{decoder_forward.2} parent=1 // pred_check_branch
      %333 = sbr.rel (0) target = $region165
    $region164: #{decoder_forward.2} parent=1 // pred_region
      %334 = dma.done [#allocation30], 512
    $region165: #{decoder_forward.2} parent=1 // pred_fallthru
      _
    // Predicated region
    $region166: #{decoder_forward.2} parent=1 // pred_check
      _
    $region167: #{decoder_forward.2} parent=1 // pred_check_branch
      %336 = sbr.rel (0) target = $region169
    $region168: #{decoder_forward.2} parent=1 // pred_region
      %337 = dma.done [#allocation33], 16
    $region169: #{decoder_forward.2} parent=1 // pred_fallthru
      _
    // Predicated region
    $region170: #{decoder_forward.2} parent=1 // pred_check
      _
    $region171: #{decoder_forward.2} parent=1 // pred_check_branch
      %339 = sbr.rel (0) target = $region173
    $region172: #{decoder_forward.2} parent=1 // pred_region
      %340 = dma.done [#allocation33], 16
    $region173: #{decoder_forward.2} parent=1 // pred_fallthru
      _
    // Predicated region
    $region174: #{decoder_forward.2} parent=1 // pred_check
      _
    $region175: #{decoder_forward.2} parent=1 // pred_check_branch
      %342 = sbr.rel (0) target = $region177
    $region176: #{decoder_forward.2} parent=1 // pred_region
      %343 = dma.done [#allocation36], 16
    $region177: #{decoder_forward.2} parent=1 // pred_fallthru
      _
    %v345 = vld [vmem:[#allocation2] sm:$0xff]
    %v346 = vld [vmem:[#allocation2 + $0x8] sm:$0xff]
    %v347 = vlaneseq
    %v348 = vshrl.u32 %v347, 7
    %v349 = vlaneseq
    %v350 = vand.u32 %v349, 127
    %vm351 = vcmp.ge.s32.totalorder %v348, %v350
    %v352 = vsel %vm351, 0.0, -1e+09
    %v353 = vpack.c.bf16 %v346, %v345
    %v354 = vld [vmem:[#allocation7] sm:$0xf]
    %v355 = vld [vmem:[#allocation7 + $0x4] sm:$0xf]
    %v356 = vld [vmem:[#allocation7 + $0x8] sm:$0xf]
    %v357 = vld [vmem:[#allocation7 + $0xc] sm:$0xf]
    %v358 = vld [vmem:[#allocation8] sm:$0x1]
    %v360 = vlaneseq
    %v361 = vshrl.u32 %v360, 7
    %v362 = vsub.s32 0, %v361
    %v363 = vrot.slane %v358, %v362
    %v369 = vunpack.c.l.b16 %v354
    %v370 = vunpack.c.l.b16 %v355
    %v371 = vunpack.c.l.b16 %v356
    %v372 = vunpack.c.l.b16 %v357
    %v373 = vpack.c.b16 %v370, %v369
    %v374 = vpack.c.b16 %v372, %v371
    %vm377 = vcmask 261120
    %v379 = vsel %vm377, %v353, 0
    %381 = vmatprep.subr.bf16.mxu0 0
    %382 = vmatpush1.bf16.msra.mxu0 %v373
    %383 = vmatprep.subr.bf16.mxu0 0
    %384 = vmatpush1.bf16.msra.mxu0 %v374
    %385 = vmatprep.subr.bf16.mxu0 0
    %386 = vmatpush1.bf16.msra.mxu0 0
    %387 = vmatprep.subr.bf16.mxu0 0
    %388 = vmatpush1.bf16.msra.mxu0 0
    %389 = vmatprep.subr.bf16.mxu0 0
    %390 = vmatpush1.bf16.msra.mxu0 0
    %391 = vmatprep.subr.bf16.mxu0 0
    %392 = vmatpush1.bf16.msra.mxu0 0
    %393 = vmatprep.subr.bf16.mxu0 0
    %394 = vmatpush1.bf16.msra.mxu0 0
    %395 = vmatprep.subr.bf16.mxu0 0
    %396 = vmatpush1.bf16.msra.mxu0 0
    %397 = vmatprep.subr.bf16.mxu0 0
    %398 = vmatpush1.bf16.msra.mxu0 0
    %399 = vmatprep.subr.bf16.mxu0 0
    %400 = vmatpush1.bf16.msra.mxu0 0
    %401 = vmatprep.subr.bf16.mxu0 0
    %402 = vmatpush1.bf16.msra.mxu0 0
    %403 = vmatprep.subr.bf16.mxu0 0
    %404 = vmatpush1.bf16.msra.mxu0 0
    %405 = vmatprep.subr.bf16.mxu0 0
    %406 = vmatpush1.bf16.msra.mxu0 0
    %407 = vmatprep.subr.bf16.mxu0 0
    %408 = vmatpush1.bf16.msra.mxu0 0
    %409 = vmatprep.subr.bf16.mxu0 0
    %410 = vmatpush1.bf16.msra.mxu0 0
    %411 = vmatprep.subr.bf16.mxu0 0
    %412 = vmatpush1.bf16.msra.mxu0 0
    %413 = vmatprep.mubr.bf16.mxu0 0
    %414 = vmatmul.mubr.bf16.gmra.mrb[0].mxu0 %v379
    %v415 = vpop.f32.mrb[0].mxu0
    %v416 = vadd.f32 %v363, %v415
    %v417 = vpop.f32.mrb[0].mxu0
    %v418 = vpop.f32.mrb[0].mxu0
    %v419 = vadd.f32 %v363, %v418
    %v420 = vpop.f32.mrb[0].mxu0
    %421 = vdwg.mxu0
    %v422 = vpack.c.bf16 %v416, %v416
    %424 = vrot.lane.b32.xlu0 %v422, 96
    %v425 = vpop.permute.xlu0 %424
    %vm426 = vcmask 64512
    %v428 = vsel %vm426, %v422, 0
    %v431 = vsel %vm426, %v425, 0
    %433 = vmatprep.subr.bf16.mxu0 0
    %434 = vmatpush1.bf16.xpose.msra.mxu0 %v431
    %435 = vmatprep.subr.bf16.mxu0 0
    %436 = vmatpush1.bf16.xpose.msra.mxu0 0
    %437 = vmatprep.subr.bf16.mxu0 0
    %438 = vmatpush1.bf16.xpose.msra.mxu0 0
    %439 = vmatprep.subr.bf16.mxu0 0
    %440 = vmatpush1.bf16.xpose.msra.mxu0 0
    %441 = vmatprep.subr.bf16.mxu0 0
    %442 = vmatpush1.bf16.xpose.msra.mxu0 0
    %443 = vmatprep.subr.bf16.mxu0 0
    %444 = vmatpush1.bf16.xpose.msra.mxu0 0
    %445 = vmatprep.subr.bf16.mxu0 0
    %446 = vmatpush1.bf16.xpose.msra.mxu0 0
    %447 = vmatprep.subr.bf16.mxu0 0
    %448 = vmatpush1.bf16.xpose.msra.mxu0 0
    %449 = vmatprep.subr.bf16.mxu0 0
    %450 = vmatpush1.bf16.xpose.msra.mxu0 0
    %451 = vmatprep.subr.bf16.mxu0 0
    %452 = vmatpush1.bf16.xpose.msra.mxu0 0
    %453 = vmatprep.subr.bf16.mxu0 0
    %454 = vmatpush1.bf16.xpose.msra.mxu0 0
    %455 = vmatprep.subr.bf16.mxu0 0
    %456 = vmatpush1.bf16.xpose.msra.mxu0 0
    %457 = vmatprep.subr.bf16.mxu0 0
    %458 = vmatpush1.bf16.xpose.msra.mxu0 0
    %459 = vmatprep.subr.bf16.mxu0 0
    %460 = vmatpush1.bf16.xpose.msra.mxu0 0
    %461 = vmatprep.subr.bf16.mxu0 0
    %462 = vmatpush1.bf16.xpose.msra.mxu0 0
    %463 = vmatprep.subr.bf16.mxu0 0
    %464 = vmatpush1.bf16.xpose.msra.mxu0 0
    %465 = vmatprep.mubr.bf16.mxu0 0
    %466 = vmatmul.mubr.bf16.gmra.mrb[0].mxu0 %v428
    %v467 = vpop.f32.mrb[0].mxu0
    %v468 = vadd.f32 %v352, %v467
    %v469 = vpop.f32.mrb[0].mxu0
    %v470 = vpop.f32.mrb[0].mxu0
    %v471 = vpop.f32.mrb[0].mxu0
    %472 = vdwg.mxu0
    %v473 = vsel %vm426, %v468, -inf
    %474 = vmax.xlane.f32.xlu0 %v473
    %v475 = vpop.xlane.xlu0 %474
    %v476 = vsub.f32 %v468, %v475
    %v477 = vmul.f32 %v476, 1.442695
    %v478 = vpow.pop %v477
    %v479 = vsel %vm426, %v478, 0.0
    %480 = vadd.xlane.f32.xlu0 %v479
    %v481 = vpop.xlane.xlu0 %480
    %v482 = vrcp.pop %v481
    %v483 = vmul.f32 %v478, %v482
    %v484 = vpack.c.bf16 %v483, %v483
    %485 = vrot.lane.b32.xlu0 %v422, 64
    %v486 = vpop.permute.xlu0 %485
    %v488 = vsel %vm426, %v484, 0
    %vm490 = vcmask 1043456
    %v492 = vsel %vm490, %v486, 0
    %494 = vmatprep.subr.bf16.mxu0 0
    %495 = vmatpush1.bf16.msra.mxu0 %v492
    %496 = vmatprep.subr.bf16.mxu0 0
    %497 = vmatpush1.bf16.msra.mxu0 0
    %498 = vmatprep.subr.bf16.mxu0 0
    %499 = vmatpush1.bf16.msra.mxu0 0
    %500 = vmatprep.subr.bf16.mxu0 0
    %501 = vmatpush1.bf16.msra.mxu0 0
    %502 = vmatprep.subr.bf16.mxu0 0
    %503 = vmatpush1.bf16.msra.mxu0 0
    %504 = vmatprep.subr.bf16.mxu0 0
    %505 = vmatpush1.bf16.msra.mxu0 0
    %506 = vmatprep.subr.bf16.mxu0 0
    %507 = vmatpush1.bf16.msra.mxu0 0
    %508 = vmatprep.subr.bf16.mxu0 0
    %509 = vmatpush1.bf16.msra.mxu0 0
    %510 = vmatprep.subr.bf16.mxu0 0
    %511 = vmatpush1.bf16.msra.mxu0 0
    %512 = vmatprep.subr.bf16.mxu0 0
    %513 = vmatpush1.bf16.msra.mxu0 0
    %514 = vmatprep.subr.bf16.mxu0 0
    %515 = vmatpush1.bf16.msra.mxu0 0
    %516 = vmatprep.subr.bf16.mxu0 0
    %517 = vmatpush1.bf16.msra.mxu0 0
    %518 = vmatprep.subr.bf16.mxu0 0
    %519 = vmatpush1.bf16.msra.mxu0 0
    %520 = vmatprep.subr.bf16.mxu0 0
    %521 = vmatpush1.bf16.msra.mxu0 0
    %522 = vmatprep.subr.bf16.mxu0 0
    %523 = vmatpush1.bf16.msra.mxu0 0
    %524 = vmatprep.subr.bf16.mxu0 0
    %525 = vmatpush1.bf16.msra.mxu0 0
    %526 = vmatprep.mubr.bf16.mxu0 0
    %527 = vmatmul.mubr.bf16.gmra.mrb[0].mxu0 %v488
    %v528 = vpop.f32.mrb[0].mxu0
    %v529 = vadd.f32 0.0, %v528
    %v530 = vpop.f32.mrb[0].mxu0
    %v531 = vpop.f32.mrb[0].mxu0
    %v532 = vpop.f32.mrb[0].mxu0
    %533 = vdwg.mxu0
    %534 = vrot.lane.b32.xlu0 %v422, 120
    %v535 = vpop.permute.xlu0 %534
    %536 = vrot.lane.b32.xlu0 %v422, 88
    %v537 = vpop.permute.xlu0 %536
    %v539 = vsel %vm426, %v535, 0
    %v542 = vsel %vm426, %v537, 0
    %544 = vmatprep.subr.bf16.mxu0 0
    %545 = vmatpush1.bf16.xpose.msra.mxu0 %v542
    %546 = vmatprep.subr.bf16.mxu0 0
    %547 = vmatpush1.bf16.xpose.msra.mxu0 0
    %548 = vmatprep.subr.bf16.mxu0 0
    %549 = vmatpush1.bf16.xpose.msra.mxu0 0
    %550 = vmatprep.subr.bf16.mxu0 0
    %551 = vmatpush1.bf16.xpose.msra.mxu0 0
    %552 = vmatprep.subr.bf16.mxu0 0
    %553 = vmatpush1.bf16.xpose.msra.mxu0 0
    %554 = vmatprep.subr.bf16.mxu0 0
    %555 = vmatpush1.bf16.xpose.msra.mxu0 0
    %556 = vmatprep.subr.bf16.mxu0 0
    %557 = vmatpush1.bf16.xpose.msra.mxu0 0
    %558 = vmatprep.subr.bf16.mxu0 0
    %559 = vmatpush1.bf16.xpose.msra.mxu0 0
    %560 = vmatprep.subr.bf16.mxu0 0
    %561 = vmatpush1.bf16.xpose.msra.mxu0 0
    %562 = vmatprep.subr.bf16.mxu0 0
    %563 = vmatpush1.bf16.xpose.msra.mxu0 0
    %564 = vmatprep.subr.bf16.mxu0 0
    %565 = vmatpush1.bf16.xpose.msra.mxu0 0
    %566 = vmatprep.subr.bf16.mxu0 0
    %567 = vmatpush1.bf16.xpose.msra.mxu0 0
    %568 = vmatprep.subr.bf16.mxu0 0
    %569 = vmatpush1.bf16.xpose.msra.mxu0 0
    %570 = vmatprep.subr.bf16.mxu0 0
    %571 = vmatpush1.bf16.xpose.msra.mxu0 0
    %572 = vmatprep.subr.bf16.mxu0 0
    %573 = vmatpush1.bf16.xpose.msra.mxu0 0
    %574 = vmatprep.subr.bf16.mxu0 0
    %575 = vmatpush1.bf16.xpose.msra.mxu0 0
    %576 = vmatprep.mubr.bf16.mxu0 0
    %577 = vmatmul.mubr.bf16.gmra.mrb[0].mxu0 %v539
    %v578 = vpop.f32.mrb[0].mxu0
    %v579 = vadd.f32 %v352, %v578
    %v580 = vpop.f32.mrb[0].mxu0
    %v581 = vpop.f32.mrb[0].mxu0
    %v582 = vpop.f32.mrb[0].mxu0
    %583 = vdwg.mxu0
    %v584 = vsel %vm426, %v579, -inf
    %585 = vmax.xlane.f32.xlu0 %v584
    %v586 = vpop.xlane.xlu0 %585
    %v587 = vsub.f32 %v579, %v586
    %v588 = vmul.f32 %v587, 1.442695
    %v589 = vpow.pop %v588
    %v590 = vsel %vm426, %v589, 0.0
    %591 = vadd.xlane.f32.xlu0 %v590
    %v592 = vpop.xlane.xlu0 %591
    %v593 = vrcp.pop %v592
    %v594 = vmul.f32 %v589, %v593
    %v595 = vpack.c.bf16 %v594, %v594
    %596 = vrot.lane.b32.xlu0 %v422, 56
    %v597 = vpop.permute.xlu0 %596
    %v599 = vsel %vm426, %v595, 0
    %v602 = vsel %vm490, %v597, 0
    %604 = vmatprep.subr.bf16.mxu0 0
    %605 = vmatpush1.bf16.msra.mxu0 %v602
    %606 = vmatprep.subr.bf16.mxu0 0
    %607 = vmatpush1.bf16.msra.mxu0 0
    %608 = vmatprep.subr.bf16.mxu0 0
    %609 = vmatpush1.bf16.msra.mxu0 0
    %610 = vmatprep.subr.bf16.mxu0 0
    %611 = vmatpush1.bf16.msra.mxu0 0
    %612 = vmatprep.subr.bf16.mxu0 0
    %613 = vmatpush1.bf16.msra.mxu0 0
    %614 = vmatprep.subr.bf16.mxu0 0
    %615 = vmatpush1.bf16.msra.mxu0 0
    %616 = vmatprep.subr.bf16.mxu0 0
    %617 = vmatpush1.bf16.msra.mxu0 0
    %618 = vmatprep.subr.bf16.mxu0 0
    %619 = vmatpush1.bf16.msra.mxu0 0
    %620 = vmatprep.subr.bf16.mxu0 0
    %621 = vmatpush1.bf16.msra.mxu0 0
    %622 = vmatprep.subr.bf16.mxu0 0
    %623 = vmatpush1.bf16.msra.mxu0 0
    %624 = vmatprep.subr.bf16.mxu0 0
    %625 = vmatpush1.bf16.msra.mxu0 0
    %626 = vmatprep.subr.bf16.mxu0 0
    %627 = vmatpush1.bf16.msra.mxu0 0
    %628 = vmatprep.subr.bf16.mxu0 0
    %629 = vmatpush1.bf16.msra.mxu0 0
    %630 = vmatprep.subr.bf16.mxu0 0
    %631 = vmatpush1.bf16.msra.mxu0 0
    %632 = vmatprep.subr.bf16.mxu0 0
    %633 = vmatpush1.bf16.msra.mxu0 0
    %634 = vmatprep.subr.bf16.mxu0 0
    %635 = vmatpush1.bf16.msra.mxu0 0
    %636 = vmatprep.mubr.bf16.mxu0 0
    %637 = vmatmul.mubr.bf16.gmra.mrb[0].mxu0 %v599
    %v638 = vpop.f32.mrb[0].mxu0
    %v639 = vadd.f32 0.0, %v638
    %v640 = vpop.f32.mrb[0].mxu0
    %v641 = vpop.f32.mrb[0].mxu0
    %v642 = vpop.f32.mrb[0].mxu0
    %643 = vdwg.mxu0
    %644 = vrot.lane.b32.xlu0 %v422, 112
    %v645 = vpop.permute.xlu0 %644
    %646 = vrot.lane.b32.xlu0 %v422, 80
    %v647 = vpop.permute.xlu0 %646
    %v649 = vsel %vm426, %v645, 0
    %v652 = vsel %vm426, %v647, 0
    %654 = vmatprep.subr.bf16.mxu0 0
    %655 = vmatpush1.bf16.xpose.msra.mxu0 %v652
    %656 = vmatprep.subr.bf16.mxu0 0
    %657 = vmatpush1.bf16.xpose.msra.mxu0 0
    %658 = vmatprep.subr.bf16.mxu0 0
    %659 = vmatpush1.bf16.xpose.msra.mxu0 0
    %660 = vmatprep.subr.bf16.mxu0 0
    %661 = vmatpush1.bf16.xpose.msra.mxu0 0
    %662 = vmatprep.subr.bf16.mxu0 0
    %663 = vmatpush1.bf16.xpose.msra.mxu0 0
    %664 = vmatprep.subr.bf16.mxu0 0
    %665 = vmatpush1.bf16.xpose.msra.mxu0 0
    %666 = vmatprep.subr.bf16.mxu0 0
    %667 = vmatpush1.bf16.xpose.msra.mxu0 0
    %668 = vmatprep.subr.bf16.mxu0 0
    %669 = vmatpush1.bf16.xpose.msra.mxu0 0
    %670 = vmatprep.subr.bf16.mxu0 0
    %671 = vmatpush1.bf16.xpose.msra.mxu0 0
    %672 = vmatprep.subr.bf16.mxu0 0
    %673 = vmatpush1.bf16.xpose.msra.mxu0 0
    %674 = vmatprep.subr.bf16.mxu0 0
    %675 = vmatpush1.bf16.xpose.msra.mxu0 0
    %676 = vmatprep.subr.bf16.mxu0 0
    %677 = vmatpush1.bf16.xpose.msra.mxu0 0
    %678 = vmatprep.subr.bf16.mxu0 0
    %679 = vmatpush1.bf16.xpose.msra.mxu0 0
    %680 = vmatprep.subr.bf16.mxu0 0
    %681 = vmatpush1.bf16.xpose.msra.mxu0 0
    %682 = vmatprep.subr.bf16.mxu0 0
    %683 = vmatpush1.bf16.xpose.msra.mxu0 0
    %684 = vmatprep.subr.bf16.mxu0 0
    %685 = vmatpush1.bf16.xpose.msra.mxu0 0
    %686 = vmatprep.mubr.bf16.mxu0 0
    %687 = vmatmul.mubr.bf16.gmra.mrb[0].mxu0 %v649
    %v688 = vpop.f32.mrb[0].mxu0
    %v689 = vadd.f32 %v352, %v688
    %v690 = vpop.f32.mrb[0].mxu0
    %v691 = vpop.f32.mrb[0].mxu0
    %v692 = vpop.f32.mrb[0].mxu0
    %693 = vdwg.mxu0
    %v694 = vsel %vm426, %v689, -inf
    %695 = vmax.xlane.f32.xlu0 %v694
    %v696 = vpop.xlane.xlu0 %695
    %v697 = vsub.f32 %v689, %v696
    %v698 = vmul.f32 %v697, 1.442695
    %v699 = vpow.pop %v698
    %v700 = vsel %vm426, %v699, 0.0
    %701 = vadd.xlane.f32.xlu0 %v700
    %v702 = vpop.xlane.xlu0 %701
    %v703 = vrcp.pop %v702
    %v704 = vmul.f32 %v699, %v703
    %v705 = vpack.c.bf16 %v704, %v704
    %706 = vrot.lane.b32.xlu0 %v422, 48
    %v707 = vpop.permute.xlu0 %706
    %v709 = vsel %vm426, %v705, 0
    %v712 = vsel %vm490, %v707, 0
    %714 = vmatprep.subr.bf16.mxu0 0
    %715 = vmatpush1.bf16.msra.mxu0 %v712
    %716 = vmatprep.subr.bf16.mxu0 0
    %717 = vmatpush1.bf16.msra.mxu0 0
    %718 = vmatprep.subr.bf16.mxu0 0
    %719 = vmatpush1.bf16.msra.mxu0 0
    %720 = vmatprep.subr.bf16.mxu0 0
    %721 = vmatpush1.bf16.msra.mxu0 0
    %722 = vmatprep.subr.bf16.mxu0 0
    %723 = vmatpush1.bf16.msra.mxu0 0
    %724 = vmatprep.subr.bf16.mxu0 0
    %725 = vmatpush1.bf16.msra.mxu0 0
    %726 = vmatprep.subr.bf16.mxu0 0
    %727 = vmatpush1.bf16.msra.mxu0 0
    %728 = vmatprep.subr.bf16.mxu0 0
    %729 = vmatpush1.bf16.msra.mxu0 0
    %730 = vmatprep.subr.bf16.mxu0 0
    %731 = vmatpush1.bf16.msra.mxu0 0
    %732 = vmatprep.subr.bf16.mxu0 0
    %733 = vmatpush1.bf16.msra.mxu0 0
    %734 = vmatprep.subr.bf16.mxu0 0
    %735 = vmatpush1.bf16.msra.mxu0 0
    %736 = vmatprep.subr.bf16.mxu0 0
    %737 = vmatpush1.bf16.msra.mxu0 0
    %738 = vmatprep.subr.bf16.mxu0 0
    %739 = vmatpush1.bf16.msra.mxu0 0
    %740 = vmatprep.subr.bf16.mxu0 0
    %741 = vmatpush1.bf16.msra.mxu0 0
    %742 = vmatprep.subr.bf16.mxu0 0
    %743 = vmatpush1.bf16.msra.mxu0 0
    %744 = vmatprep.subr.bf16.mxu0 0
    %745 = vmatpush1.bf16.msra.mxu0 0
    %746 = vmatprep.mubr.bf16.mxu0 0
    %747 = vmatmul.mubr.bf16.gmra.mrb[0].mxu0 %v709
    %v748 = vpop.f32.mrb[0].mxu0
    %v749 = vadd.f32 0.0, %v748
    %v750 = vpop.f32.mrb[0].mxu0
    %v751 = vpop.f32.mrb[0].mxu0
    %v752 = vpop.f32.mrb[0].mxu0
    %753 = vdwg.mxu0
    %754 = vrot.lane.b32.xlu0 %v422, 104
    %v755 = vpop.permute.xlu0 %754
    %756 = vrot.lane.b32.xlu0 %v422, 72
    %v757 = vpop.permute.xlu0 %756
    %v759 = vsel %vm426, %v755, 0
    %v762 = vsel %vm426, %v757, 0
    %764 = vmatprep.subr.bf16.mxu0 0
    %765 = vmatpush1.bf16.xpose.msra.mxu0 %v762
    %766 = vmatprep.subr.bf16.mxu0 0
    %767 = vmatpush1.bf16.xpose.msra.mxu0 0
    %768 = vmatprep.subr.bf16.mxu0 0
    %769 = vmatpush1.bf16.xpose.msra.mxu0 0
    %770 = vmatprep.subr.bf16.mxu0 0
    %771 = vmatpush1.bf16.xpose.msra.mxu0 0
    %772 = vmatprep.subr.bf16.mxu0 0
    %773 = vmatpush1.bf16.xpose.msra.mxu0 0
    %774 = vmatprep.subr.bf16.mxu0 0
    %775 = vmatpush1.bf16.xpose.msra.mxu0 0
    %776 = vmatprep.subr.bf16.mxu0 0
    %777 = vmatpush1.bf16.xpose.msra.mxu0 0
    %778 = vmatprep.subr.bf16.mxu0 0
    %779 = vmatpush1.bf16.xpose.msra.mxu0 0
    %780 = vmatprep.subr.bf16.mxu0 0
    %781 = vmatpush1.bf16.xpose.msra.mxu0 0
    %782 = vmatprep.subr.bf16.mxu0 0
    %783 = vmatpush1.bf16.xpose.msra.mxu0 0
    %784 = vmatprep.subr.bf16.mxu0 0
    %785 = vmatpush1.bf16.xpose.msra.mxu0 0
    %786 = vmatprep.subr.bf16.mxu0 0
    %787 = vmatpush1.bf16.xpose.msra.mxu0 0
    %788 = vmatprep.subr.bf16.mxu0 0
    %789 = vmatpush1.bf16.xpose.msra.mxu0 0
    %790 = vmatprep.subr.bf16.mxu0 0
    %791 = vmatpush1.bf16.xpose.msra.mxu0 0
    %792 = vmatprep.subr.bf16.mxu0 0
    %793 = vmatpush1.bf16.xpose.msra.mxu0 0
    %794 = vmatprep.subr.bf16.mxu0 0
    %795 = vmatpush1.bf16.xpose.msra.mxu0 0
    %796 = vmatprep.mubr.bf16.mxu0 0
    %797 = vmatmul.mubr.bf16.gmra.mrb[0].mxu0 %v759
    %v798 = vpop.f32.mrb[0].mxu0
    %v799 = vadd.f32 %v352, %v798
    %v800 = vpop.f32.mrb[0].mxu0
    %v801 = vpop.f32.mrb[0].mxu0
    %v802 = vpop.f32.mrb[0].mxu0
    %803 = vdwg.mxu0
    %v804 = vsel %vm426, %v799, -inf
    %805 = vmax.xlane.f32.xlu0 %v804
    %v806 = vpop.xlane.xlu0 %805
    %v807 = vsub.f32 %v799, %v806
    %v808 = vmul.f32 %v807, 1.442695
    %v809 = vpow.pop %v808
    %v810 = vsel %vm426, %v809, 0.0
    %811 = vadd.xlane.f32.xlu0 %v810
    %v812 = vpop.xlane.xlu0 %811
    %v813 = vrcp.pop %v812
    %v814 = vmul.f32 %v809, %v813
    %v815 = vpack.c.bf16 %v814, %v814
    %816 = vrot.lane.b32.xlu0 %v422, 40
    %v817 = vpop.permute.xlu0 %816
    %v819 = vsel %vm426, %v815, 0
    %v822 = vsel %vm490, %v817, 0
    %824 = vmatprep.subr.bf16.mxu0 0
    %825 = vmatpush1.bf16.msra.mxu0 %v822
    %826 = vmatprep.subr.bf16.mxu0 0
    %827 = vmatpush1.bf16.msra.mxu0 0
    %828 = vmatprep.subr.bf16.mxu0 0
    %829 = vmatpush1.bf16.msra.mxu0 0
    %830 = vmatprep.subr.bf16.mxu0 0
    %831 = vmatpush1.bf16.msra.mxu0 0
    %832 = vmatprep.subr.bf16.mxu0 0
    %833 = vmatpush1.bf16.msra.mxu0 0
    %834 = vmatprep.subr.bf16.mxu0 0
    %835 = vmatpush1.bf16.msra.mxu0 0
    %836 = vmatprep.subr.bf16.mxu0 0
    %837 = vmatpush1.bf16.msra.mxu0 0
    %838 = vmatprep.subr.bf16.mxu0 0
    %839 = vmatpush1.bf16.msra.mxu0 0
    %840 = vmatprep.subr.bf16.mxu0 0
    %841 = vmatpush1.bf16.msra.mxu0 0
    %842 = vmatprep.subr.bf16.mxu0 0
    %843 = vmatpush1.bf16.msra.mxu0 0
    %844 = vmatprep.subr.bf16.mxu0 0
    %845 = vmatpush1.bf16.msra.mxu0 0
    %846 = vmatprep.subr.bf16.mxu0 0
    %847 = vmatpush1.bf16.msra.mxu0 0
    %848 = vmatprep.subr.bf16.mxu0 0
    %849 = vmatpush1.bf16.msra.mxu0 0
    %850 = vmatprep.subr.bf16.mxu0 0
    %851 = vmatpush1.bf16.msra.mxu0 0
    %852 = vmatprep.subr.bf16.mxu0 0
    %853 = vmatpush1.bf16.msra.mxu0 0
    %854 = vmatprep.subr.bf16.mxu0 0
    %855 = vmatpush1.bf16.msra.mxu0 0
    %856 = vmatprep.mubr.bf16.mxu0 0
    %857 = vmatmul.mubr.bf16.gmra.mrb[0].mxu0 %v819
    %v858 = vpop.f32.mrb[0].mxu0
    %v859 = vadd.f32 0.0, %v858
    %v860 = vpop.f32.mrb[0].mxu0
    %v861 = vpop.f32.mrb[0].mxu0
    %v862 = vpop.f32.mrb[0].mxu0
    %863 = vdwg.mxu0
    %865 = vrot.lane.b32.xlu0 %v639, 8
    %v866 = vpop.permute.xlu0 %865
    %869 = vrot.lane.b32.xlu0 %v749, 16
    %v870 = vpop.permute.xlu0 %869
    %873 = vrot.lane.b32.xlu0 %v859, 24
    %v874 = vpop.permute.xlu0 %873
    %v876 = vsel %vm426, %v529, %v866
    %vm877 = vcmask 130048
    %v878 = vsel %vm877, %v876, %v870
    %vm879 = vcmask 195584
    %v880 = vsel %vm879, %v878, %v874
    %v881 = vpack.c.bf16 %v419, %v419
    %883 = vrot.lane.b32.xlu0 %v881, 96
    %v884 = vpop.permute.xlu0 %883
    %v886 = vsel %vm426, %v881, 0
    %v889 = vsel %vm426, %v884, 0
    %891 = vmatprep.subr.bf16.mxu0 0
    %892 = vmatpush1.bf16.xpose.msra.mxu0 %v889
    %893 = vmatprep.subr.bf16.mxu0 0
    %894 = vmatpush1.bf16.xpose.msra.mxu0 0
    %895 = vmatprep.subr.bf16.mxu0 0
    %896 = vmatpush1.bf16.xpose.msra.mxu0 0
    %897 = vmatprep.subr.bf16.mxu0 0
    %898 = vmatpush1.bf16.xpose.msra.mxu0 0
    %899 = vmatprep.subr.bf16.mxu0 0
    %900 = vmatpush1.bf16.xpose.msra.mxu0 0
    %901 = vmatprep.subr.bf16.mxu0 0
    %902 = vmatpush1.bf16.xpose.msra.mxu0 0
    %903 = vmatprep.subr.bf16.mxu0 0
    %904 = vmatpush1.bf16.xpose.msra.mxu0 0
    %905 = vmatprep.subr.bf16.mxu0 0
    %906 = vmatpush1.bf16.xpose.msra.mxu0 0
    %907 = vmatprep.subr.bf16.mxu0 0
    %908 = vmatpush1.bf16.xpose.msra.mxu0 0
    %909 = vmatprep.subr.bf16.mxu0 0
    %910 = vmatpush1.bf16.xpose.msra.mxu0 0
    %911 = vmatprep.subr.bf16.mxu0 0
    %912 = vmatpush1.bf16.xpose.msra.mxu0 0
    %913 = vmatprep.subr.bf16.mxu0 0
    %914 = vmatpush1.bf16.xpose.msra.mxu0 0
    %915 = vmatprep.subr.bf16.mxu0 0
    %916 = vmatpush1.bf16.xpose.msra.mxu0 0
    %917 = vmatprep.subr.bf16.mxu0 0
    %918 = vmatpush1.bf16.xpose.msra.mxu0 0
    %919 = vmatprep.subr.bf16.mxu0 0
    %920 = vmatpush1.bf16.xpose.msra.mxu0 0
    %921 = vmatprep.subr.bf16.mxu0 0
    %922 = vmatpush1.bf16.xpose.msra.mxu0 0
    %923 = vmatprep.mubr.bf16.mxu0 0
    %924 = vmatmul.mubr.bf16.gmra.mrb[0].mxu0 %v886
    %v925 = vpop.f32.mrb[0].mxu0
    %v926 = vadd.f32 %v352, %v925
    %v927 = vpop.f32.mrb[0].mxu0
    %v928 = vpop.f32.mrb[0].mxu0
    %v929 = vpop.f32.mrb[0].mxu0
    %930 = vdwg.mxu0
    %v931 = vsel %vm426, %v926, -inf
    %932 = vmax.xlane.f32.xlu0 %v931
    %v933 = vpop.xlane.xlu0 %932
    %v934 = vsub.f32 %v926, %v933
    %v935 = vmul.f32 %v934, 1.442695
    %v936 = vpow.pop %v935
    %v937 = vsel %vm426, %v936, 0.0
    %938 = vadd.xlane.f32.xlu0 %v937
    %v939 = vpop.xlane.xlu0 %938
    %v940 = vrcp.pop %v939
    %v941 = vmul.f32 %v936, %v940
    %v942 = vpack.c.bf16 %v941, %v941
    %943 = vrot.lane.b32.xlu0 %v881, 64
    %v944 = vpop.permute.xlu0 %943
    %v946 = vsel %vm426, %v942, 0
    %v949 = vsel %vm490, %v944, 0
    %951 = vmatprep.subr.bf16.mxu0 0
    %952 = vmatpush1.bf16.msra.mxu0 %v949
    %953 = vmatprep.subr.bf16.mxu0 0
    %954 = vmatpush1.bf16.msra.mxu0 0
    %955 = vmatprep.subr.bf16.mxu0 0
    %956 = vmatpush1.bf16.msra.mxu0 0
    %957 = vmatprep.subr.bf16.mxu0 0
    %958 = vmatpush1.bf16.msra.mxu0 0
    %959 = vmatprep.subr.bf16.mxu0 0
    %960 = vmatpush1.bf16.msra.mxu0 0
    %961 = vmatprep.subr.bf16.mxu0 0
    %962 = vmatpush1.bf16.msra.mxu0 0
    %963 = vmatprep.subr.bf16.mxu0 0
    %964 = vmatpush1.bf16.msra.mxu0 0
    %965 = vmatprep.subr.bf16.mxu0 0
    %966 = vmatpush1.bf16.msra.mxu0 0
    %967 = vmatprep.subr.bf16.mxu0 0
    %968 = vmatpush1.bf16.msra.mxu0 0
    %969 = vmatprep.subr.bf16.mxu0 0
    %970 = vmatpush1.bf16.msra.mxu0 0
    %971 = vmatprep.subr.bf16.mxu0 0
    %972 = vmatpush1.bf16.msra.mxu0 0
    %973 = vmatprep.subr.bf16.mxu0 0
    %974 = vmatpush1.bf16.msra.mxu0 0
    %975 = vmatprep.subr.bf16.mxu0 0
    %976 = vmatpush1.bf16.msra.mxu0 0
    %977 = vmatprep.subr.bf16.mxu0 0
    %978 = vmatpush1.bf16.msra.mxu0 0
    %979 = vmatprep.subr.bf16.mxu0 0
    %980 = vmatpush1.bf16.msra.mxu0 0
    %981 = vmatprep.subr.bf16.mxu0 0
    %982 = vmatpush1.bf16.msra.mxu0 0
    %983 = vmatprep.mubr.bf16.mxu0 0
    %984 = vmatmul.mubr.bf16.gmra.mrb[0].mxu0 %v946
    %v985 = vpop.f32.mrb[0].mxu0
    %v986 = vadd.f32 0.0, %v985
    %v987 = vpop.f32.mrb[0].mxu0
    %v988 = vpop.f32.mrb[0].mxu0
    %v989 = vpop.f32.mrb[0].mxu0
    %990 = vdwg.mxu0
    %991 = vrot.lane.b32.xlu0 %v881, 120
    %v992 = vpop.permute.xlu0 %991
    %993 = vrot.lane.b32.xlu0 %v881, 88
    %v994 = vpop.permute.xlu0 %993
    %v996 = vsel %vm426, %v992, 0
    %v999 = vsel %vm426, %v994, 0
    %1001 = vmatprep.subr.bf16.mxu0 0
    %1002 = vmatpush1.bf16.xpose.msra.mxu0 %v999
    %1003 = vmatprep.subr.bf16.mxu0 0
    %1004 = vmatpush1.bf16.xpose.msra.mxu0 0
    %1005 = vmatprep.subr.bf16.mxu0 0
    %1006 = vmatpush1.bf16.xpose.msra.mxu0 0
    %1007 = vmatprep.subr.bf16.mxu0 0
    %1008 = vmatpush1.bf16.xpose.msra.mxu0 0
    %1009 = vmatprep.subr.bf16.mxu0 0
    %1010 = vmatpush1.bf16.xpose.msra.mxu0 0
    %1011 = vmatprep.subr.bf16.mxu0 0
    %1012 = vmatpush1.bf16.xpose.msra.mxu0 0
    %1013 = vmatprep.subr.bf16.mxu0 0
    %1014 = vmatpush1.bf16.xpose.msra.mxu0 0
    %1015 = vmatprep.subr.bf16.mxu0 0
    %1016 = vmatpush1.bf16.xpose.msra.mxu0 0
    %1017 = vmatprep.subr.bf16.mxu0 0
    %1018 = vmatpush1.bf16.xpose.msra.mxu0 0
    %1019 = vmatprep.subr.bf16.mxu0 0
    %1020 = vmatpush1.bf16.xpose.msra.mxu0 0
    %1021 = vmatprep.subr.bf16.mxu0 0
    %1022 = vmatpush1.bf16.xpose.msra.mxu0 0
    %1023 = vmatprep.subr.bf16.mxu0 0
    %1024 = vmatpush1.bf16.xpose.msra.mxu0 0
    %1025 = vmatprep.subr.bf16.mxu0 0
    %1026 = vmatpush1.bf16.xpose.msra.mxu0 0
    %1027 = vmatprep.subr.bf16.mxu0 0
    %1028 = vmatpush1.bf16.xpose.msra.mxu0 0
    %1029 = vmatprep.subr.bf16.mxu0 0
    %1030 = vmatpush1.bf16.xpose.msra.mxu0 0
    %1031 = vmatprep.subr.bf16.mxu0 0
    %1032 = vmatpush1.bf16.xpose.msra.mxu0 0
    %1033 = vmatprep.mubr.bf16.mxu0 0
    %1034 = vmatmul.mubr.bf16.gmra.mrb[0].mxu0 %v996
    %v1035 = vpop.f32.mrb[0].mxu0
    %v1036 = vadd.f32 %v352, %v1035
    %v1037 = vpop.f32.mrb[0].mxu0
    %v1038 = vpop.f32.mrb[0].mxu0
    %v1039 = vpop.f32.mrb[0].mxu0
    %1040 = vdwg.mxu0
    %v1041 = vsel %vm426, %v1036, -inf
    %1042 = vmax.xlane.f32.xlu0 %v1041
    %v1043 = vpop.xlane.xlu0 %1042
    %v1044 = vsub.f32 %v1036, %v1043
    %v1045 = vmul.f32 %v1044, 1.442695
    %v1046 = vpow.pop %v1045
    %v1047 = vsel %vm426, %v1046, 0.0
    %1048 = vadd.xlane.f32.xlu0 %v1047
    %v1049 = vpop.xlane.xlu0 %1048
    %v1050 = vrcp.pop %v1049
    %v1051 = vmul.f32 %v1046, %v1050
    %v1052 = vpack.c.bf16 %v1051, %v1051
    %1053 = vrot.lane.b32.xlu0 %v881, 56
    %v1054 = vpop.permute.xlu0 %1053
    %v1056 = vsel %vm426, %v1052, 0
    %v1059 = vsel %vm490, %v1054, 0
    %1061 = vmatprep.subr.bf16.mxu0 0
    %1062 = vmatpush1.bf16.msra.mxu0 %v1059
    %1063 = vmatprep.subr.bf16.mxu0 0
    %1064 = vmatpush1.bf16.msra.mxu0 0
    %1065 = vmatprep.subr.bf16.mxu0 0
    %1066 = vmatpush1.bf16.msra.mxu0 0
    %1067 = vmatprep.subr.bf16.mxu0 0
    %1068 = vmatpush1.bf16.msra.mxu0 0
    %1069 = vmatprep.subr.bf16.mxu0 0
    %1070 = vmatpush1.bf16.msra.mxu0 0
    %1071 = vmatprep.subr.bf16.mxu0 0
    %1072 = vmatpush1.bf16.msra.mxu0 0
    %1073 = vmatprep.subr.bf16.mxu0 0
    %1074 = vmatpush1.bf16.msra.mxu0 0
    %1075 = vmatprep.subr.bf16.mxu0 0
    %1076 = vmatpush1.bf16.msra.mxu0 0
    %1077 = vmatprep.subr.bf16.mxu0 0
    %1078 = vmatpush1.bf16.msra.mxu0 0
    %1079 = vmatprep.subr.bf16.mxu0 0
    %1080 = vmatpush1.bf16.msra.mxu0 0
    %1081 = vmatprep.subr.bf16.mxu0 0
    %1082 = vmatpush1.bf16.msra.mxu0 0
    %1083 = vmatprep.subr.bf16.mxu0 0
    %1084 = vmatpush1.bf16.msra.mxu0 0
    %1085 = vmatprep.subr.bf16.mxu0 0
    %1086 = vmatpush1.bf16.msra.mxu0 0
    %1087 = vmatprep.subr.bf16.mxu0 0
    %1088 = vmatpush1.bf16.msra.mxu0 0
    %1089 = vmatprep.subr.bf16.mxu0 0
    %1090 = vmatpush1.bf16.msra.mxu0 0
    %1091 = vmatprep.subr.bf16.mxu0 0
    %1092 = vmatpush1.bf16.msra.mxu0 0
    %1093 = vmatprep.mubr.bf16.mxu0 0
    %1094 = vmatmul.mubr.bf16.gmra.mrb[0].mxu0 %v1056
    %v1095 = vpop.f32.mrb[0].mxu0
    %v1096 = vadd.f32 0.0, %v1095
    %v1097 = vpop.f32.mrb[0].mxu0
    %v1098 = vpop.f32.mrb[0].mxu0
    %v1099 = vpop.f32.mrb[0].mxu0
    %1100 = vdwg.mxu0
    %1101 = vrot.lane.b32.xlu0 %v881, 112
    %v1102 = vpop.permute.xlu0 %1101
    %1103 = vrot.lane.b32.xlu0 %v881, 80
    %v1104 = vpop.permute.xlu0 %1103
    %v1106 = vsel %vm426, %v1102, 0
    %v1109 = vsel %vm426, %v1104, 0
    %1111 = vmatprep.subr.bf16.mxu0 0
    %1112 = vmatpush1.bf16.xpose.msra.mxu0 %v1109
    %1113 = vmatprep.subr.bf16.mxu0 0
    %1114 = vmatpush1.bf16.xpose.msra.mxu0 0
    %1115 = vmatprep.subr.bf16.mxu0 0
    %1116 = vmatpush1.bf16.xpose.msra.mxu0 0
    %1117 = vmatprep.subr.bf16.mxu0 0
    %1118 = vmatpush1.bf16.xpose.msra.mxu0 0
    %1119 = vmatprep.subr.bf16.mxu0 0
    %1120 = vmatpush1.bf16.xpose.msra.mxu0 0
    %1121 = vmatprep.subr.bf16.mxu0 0
    %1122 = vmatpush1.bf16.xpose.msra.mxu0 0
    %1123 = vmatprep.subr.bf16.mxu0 0
    %1124 = vmatpush1.bf16.xpose.msra.mxu0 0
    %1125 = vmatprep.subr.bf16.mxu0 0
    %1126 = vmatpush1.bf16.xpose.msra.mxu0 0
    %1127 = vmatprep.subr.bf16.mxu0 0
    %1128 = vmatpush1.bf16.xpose.msra.mxu0 0
    %1129 = vmatprep.subr.bf16.mxu0 0
    %1130 = vmatpush1.bf16.xpose.msra.mxu0 0
    %1131 = vmatprep.subr.bf16.mxu0 0
    %1132 = vmatpush1.bf16.xpose.msra.mxu0 0
    %1133 = vmatprep.subr.bf16.mxu0 0
    %1134 = vmatpush1.bf16.xpose.msra.mxu0 0
    %1135 = vmatprep.subr.bf16.mxu0 0
    %1136 = vmatpush1.bf16.xpose.msra.mxu0 0
    %1137 = vmatprep.subr.bf16.mxu0 0
    %1138 = vmatpush1.bf16.xpose.msra.mxu0 0
    %1139 = vmatprep.subr.bf16.mxu0 0
    %1140 = vmatpush1.bf16.xpose.msra.mxu0 0
    %1141 = vmatprep.subr.bf16.mxu0 0
    %1142 = vmatpush1.bf16.xpose.msra.mxu0 0
    %1143 = vmatprep.mubr.bf16.mxu0 0
    %1144 = vmatmul.mubr.bf16.gmra.mrb[0].mxu0 %v1106
    %v1145 = vpop.f32.mrb[0].mxu0
    %v1146 = vadd.f32 %v352, %v1145
    %v1147 = vpop.f32.mrb[0].mxu0
    %v1148 = vpop.f32.mrb[0].mxu0
    %v1149 = vpop.f32.mrb[0].mxu0
    %1150 = vdwg.mxu0
    %v1151 = vsel %vm426, %v1146, -inf
    %1152 = vmax.xlane.f32.xlu0 %v1151
    %v1153 = vpop.xlane.xlu0 %1152
    %v1154 = vsub.f32 %v1146, %v1153
    %v1155 = vmul.f32 %v1154, 1.442695
    %v1156 = vpow.pop %v1155
    %v1157 = vsel %vm426, %v1156, 0.0
    %1158 = vadd.xlane.f32.xlu0 %v1157
    %v1159 = vpop.xlane.xlu0 %1158
    %v1160 = vrcp.pop %v1159
    %v1161 = vmul.f32 %v1156, %v1160
    %v1162 = vpack.c.bf16 %v1161, %v1161
    %1163 = vrot.lane.b32.xlu0 %v881, 48
    %v1164 = vpop.permute.xlu0 %1163
    %v1166 = vsel %vm426, %v1162, 0
    %v1169 = vsel %vm490, %v1164, 0
    %1171 = vmatprep.subr.bf16.mxu0 0
    %1172 = vmatpush1.bf16.msra.mxu0 %v1169
    %1173 = vmatprep.subr.bf16.mxu0 0
    %1174 = vmatpush1.bf16.msra.mxu0 0
    %1175 = vmatprep.subr.bf16.mxu0 0
    %1176 = vmatpush1.bf16.msra.mxu0 0
    %1177 = vmatprep.subr.bf16.mxu0 0
    %1178 = vmatpush1.bf16.msra.mxu0 0
    %1179 = vmatprep.subr.bf16.mxu0 0
    %1180 = vmatpush1.bf16.msra.mxu0 0
    %1181 = vmatprep.subr.bf16.mxu0 0
    %1182 = vmatpush1.bf16.msra.mxu0 0
    %1183 = vmatprep.subr.bf16.mxu0 0
    %1184 = vmatpush1.bf16.msra.mxu0 0
    %1185 = vmatprep.subr.bf16.mxu0 0
    %1186 = vmatpush1.bf16.msra.mxu0 0
    %1187 = vmatprep.subr.bf16.mxu0 0
    %1188 = vmatpush1.bf16.msra.mxu0 0
    %1189 = vmatprep.subr.bf16.mxu0 0
    %1190 = vmatpush1.bf16.msra.mxu0 0
    %1191 = vmatprep.subr.bf16.mxu0 0
    %1192 = vmatpush1.bf16.msra.mxu0 0
    %1193 = vmatprep.subr.bf16.mxu0 0
    %1194 = vmatpush1.bf16.msra.mxu0 0
    %1195 = vmatprep.subr.bf16.mxu0 0
    %1196 = vmatpush1.bf16.msra.mxu0 0
    %1197 = vmatprep.subr.bf16.mxu0 0
    %1198 = vmatpush1.bf16.msra.mxu0 0
    %1199 = vmatprep.subr.bf16.mxu0 0
    %1200 = vmatpush1.bf16.msra.mxu0 0
    %1201 = vmatprep.subr.bf16.mxu0 0
    %1202 = vmatpush1.bf16.msra.mxu0 0
    %1203 = vmatprep.mubr.bf16.mxu0 0
    %1204 = vmatmul.mubr.bf16.gmra.mrb[0].mxu0 %v1166
    %v1205 = vpop.f32.mrb[0].mxu0
    %v1206 = vadd.f32 0.0, %v1205
    %v1207 = vpop.f32.mrb[0].mxu0
    %v1208 = vpop.f32.mrb[0].mxu0
    %v1209 = vpop.f32.mrb[0].mxu0
    %1210 = vdwg.mxu0
    %1211 = vrot.lane.b32.xlu0 %v881, 104
    %v1212 = vpop.permute.xlu0 %1211
    %1213 = vrot.lane.b32.xlu0 %v881, 72
    %v1214 = vpop.permute.xlu0 %1213
    %v1216 = vsel %vm426, %v1212, 0
    %v1219 = vsel %vm426, %v1214, 0
    %1221 = vmatprep.subr.bf16.mxu0 0
    %1222 = vmatpush1.bf16.xpose.msra.mxu0 %v1219
    %1223 = vmatprep.subr.bf16.mxu0 0
    %1224 = vmatpush1.bf16.xpose.msra.mxu0 0
    %1225 = vmatprep.subr.bf16.mxu0 0
    %1226 = vmatpush1.bf16.xpose.msra.mxu0 0
    %1227 = vmatprep.subr.bf16.mxu0 0
    %1228 = vmatpush1.bf16.xpose.msra.mxu0 0
    %1229 = vmatprep.subr.bf16.mxu0 0
    %1230 = vmatpush1.bf16.xpose.msra.mxu0 0
    %1231 = vmatprep.subr.bf16.mxu0 0
    %1232 = vmatpush1.bf16.xpose.msra.mxu0 0
    %1233 = vmatprep.subr.bf16.mxu0 0
    %1234 = vmatpush1.bf16.xpose.msra.mxu0 0
    %1235 = vmatprep.subr.bf16.mxu0 0
    %1236 = vmatpush1.bf16.xpose.msra.mxu0 0
    %1237 = vmatprep.subr.bf16.mxu0 0
    %1238 = vmatpush1.bf16.xpose.msra.mxu0 0
    %1239 = vmatprep.subr.bf16.mxu0 0
    %1240 = vmatpush1.bf16.xpose.msra.mxu0 0
    %1241 = vmatprep.subr.bf16.mxu0 0
    %1242 = vmatpush1.bf16.xpose.msra.mxu0 0
    %1243 = vmatprep.subr.bf16.mxu0 0
    %1244 = vmatpush1.bf16.xpose.msra.mxu0 0
    %1245 = vmatprep.subr.bf16.mxu0 0
    %1246 = vmatpush1.bf16.xpose.msra.mxu0 0
    %1247 = vmatprep.subr.bf16.mxu0 0
    %1248 = vmatpush1.bf16.xpose.msra.mxu0 0
    %1249 = vmatprep.subr.bf16.mxu0 0
    %1250 = vmatpush1.bf16.xpose.msra.mxu0 0
    %1251 = vmatprep.subr.bf16.mxu0 0
    %1252 = vmatpush1.bf16.xpose.msra.mxu0 0
    %1253 = vmatprep.mubr.bf16.mxu0 0
    %1254 = vmatmul.mubr.bf16.gmra.mrb[0].mxu0 %v1216
    %v1255 = vpop.f32.mrb[0].mxu0
    %v1256 = vadd.f32 %v352, %v1255
    %v1257 = vpop.f32.mrb[0].mxu0
    %v1258 = vpop.f32.mrb[0].mxu0
    %v1259 = vpop.f32.mrb[0].mxu0
    %1260 = vdwg.mxu0
    %v1261 = vsel %vm426, %v1256, -inf
    %1262 = vmax.xlane.f32.xlu0 %v1261
    %v1263 = vpop.xlane.xlu0 %1262
    %v1264 = vsub.f32 %v1256, %v1263
    %v1265 = vmul.f32 %v1264, 1.442695
    %v1266 = vpow.pop %v1265
    %v1267 = vsel %vm426, %v1266, 0.0
    %1268 = vadd.xlane.f32.xlu0 %v1267
    %v1269 = vpop.xlane.xlu0 %1268
    %v1270 = vrcp.pop %v1269
    %v1271 = vmul.f32 %v1266, %v1270
    %v1272 = vpack.c.bf16 %v1271, %v1271
    %1273 = vrot.lane.b32.xlu0 %v881, 40
    %v1274 = vpop.permute.xlu0 %1273
    %v1276 = vsel %vm426, %v1272, 0
    %v1279 = vsel %vm490, %v1274, 0
    %1281 = vmatprep.subr.bf16.mxu0 0
    %1282 = vmatpush1.bf16.msra.mxu0 %v1279
    %1283 = vmatprep.subr.bf16.mxu0 0
    %1284 = vmatpush1.bf16.msra.mxu0 0
    %1285 = vmatprep.subr.bf16.mxu0 0
    %1286 = vmatpush1.bf16.msra.mxu0 0
    %1287 = vmatprep.subr.bf16.mxu0 0
    %1288 = vmatpush1.bf16.msra.mxu0 0
    %1289 = vmatprep.subr.bf16.mxu0 0
    %1290 = vmatpush1.bf16.msra.mxu0 0
    %1291 = vmatprep.subr.bf16.mxu0 0
    %1292 = vmatpush1.bf16.msra.mxu0 0
    %1293 = vmatprep.subr.bf16.mxu0 0
    %1294 = vmatpush1.bf16.msra.mxu0 0
    %1295 = vmatprep.subr.bf16.mxu0 0
    %1296 = vmatpush1.bf16.msra.mxu0 0
    %1297 = vmatprep.subr.bf16.mxu0 0
    %1298 = vmatpush1.bf16.msra.mxu0 0
    %1299 = vmatprep.subr.bf16.mxu0 0
    %1300 = vmatpush1.bf16.msra.mxu0 0
    %1301 = vmatprep.subr.bf16.mxu0 0
    %1302 = vmatpush1.bf16.msra.mxu0 0
    %1303 = vmatprep.subr.bf16.mxu0 0
    %1304 = vmatpush1.bf16.msra.mxu0 0
    %1305 = vmatprep.subr.bf16.mxu0 0
    %1306 = vmatpush1.bf16.msra.mxu0 0
    %1307 = vmatprep.subr.bf16.mxu0 0
    %1308 = vmatpush1.bf16.msra.mxu0 0
    %1309 = vmatprep.subr.bf16.mxu0 0
    %1310 = vmatpush1.bf16.msra.mxu0 0
    %1311 = vmatprep.subr.bf16.mxu0 0
    %1312 = vmatpush1.bf16.msra.mxu0 0
    %1313 = vmatprep.mubr.bf16.mxu0 0
    %1314 = vmatmul.mubr.bf16.gmra.mrb[0].mxu0 %v1276
    %v1315 = vpop.f32.mrb[0].mxu0
    %v1316 = vadd.f32 0.0, %v1315
    %v1317 = vpop.f32.mrb[0].mxu0
    %v1318 = vpop.f32.mrb[0].mxu0
    %v1319 = vpop.f32.mrb[0].mxu0
    %1320 = vdwg.mxu0
    %1322 = vrot.lane.b32.xlu0 %v1096, 8
    %v1323 = vpop.permute.xlu0 %1322
    %1326 = vrot.lane.b32.xlu0 %v1206, 16
    %v1327 = vpop.permute.xlu0 %1326
    %1330 = vrot.lane.b32.xlu0 %v1316, 24
    %v1331 = vpop.permute.xlu0 %1330
    %v1333 = vsel %vm426, %v986, %v1323
    %v1334 = vsel %vm877, %v1333, %v1327
    %v1335 = vsel %vm879, %v1334, %v1331
    %v1336 = vpack.c.bf16 %v1335, %v880
    %v1337 = vld [vmem:[#allocation10] sm:$0xf]
    %v1338 = vld [vmem:[#allocation10 + $0x4] sm:$0xf]
    %v1339 = vld [vmem:[#allocation10 + $0x8] sm:$0xf]
    %v1340 = vld [vmem:[#allocation10 + $0xc] sm:$0xf]
    %v1341 = vld [vmem:[#allocation11] sm:$0x1]
    %v1343 = vlaneseq
    %v1344 = vshrl.u32 %v1343, 7
    %v1345 = vsub.s32 0, %v1344
    %v1346 = vrot.slane %v1341, %v1345
    %v1352 = vunpack.c.l.b16 %v1337
    %v1353 = vunpack.c.l.b16 %v1338
    %v1354 = vunpack.c.l.b16 %v1339
    %v1355 = vunpack.c.l.b16 %v1340
    %v1356 = vpack.c.b16 %v1353, %v1352
    %v1357 = vpack.c.b16 %v1355, %v1354
    %v1361 = vsel %vm377, %v1336, 0
    %1363 = vmatprep.subr.bf16.mxu0 0
    %1364 = vmatpush1.bf16.msra.mxu0 %v1356
    %1365 = vmatprep.subr.bf16.mxu0 0
    %1366 = vmatpush1.bf16.msra.mxu0 %v1357
    %1367 = vmatprep.subr.bf16.mxu0 0
    %1368 = vmatpush1.bf16.msra.mxu0 0
    %1369 = vmatprep.subr.bf16.mxu0 0
    %1370 = vmatpush1.bf16.msra.mxu0 0
    %1371 = vmatprep.subr.bf16.mxu0 0
    %1372 = vmatpush1.bf16.msra.mxu0 0
    %1373 = vmatprep.subr.bf16.mxu0 0
    %1374 = vmatpush1.bf16.msra.mxu0 0
    %1375 = vmatprep.subr.bf16.mxu0 0
    %1376 = vmatpush1.bf16.msra.mxu0 0
    %1377 = vmatprep.subr.bf16.mxu0 0
    %1378 = vmatpush1.bf16.msra.mxu0 0
    %1379 = vmatprep.subr.bf16.mxu0 0
    %1380 = vmatpush1.bf16.msra.mxu0 0
    %1381 = vmatprep.subr.bf16.mxu0 0
    %1382 = vmatpush1.bf16.msra.mxu0 0
    %1383 = vmatprep.subr.bf16.mxu0 0
    %1384 = vmatpush1.bf16.msra.mxu0 0
    %1385 = vmatprep.subr.bf16.mxu0 0
    %1386 = vmatpush1.bf16.msra.mxu0 0
    %1387 = vmatprep.subr.bf16.mxu0 0
    %1388 = vmatpush1.bf16.msra.mxu0 0
    %1389 = vmatprep.subr.bf16.mxu0 0
    %1390 = vmatpush1.bf16.msra.mxu0 0
    %1391 = vmatprep.subr.bf16.mxu0 0
    %1392 = vmatpush1.bf16.msra.mxu0 0
    %1393 = vmatprep.subr.bf16.mxu0 0
    %1394 = vmatpush1.bf16.msra.mxu0 0
    %1395 = vmatprep.mubr.bf16.mxu0 0
    %1396 = vmatmul.mubr.bf16.gmra.mrb[0].mxu0 %v1361
    %v1397 = vpop.f32.mrb[0].mxu0
    %v1398 = vadd.f32 %v1346, %v1397
    %v1399 = vpop.f32.mrb[0].mxu0
    %v1400 = vpop.f32.mrb[0].mxu0
    %v1401 = vadd.f32 %v1346, %v1400
    %v1402 = vpop.f32.mrb[0].mxu0
    %1403 = vdwg.mxu0
    %v1404 = vadd.f32 %v1398, %v345
    %v1405 = vadd.f32 %v1401, %v346
    %v1406 = vld [vmem:[#allocation13] sm:$0x1]
    %v1407 = vld [vmem:[#allocation14] sm:$0x1]
    %v1408 = vsel %vm377, %v1404, 0.0
    %1409 = vadd.xlane.f32.xlu0 %v1408
    %v1410 = vpop.xlane.xlu0 %1409
    %v1411 = vsel %vm377, %v1405, 0.0
    %1412 = vadd.xlane.f32.xlu0 %v1411
    %v1413 = vpop.xlane.xlu0 %1412
    %v1414 = vrcp.pop 32.0
    %v1415 = vmul.f32 %v1410, %v1414
    %v1416 = vmul.f32 %v1413, %v1414
    %v1417 = vsub.f32 %v1404, %v1415
    %v1418 = vsub.f32 %v1405, %v1416
    %v1419 = vmul.f32 %v1417, %v1417
    %v1420 = vmul.f32 %v1418, %v1418
    %v1421 = vsel %vm377, %v1419, 0.0
    %1422 = vadd.xlane.f32.xlu0 %v1421
    %v1423 = vpop.xlane.xlu0 %1422
    %v1424 = vsel %vm377, %v1420, 0.0
    %1425 = vadd.xlane.f32.xlu0 %v1424
    %v1426 = vpop.xlane.xlu0 %1425
    %v1427 = vmul.f32 %v1423, %v1414
    %v1428 = vmul.f32 %v1426, %v1414
    %v1429 = vadd.f32 %v1427, 1e-05
    %v1430 = vadd.f32 %v1428, 1e-05
    %v1431 = vrsqrt.pop %v1429
    %v1432 = vrsqrt.pop %v1430
    %v1433 = vmul.f32 %v1417, %v1431
    %v1434 = vmul.f32 %v1418, %v1432
    %v1436 = vlaneseq
    %v1437 = vshrl.u32 %v1436, 7
    %v1438 = vsub.s32 0, %v1437
    %v1439 = vrot.slane %v1406, %v1438
    %v1441 = vmul.f32 %v1433, %v1439
    %v1442 = vmul.f32 %v1434, %v1439
    %v1444 = vlaneseq
    %v1445 = vshrl.u32 %v1444, 7
    %v1446 = vsub.s32 0, %v1445
    %v1447 = vrot.slane %v1407, %v1446
    %v1449 = vadd.f32 %v1441, %v1447
    %v1450 = vadd.f32 %v1442, %v1447
    %v1451 = vld [vmem:[#allocation5] sm:$0xff]
    %v1452 = vld [vmem:[#allocation5 + $0x8] sm:$0xff]
    %v1453 = vpack.c.bf16 %v1450, %v1449
    %v1454 = vld [vmem:[#allocation16] sm:$0xf]
    %v1455 = vld [vmem:[#allocation16 + $0x4] sm:$0xf]
    %v1456 = vld [vmem:[#allocation16 + $0x8] sm:$0xf]
    %v1457 = vld [vmem:[#allocation16 + $0xc] sm:$0xf]
    %v1458 = vld [vmem:[#allocation17] sm:$0x1]
    %v1460 = vlaneseq
    %v1461 = vshrl.u32 %v1460, 7
    %v1462 = vsub.s32 0, %v1461
    %v1463 = vrot.slane %v1458, %v1462
    %v1469 = vunpack.c.l.b16 %v1454
    %v1470 = vunpack.c.l.b16 %v1455
    %v1471 = vunpack.c.l.b16 %v1456
    %v1472 = vunpack.c.l.b16 %v1457
    %v1473 = vpack.c.b16 %v1470, %v1469
    %v1474 = vpack.c.b16 %v1472, %v1471
    %v1478 = vsel %vm377, %v1453, 0
    %1480 = vmatprep.subr.bf16.mxu0 0
    %1481 = vmatpush1.bf16.msra.mxu0 %v1473
    %1482 = vmatprep.subr.bf16.mxu0 0
    %1483 = vmatpush1.bf16.msra.mxu0 %v1474
    %1484 = vmatprep.subr.bf16.mxu0 0
    %1485 = vmatpush1.bf16.msra.mxu0 0
    %1486 = vmatprep.subr.bf16.mxu0 0
    %1487 = vmatpush1.bf16.msra.mxu0 0
    %1488 = vmatprep.subr.bf16.mxu0 0
    %1489 = vmatpush1.bf16.msra.mxu0 0
    %1490 = vmatprep.subr.bf16.mxu0 0
    %1491 = vmatpush1.bf16.msra.mxu0 0
    %1492 = vmatprep.subr.bf16.mxu0 0
    %1493 = vmatpush1.bf16.msra.mxu0 0
    %1494 = vmatprep.subr.bf16.mxu0 0
    %1495 = vmatpush1.bf16.msra.mxu0 0
    %1496 = vmatprep.subr.bf16.mxu0 0
    %1497 = vmatpush1.bf16.msra.mxu0 0
    %1498 = vmatprep.subr.bf16.mxu0 0
    %1499 = vmatpush1.bf16.msra.mxu0 0
    %1500 = vmatprep.subr.bf16.mxu0 0
    %1501 = vmatpush1.bf16.msra.mxu0 0
    %1502 = vmatprep.subr.bf16.mxu0 0
    %1503 = vmatpush1.bf16.msra.mxu0 0
    %1504 = vmatprep.subr.bf16.mxu0 0
    %1505 = vmatpush1.bf16.msra.mxu0 0
    %1506 = vmatprep.subr.bf16.mxu0 0
    %1507 = vmatpush1.bf16.msra.mxu0 0
    %1508 = vmatprep.subr.bf16.mxu0 0
    %1509 = vmatpush1.bf16.msra.mxu0 0
    %1510 = vmatprep.subr.bf16.mxu0 0
    %1511 = vmatpush1.bf16.msra.mxu0 0
    %1512 = vmatprep.mubr.bf16.mxu0 0
    %1513 = vmatmul.mubr.bf16.gmra.mrb[0].mxu0 %v1478
    %v1514 = vpop.f32.mrb[0].mxu0
    %v1515 = vadd.f32 %v1463, %v1514
    %v1516 = vpop.f32.mrb[0].mxu0
    %v1517 = vpop.f32.mrb[0].mxu0
    %v1518 = vadd.f32 %v1463, %v1517
    %v1519 = vpop.f32.mrb[0].mxu0
    %1520 = vdwg.mxu0
    %v1521 = vpack.c.bf16 %v1452, %v1451
    %v1522 = vld [vmem:[#allocation19] sm:$0xf]
    %v1523 = vld [vmem:[#allocation19 + $0x4] sm:$0xf]
    %v1524 = vld [vmem:[#allocation19 + $0x8] sm:$0xf]
    %v1525 = vld [vmem:[#allocation19 + $0xc] sm:$0xf]
    %v1526 = vld [vmem:[#allocation20] sm:$0x1]
    %v1528 = vlaneseq
    %v1529 = vshrl.u32 %v1528, 7
    %v1530 = vsub.s32 0, %v1529
    %v1531 = vrot.slane %v1526, %v1530
    %v1537 = vunpack.c.l.b16 %v1522
    %v1538 = vunpack.c.l.b16 %v1523
    %v1539 = vunpack.c.l.b16 %v1524
    %v1540 = vunpack.c.l.b16 %v1525
    %v1541 = vpack.c.b16 %v1538, %v1537
    %v1542 = vpack.c.b16 %v1540, %v1539
    %v1546 = vsel %vm377, %v1521, 0
    %1548 = vmatprep.subr.bf16.mxu0 0
    %1549 = vmatpush1.bf16.msra.mxu0 %v1541
    %1550 = vmatprep.subr.bf16.mxu0 0
    %1551 = vmatpush1.bf16.msra.mxu0 %v1542
    %1552 = vmatprep.subr.bf16.mxu0 0
    %1553 = vmatpush1.bf16.msra.mxu0 0
    %1554 = vmatprep.subr.bf16.mxu0 0
    %1555 = vmatpush1.bf16.msra.mxu0 0
    %1556 = vmatprep.subr.bf16.mxu0 0
    %1557 = vmatpush1.bf16.msra.mxu0 0
    %1558 = vmatprep.subr.bf16.mxu0 0
    %1559 = vmatpush1.bf16.msra.mxu0 0
    %1560 = vmatprep.subr.bf16.mxu0 0
    %1561 = vmatpush1.bf16.msra.mxu0 0
    %1562 = vmatprep.subr.bf16.mxu0 0
    %1563 = vmatpush1.bf16.msra.mxu0 0
    %1564 = vmatprep.subr.bf16.mxu0 0
    %1565 = vmatpush1.bf16.msra.mxu0 0
    %1566 = vmatprep.subr.bf16.mxu0 0
    %1567 = vmatpush1.bf16.msra.mxu0 0
    %1568 = vmatprep.subr.bf16.mxu0 0
    %1569 = vmatpush1.bf16.msra.mxu0 0
    %1570 = vmatprep.subr.bf16.mxu0 0
    %1571 = vmatpush1.bf16.msra.mxu0 0
    %1572 = vmatprep.subr.bf16.mxu0 0
    %1573 = vmatpush1.bf16.msra.mxu0 0
    %1574 = vmatprep.subr.bf16.mxu0 0
    %1575 = vmatpush1.bf16.msra.mxu0 0
    %1576 = vmatprep.subr.bf16.mxu0 0
    %1577 = vmatpush1.bf16.msra.mxu0 0
    %1578 = vmatprep.subr.bf16.mxu0 0
    %1579 = vmatpush1.bf16.msra.mxu0 0
    %1580 = vmatprep.mubr.bf16.mxu0 0
    %1581 = vmatmul.mubr.bf16.gmra.mrb[0].mxu0 %v1546
    %v1582 = vpop.f32.mrb[0].mxu0
    %v1583 = vadd.f32 %v1531, %v1582
    %v1584 = vpop.f32.mrb[0].mxu0
    %v1585 = vpop.f32.mrb[0].mxu0
    %v1586 = vadd.f32 %v1531, %v1585
    %v1587 = vpop.f32.mrb[0].mxu0
    %1588 = vdwg.mxu0
    %v1589 = vpack.c.bf16 %v1515, %v1515
    %v1590 = vpack.c.bf16 %v1583, %v1583
    %v1592 = vsel %vm426, %v1589, 0
    %v1595 = vsel %vm426, %v1590, 0
    %1597 = vmatprep.subr.bf16.mxu0 0
    %1598 = vmatpush1.bf16.xpose.msra.mxu0 %v1595
    %1599 = vmatprep.subr.bf16.mxu0 0
    %1600 = vmatpush1.bf16.xpose.msra.mxu0 0
    %1601 = vmatprep.subr.bf16.mxu0 0
    %1602 = vmatpush1.bf16.xpose.msra.mxu0 0
    %1603 = vmatprep.subr.bf16.mxu0 0
    %1604 = vmatpush1.bf16.xpose.msra.mxu0 0
    %1605 = vmatprep.subr.bf16.mxu0 0
    %1606 = vmatpush1.bf16.xpose.msra.mxu0 0
    %1607 = vmatprep.subr.bf16.mxu0 0
    %1608 = vmatpush1.bf16.xpose.msra.mxu0 0
    %1609 = vmatprep.subr.bf16.mxu0 0
    %1610 = vmatpush1.bf16.xpose.msra.mxu0 0
    %1611 = vmatprep.subr.bf16.mxu0 0
    %1612 = vmatpush1.bf16.xpose.msra.mxu0 0
    %1613 = vmatprep.subr.bf16.mxu0 0
    %1614 = vmatpush1.bf16.xpose.msra.mxu0 0
    %1615 = vmatprep.subr.bf16.mxu0 0
    %1616 = vmatpush1.bf16.xpose.msra.mxu0 0
    %1617 = vmatprep.subr.bf16.mxu0 0
    %1618 = vmatpush1.bf16.xpose.msra.mxu0 0
    %1619 = vmatprep.subr.bf16.mxu0 0
    %1620 = vmatpush1.bf16.xpose.msra.mxu0 0
    %1621 = vmatprep.subr.bf16.mxu0 0
    %1622 = vmatpush1.bf16.xpose.msra.mxu0 0
    %1623 = vmatprep.subr.bf16.mxu0 0
    %1624 = vmatpush1.bf16.xpose.msra.mxu0 0
    %1625 = vmatprep.subr.bf16.mxu0 0
    %1626 = vmatpush1.bf16.xpose.msra.mxu0 0
    %1627 = vmatprep.subr.bf16.mxu0 0
    %1628 = vmatpush1.bf16.xpose.msra.mxu0 0
    %1629 = vmatprep.mubr.bf16.mxu0 0
    %1630 = vmatmul.mubr.bf16.gmra.mrb[0].mxu0 %v1592
    %v1631 = vpop.f32.mrb[0].mxu0
    %v1632 = vadd.f32 0.0, %v1631
    %v1633 = vpop.f32.mrb[0].mxu0
    %v1634 = vpop.f32.mrb[0].mxu0
    %v1635 = vpop.f32.mrb[0].mxu0
    %1636 = vdwg.mxu0
    %v1637 = vsel %vm426, %v1632, -inf
    %1638 = vmax.xlane.f32.xlu0 %v1637
    %v1639 = vpop.xlane.xlu0 %1638
    %v1640 = vsub.f32 %v1632, %v1639
    %v1641 = vmul.f32 %v1640, 1.442695
    %v1642 = vpow.pop %v1641
    %v1643 = vsel %vm426, %v1642, 0.0
    %1644 = vadd.xlane.f32.xlu0 %v1643
    %v1645 = vpop.xlane.xlu0 %1644
    %v1646 = vrcp.pop %v1645
    %v1647 = vmul.f32 %v1642, %v1646
    %v1648 = vpack.c.bf16 %v1647, %v1647
    %1650 = vrot.lane.b32.xlu0 %v1590, 96
    %v1651 = vpop.permute.xlu0 %1650
    %v1653 = vsel %vm426, %v1648, 0
    %v1656 = vsel %vm490, %v1651, 0
    %1658 = vmatprep.subr.bf16.mxu0 0
    %1659 = vmatpush1.bf16.msra.mxu0 %v1656
    %1660 = vmatprep.subr.bf16.mxu0 0
    %1661 = vmatpush1.bf16.msra.mxu0 0
    %1662 = vmatprep.subr.bf16.mxu0 0
    %1663 = vmatpush1.bf16.msra.mxu0 0
    %1664 = vmatprep.subr.bf16.mxu0 0
    %1665 = vmatpush1.bf16.msra.mxu0 0
    %1666 = vmatprep.subr.bf16.mxu0 0
    %1667 = vmatpush1.bf16.msra.mxu0 0
    %1668 = vmatprep.subr.bf16.mxu0 0
    %1669 = vmatpush1.bf16.msra.mxu0 0
    %1670 = vmatprep.subr.bf16.mxu0 0
    %1671 = vmatpush1.bf16.msra.mxu0 0
    %1672 = vmatprep.subr.bf16.mxu0 0
    %1673 = vmatpush1.bf16.msra.mxu0 0
    %1674 = vmatprep.subr.bf16.mxu0 0
    %1675 = vmatpush1.bf16.msra.mxu0 0
    %1676 = vmatprep.subr.bf16.mxu0 0
    %1677 = vmatpush1.bf16.msra.mxu0 0
    %1678 = vmatprep.subr.bf16.mxu0 0
    %1679 = vmatpush1.bf16.msra.mxu0 0
    %1680 = vmatprep.subr.bf16.mxu0 0
    %1681 = vmatpush1.bf16.msra.mxu0 0
    %1682 = vmatprep.subr.bf16.mxu0 0
    %1683 = vmatpush1.bf16.msra.mxu0 0
    %1684 = vmatprep.subr.bf16.mxu0 0
    %1685 = vmatpush1.bf16.msra.mxu0 0
    %1686 = vmatprep.subr.bf16.mxu0 0
    %1687 = vmatpush1.bf16.msra.mxu0 0
    %1688 = vmatprep.subr.bf16.mxu0 0
    %1689 = vmatpush1.bf16.msra.mxu0 0
    %1690 = vmatprep.mubr.bf16.mxu0 0
    %1691 = vmatmul.mubr.bf16.gmra.mrb[0].mxu0 %v1653
    %v1692 = vpop.f32.mrb[0].mxu0
    %v1693 = vadd.f32 0.0, %v1692
    %v1694 = vpop.f32.mrb[0].mxu0
    %v1695 = vpop.f32.mrb[0].mxu0
    %v1696 = vpop.f32.mrb[0].mxu0
    %1697 = vdwg.mxu0
    %1699 = vrot.lane.b32.xlu0 %v1589, 120
    %v1700 = vpop.permute.xlu0 %1699
    %1701 = vrot.lane.b32.xlu0 %v1590, 120
    %v1702 = vpop.permute.xlu0 %1701
    %v1704 = vsel %vm426, %v1700, 0
    %v1707 = vsel %vm426, %v1702, 0
    %1709 = vmatprep.subr.bf16.mxu0 0
    %1710 = vmatpush1.bf16.xpose.msra.mxu0 %v1707
    %1711 = vmatprep.subr.bf16.mxu0 0
    %1712 = vmatpush1.bf16.xpose.msra.mxu0 0
    %1713 = vmatprep.subr.bf16.mxu0 0
    %1714 = vmatpush1.bf16.xpose.msra.mxu0 0
    %1715 = vmatprep.subr.bf16.mxu0 0
    %1716 = vmatpush1.bf16.xpose.msra.mxu0 0
    %1717 = vmatprep.subr.bf16.mxu0 0
    %1718 = vmatpush1.bf16.xpose.msra.mxu0 0
    %1719 = vmatprep.subr.bf16.mxu0 0
    %1720 = vmatpush1.bf16.xpose.msra.mxu0 0
    %1721 = vmatprep.subr.bf16.mxu0 0
    %1722 = vmatpush1.bf16.xpose.msra.mxu0 0
    %1723 = vmatprep.subr.bf16.mxu0 0
    %1724 = vmatpush1.bf16.xpose.msra.mxu0 0
    %1725 = vmatprep.subr.bf16.mxu0 0
    %1726 = vmatpush1.bf16.xpose.msra.mxu0 0
    %1727 = vmatprep.subr.bf16.mxu0 0
    %1728 = vmatpush1.bf16.xpose.msra.mxu0 0
    %1729 = vmatprep.subr.bf16.mxu0 0
    %1730 = vmatpush1.bf16.xpose.msra.mxu0 0
    %1731 = vmatprep.subr.bf16.mxu0 0
    %1732 = vmatpush1.bf16.xpose.msra.mxu0 0
    %1733 = vmatprep.subr.bf16.mxu0 0
    %1734 = vmatpush1.bf16.xpose.msra.mxu0 0
    %1735 = vmatprep.subr.bf16.mxu0 0
    %1736 = vmatpush1.bf16.xpose.msra.mxu0 0
    %1737 = vmatprep.subr.bf16.mxu0 0
    %1738 = vmatpush1.bf16.xpose.msra.mxu0 0
    %1739 = vmatprep.subr.bf16.mxu0 0
    %1740 = vmatpush1.bf16.xpose.msra.mxu0 0
    %1741 = vmatprep.mubr.bf16.mxu0 0
    %1742 = vmatmul.mubr.bf16.gmra.mrb[0].mxu0 %v1704
    %v1743 = vpop.f32.mrb[0].mxu0
    %v1744 = vadd.f32 0.0, %v1743
    %v1745 = vpop.f32.mrb[0].mxu0
    %v1746 = vpop.f32.mrb[0].mxu0
    %v1747 = vpop.f32.mrb[0].mxu0
    %1748 = vdwg.mxu0
    %v1749 = vsel %vm426, %v1744, -inf
    %1750 = vmax.xlane.f32.xlu0 %v1749
    %v1751 = vpop.xlane.xlu0 %1750
    %v1752 = vsub.f32 %v1744, %v1751
    %v1753 = vmul.f32 %v1752, 1.442695
    %v1754 = vpow.pop %v1753
    %v1755 = vsel %vm426, %v1754, 0.0
    %1756 = vadd.xlane.f32.xlu0 %v1755
    %v1757 = vpop.xlane.xlu0 %1756
    %v1758 = vrcp.pop %v1757
    %v1759 = vmul.f32 %v1754, %v1758
    %v1760 = vpack.c.bf16 %v1759, %v1759
    %1761 = vrot.lane.b32.xlu0 %v1590, 88
    %v1762 = vpop.permute.xlu0 %1761
    %v1764 = vsel %vm426, %v1760, 0
    %v1767 = vsel %vm490, %v1762, 0
    %1769 = vmatprep.subr.bf16.mxu0 0
    %1770 = vmatpush1.bf16.msra.mxu0 %v1767
    %1771 = vmatprep.subr.bf16.mxu0 0
    %1772 = vmatpush1.bf16.msra.mxu0 0
    %1773 = vmatprep.subr.bf16.mxu0 0
    %1774 = vmatpush1.bf16.msra.mxu0 0
    %1775 = vmatprep.subr.bf16.mxu0 0
    %1776 = vmatpush1.bf16.msra.mxu0 0
    %1777 = vmatprep.subr.bf16.mxu0 0
    %1778 = vmatpush1.bf16.msra.mxu0 0
    %1779 = vmatprep.subr.bf16.mxu0 0
    %1780 = vmatpush1.bf16.msra.mxu0 0
    %1781 = vmatprep.subr.bf16.mxu0 0
    %1782 = vmatpush1.bf16.msra.mxu0 0
    %1783 = vmatprep.subr.bf16.mxu0 0
    %1784 = vmatpush1.bf16.msra.mxu0 0
    %1785 = vmatprep.subr.bf16.mxu0 0
    %1786 = vmatpush1.bf16.msra.mxu0 0
    %1787 = vmatprep.subr.bf16.mxu0 0
    %1788 = vmatpush1.bf16.msra.mxu0 0
    %1789 = vmatprep.subr.bf16.mxu0 0
    %1790 = vmatpush1.bf16.msra.mxu0 0
    %1791 = vmatprep.subr.bf16.mxu0 0
    %1792 = vmatpush1.bf16.msra.mxu0 0
    %1793 = vmatprep.subr.bf16.mxu0 0
    %1794 = vmatpush1.bf16.msra.mxu0 0
    %1795 = vmatprep.subr.bf16.mxu0 0
    %1796 = vmatpush1.bf16.msra.mxu0 0
    %1797 = vmatprep.subr.bf16.mxu0 0
    %1798 = vmatpush1.bf16.msra.mxu0 0
    %1799 = vmatprep.subr.bf16.mxu0 0
    %1800 = vmatpush1.bf16.msra.mxu0 0
    %1801 = vmatprep.mubr.bf16.mxu0 0
    %1802 = vmatmul.mubr.bf16.gmra.mrb[0].mxu0 %v1764
    %v1803 = vpop.f32.mrb[0].mxu0
    %v1804 = vadd.f32 0.0, %v1803
    %v1805 = vpop.f32.mrb[0].mxu0
    %v1806 = vpop.f32.mrb[0].mxu0
    %v1807 = vpop.f32.mrb[0].mxu0
    %1808 = vdwg.mxu0
    %1809 = vrot.lane.b32.xlu0 %v1589, 112
    %v1810 = vpop.permute.xlu0 %1809
    %1811 = vrot.lane.b32.xlu0 %v1590, 112
    %v1812 = vpop.permute.xlu0 %1811
    %v1814 = vsel %vm426, %v1810, 0
    %v1817 = vsel %vm426, %v1812, 0
    %1819 = vmatprep.subr.bf16.mxu0 0
    %1820 = vmatpush1.bf16.xpose.msra.mxu0 %v1817
    %1821 = vmatprep.subr.bf16.mxu0 0
    %1822 = vmatpush1.bf16.xpose.msra.mxu0 0
    %1823 = vmatprep.subr.bf16.mxu0 0
    %1824 = vmatpush1.bf16.xpose.msra.mxu0 0
    %1825 = vmatprep.subr.bf16.mxu0 0
    %1826 = vmatpush1.bf16.xpose.msra.mxu0 0
    %1827 = vmatprep.subr.bf16.mxu0 0
    %1828 = vmatpush1.bf16.xpose.msra.mxu0 0
    %1829 = vmatprep.subr.bf16.mxu0 0
    %1830 = vmatpush1.bf16.xpose.msra.mxu0 0
    %1831 = vmatprep.subr.bf16.mxu0 0
    %1832 = vmatpush1.bf16.xpose.msra.mxu0 0
    %1833 = vmatprep.subr.bf16.mxu0 0
    %1834 = vmatpush1.bf16.xpose.msra.mxu0 0
    %1835 = vmatprep.subr.bf16.mxu0 0
    %1836 = vmatpush1.bf16.xpose.msra.mxu0 0
    %1837 = vmatprep.subr.bf16.mxu0 0
    %1838 = vmatpush1.bf16.xpose.msra.mxu0 0
    %1839 = vmatprep.subr.bf16.mxu0 0
    %1840 = vmatpush1.bf16.xpose.msra.mxu0 0
    %1841 = vmatprep.subr.bf16.mxu0 0
    %1842 = vmatpush1.bf16.xpose.msra.mxu0 0
    %1843 = vmatprep.subr.bf16.mxu0 0
    %1844 = vmatpush1.bf16.xpose.msra.mxu0 0
    %1845 = vmatprep.subr.bf16.mxu0 0
    %1846 = vmatpush1.bf16.xpose.msra.mxu0 0
    %1847 = vmatprep.subr.bf16.mxu0 0
    %1848 = vmatpush1.bf16.xpose.msra.mxu0 0
    %1849 = vmatprep.subr.bf16.mxu0 0
    %1850 = vmatpush1.bf16.xpose.msra.mxu0 0
    %1851 = vmatprep.mubr.bf16.mxu0 0
    %1852 = vmatmul.mubr.bf16.gmra.mrb[0].mxu0 %v1814
    %v1853 = vpop.f32.mrb[0].mxu0
    %v1854 = vadd.f32 0.0, %v1853
    %v1855 = vpop.f32.mrb[0].mxu0
    %v1856 = vpop.f32.mrb[0].mxu0
    %v1857 = vpop.f32.mrb[0].mxu0
    %1858 = vdwg.mxu0
    %v1859 = vsel %vm426, %v1854, -inf
    %1860 = vmax.xlane.f32.xlu0 %v1859
    %v1861 = vpop.xlane.xlu0 %1860
    %v1862 = vsub.f32 %v1854, %v1861
    %v1863 = vmul.f32 %v1862, 1.442695
    %v1864 = vpow.pop %v1863
    %v1865 = vsel %vm426, %v1864, 0.0
    %1866 = vadd.xlane.f32.xlu0 %v1865
    %v1867 = vpop.xlane.xlu0 %1866
    %v1868 = vrcp.pop %v1867
    %v1869 = vmul.f32 %v1864, %v1868
    %v1870 = vpack.c.bf16 %v1869, %v1869
    %1871 = vrot.lane.b32.xlu0 %v1590, 80
    %v1872 = vpop.permute.xlu0 %1871
    %v1874 = vsel %vm426, %v1870, 0
    %v1877 = vsel %vm490, %v1872, 0
    %1879 = vmatprep.subr.bf16.mxu0 0
    %1880 = vmatpush1.bf16.msra.mxu0 %v1877
    %1881 = vmatprep.subr.bf16.mxu0 0
    %1882 = vmatpush1.bf16.msra.mxu0 0
    %1883 = vmatprep.subr.bf16.mxu0 0
    %1884 = vmatpush1.bf16.msra.mxu0 0
    %1885 = vmatprep.subr.bf16.mxu0 0
    %1886 = vmatpush1.bf16.msra.mxu0 0
    %1887 = vmatprep.subr.bf16.mxu0 0
    %1888 = vmatpush1.bf16.msra.mxu0 0
    %1889 = vmatprep.subr.bf16.mxu0 0
    %1890 = vmatpush1.bf16.msra.mxu0 0
    %1891 = vmatprep.subr.bf16.mxu0 0
    %1892 = vmatpush1.bf16.msra.mxu0 0
    %1893 = vmatprep.subr.bf16.mxu0 0
    %1894 = vmatpush1.bf16.msra.mxu0 0
    %1895 = vmatprep.subr.bf16.mxu0 0
    %1896 = vmatpush1.bf16.msra.mxu0 0
    %1897 = vmatprep.subr.bf16.mxu0 0
    %1898 = vmatpush1.bf16.msra.mxu0 0
    %1899 = vmatprep.subr.bf16.mxu0 0
    %1900 = vmatpush1.bf16.msra.mxu0 0
    %1901 = vmatprep.subr.bf16.mxu0 0
    %1902 = vmatpush1.bf16.msra.mxu0 0
    %1903 = vmatprep.subr.bf16.mxu0 0
    %1904 = vmatpush1.bf16.msra.mxu0 0
    %1905 = vmatprep.subr.bf16.mxu0 0
    %1906 = vmatpush1.bf16.msra.mxu0 0
    %1907 = vmatprep.subr.bf16.mxu0 0
    %1908 = vmatpush1.bf16.msra.mxu0 0
    %1909 = vmatprep.subr.bf16.mxu0 0
    %1910 = vmatpush1.bf16.msra.mxu0 0
    %1911 = vmatprep.mubr.bf16.mxu0 0
    %1912 = vmatmul.mubr.bf16.gmra.mrb[0].mxu0 %v1874
    %v1913 = vpop.f32.mrb[0].mxu0
    %v1914 = vadd.f32 0.0, %v1913
    %v1915 = vpop.f32.mrb[0].mxu0
    %v1916 = vpop.f32.mrb[0].mxu0
    %v1917 = vpop.f32.mrb[0].mxu0
    %1918 = vdwg.mxu0
    %1919 = vrot.lane.b32.xlu0 %v1589, 104
    %v1920 = vpop.permute.xlu0 %1919
    %1921 = vrot.lane.b32.xlu0 %v1590, 104
    %v1922 = vpop.permute.xlu0 %1921
    %v1924 = vsel %vm426, %v1920, 0
    %v1927 = vsel %vm426, %v1922, 0
    %1929 = vmatprep.subr.bf16.mxu0 0
    %1930 = vmatpush1.bf16.xpose.msra.mxu0 %v1927
    %1931 = vmatprep.subr.bf16.mxu0 0
    %1932 = vmatpush1.bf16.xpose.msra.mxu0 0
    %1933 = vmatprep.subr.bf16.mxu0 0
    %1934 = vmatpush1.bf16.xpose.msra.mxu0 0
    %1935 = vmatprep.subr.bf16.mxu0 0
    %1936 = vmatpush1.bf16.xpose.msra.mxu0 0
    %1937 = vmatprep.subr.bf16.mxu0 0
    %1938 = vmatpush1.bf16.xpose.msra.mxu0 0
    %1939 = vmatprep.subr.bf16.mxu0 0
    %1940 = vmatpush1.bf16.xpose.msra.mxu0 0
    %1941 = vmatprep.subr.bf16.mxu0 0
    %1942 = vmatpush1.bf16.xpose.msra.mxu0 0
    %1943 = vmatprep.subr.bf16.mxu0 0
    %1944 = vmatpush1.bf16.xpose.msra.mxu0 0
    %1945 = vmatprep.subr.bf16.mxu0 0
    %1946 = vmatpush1.bf16.xpose.msra.mxu0 0
    %1947 = vmatprep.subr.bf16.mxu0 0
    %1948 = vmatpush1.bf16.xpose.msra.mxu0 0
    %1949 = vmatprep.subr.bf16.mxu0 0
    %1950 = vmatpush1.bf16.xpose.msra.mxu0 0
    %1951 = vmatprep.subr.bf16.mxu0 0
    %1952 = vmatpush1.bf16.xpose.msra.mxu0 0
    %1953 = vmatprep.subr.bf16.mxu0 0
    %1954 = vmatpush1.bf16.xpose.msra.mxu0 0
    %1955 = vmatprep.subr.bf16.mxu0 0
    %1956 = vmatpush1.bf16.xpose.msra.mxu0 0
    %1957 = vmatprep.subr.bf16.mxu0 0
    %1958 = vmatpush1.bf16.xpose.msra.mxu0 0
    %1959 = vmatprep.subr.bf16.mxu0 0
    %1960 = vmatpush1.bf16.xpose.msra.mxu0 0
    %1961 = vmatprep.mubr.bf16.mxu0 0
    %1962 = vmatmul.mubr.bf16.gmra.mrb[0].mxu0 %v1924
    %v1963 = vpop.f32.mrb[0].mxu0
    %v1964 = vadd.f32 0.0, %v1963
    %v1965 = vpop.f32.mrb[0].mxu0
    %v1966 = vpop.f32.mrb[0].mxu0
    %v1967 = vpop.f32.mrb[0].mxu0
    %1968 = vdwg.mxu0
    %v1969 = vsel %vm426, %v1964, -inf
    %1970 = vmax.xlane.f32.xlu0 %v1969
    %v1971 = vpop.xlane.xlu0 %1970
    %v1972 = vsub.f32 %v1964, %v1971
    %v1973 = vmul.f32 %v1972, 1.442695
    %v1974 = vpow.pop %v1973
    %v1975 = vsel %vm426, %v1974, 0.0
    %1976 = vadd.xlane.f32.xlu0 %v1975
    %v1977 = vpop.xlane.xlu0 %1976
    %v1978 = vrcp.pop %v1977
    %v1979 = vmul.f32 %v1974, %v1978
    %v1980 = vpack.c.bf16 %v1979, %v1979
    %1981 = vrot.lane.b32.xlu0 %v1590, 72
    %v1982 = vpop.permute.xlu0 %1981
    %v1984 = vsel %vm426, %v1980, 0
    %v1987 = vsel %vm490, %v1982, 0
    %1989 = vmatprep.subr.bf16.mxu0 0
    %1990 = vmatpush1.bf16.msra.mxu0 %v1987
    %1991 = vmatprep.subr.bf16.mxu0 0
    %1992 = vmatpush1.bf16.msra.mxu0 0
    %1993 = vmatprep.subr.bf16.mxu0 0
    %1994 = vmatpush1.bf16.msra.mxu0 0
    %1995 = vmatprep.subr.bf16.mxu0 0
    %1996 = vmatpush1.bf16.msra.mxu0 0
    %1997 = vmatprep.subr.bf16.mxu0 0
    %1998 = vmatpush1.bf16.msra.mxu0 0
    %1999 = vmatprep.subr.bf16.mxu0 0
    %2000 = vmatpush1.bf16.msra.mxu0 0
    %2001 = vmatprep.subr.bf16.mxu0 0
    %2002 = vmatpush1.bf16.msra.mxu0 0
    %2003 = vmatprep.subr.bf16.mxu0 0
    %2004 = vmatpush1.bf16.msra.mxu0 0
    %2005 = vmatprep.subr.bf16.mxu0 0
    %2006 = vmatpush1.bf16.msra.mxu0 0
    %2007 = vmatprep.subr.bf16.mxu0 0
    %2008 = vmatpush1.bf16.msra.mxu0 0
    %2009 = vmatprep.subr.bf16.mxu0 0
    %2010 = vmatpush1.bf16.msra.mxu0 0
    %2011 = vmatprep.subr.bf16.mxu0 0
    %2012 = vmatpush1.bf16.msra.mxu0 0
    %2013 = vmatprep.subr.bf16.mxu0 0
    %2014 = vmatpush1.bf16.msra.mxu0 0
    %2015 = vmatprep.subr.bf16.mxu0 0
    %2016 = vmatpush1.bf16.msra.mxu0 0
    %2017 = vmatprep.subr.bf16.mxu0 0
    %2018 = vmatpush1.bf16.msra.mxu0 0
    %2019 = vmatprep.subr.bf16.mxu0 0
    %2020 = vmatpush1.bf16.msra.mxu0 0
    %2021 = vmatprep.mubr.bf16.mxu0 0
    %2022 = vmatmul.mubr.bf16.gmra.mrb[0].mxu0 %v1984
    %v2023 = vpop.f32.mrb[0].mxu0
    %v2024 = vadd.f32 0.0, %v2023
    %v2025 = vpop.f32.mrb[0].mxu0
    %v2026 = vpop.f32.mrb[0].mxu0
    %v2027 = vpop.f32.mrb[0].mxu0
    %2028 = vdwg.mxu0
    %2030 = vrot.lane.b32.xlu0 %v1804, 8
    %v2031 = vpop.permute.xlu0 %2030
    %2034 = vrot.lane.b32.xlu0 %v1914, 16
    %v2035 = vpop.permute.xlu0 %2034
    %2038 = vrot.lane.b32.xlu0 %v2024, 24
    %v2039 = vpop.permute.xlu0 %2038
    %v2041 = vsel %vm426, %v1693, %v2031
    %v2042 = vsel %vm877, %v2041, %v2035
    %v2043 = vsel %vm879, %v2042, %v2039
    %v2044 = vpack.c.bf16 %v1518, %v1518
    %v2045 = vpack.c.bf16 %v1586, %v1586
    %v2047 = vsel %vm426, %v2044, 0
    %v2050 = vsel %vm426, %v2045, 0
    %2052 = vmatprep.subr.bf16.mxu0 0
    %2053 = vmatpush1.bf16.xpose.msra.mxu0 %v2050
    %2054 = vmatprep.subr.bf16.mxu0 0
    %2055 = vmatpush1.bf16.xpose.msra.mxu0 0
    %2056 = vmatprep.subr.bf16.mxu0 0
    %2057 = vmatpush1.bf16.xpose.msra.mxu0 0
    %2058 = vmatprep.subr.bf16.mxu0 0
    %2059 = vmatpush1.bf16.xpose.msra.mxu0 0
    %2060 = vmatprep.subr.bf16.mxu0 0
    %2061 = vmatpush1.bf16.xpose.msra.mxu0 0
    %2062 = vmatprep.subr.bf16.mxu0 0
    %2063 = vmatpush1.bf16.xpose.msra.mxu0 0
    %2064 = vmatprep.subr.bf16.mxu0 0
    %2065 = vmatpush1.bf16.xpose.msra.mxu0 0
    %2066 = vmatprep.subr.bf16.mxu0 0
    %2067 = vmatpush1.bf16.xpose.msra.mxu0 0
    %2068 = vmatprep.subr.bf16.mxu0 0
    %2069 = vmatpush1.bf16.xpose.msra.mxu0 0
    %2070 = vmatprep.subr.bf16.mxu0 0
    %2071 = vmatpush1.bf16.xpose.msra.mxu0 0
    %2072 = vmatprep.subr.bf16.mxu0 0
    %2073 = vmatpush1.bf16.xpose.msra.mxu0 0
    %2074 = vmatprep.subr.bf16.mxu0 0
    %2075 = vmatpush1.bf16.xpose.msra.mxu0 0
    %2076 = vmatprep.subr.bf16.mxu0 0
    %2077 = vmatpush1.bf16.xpose.msra.mxu0 0
    %2078 = vmatprep.subr.bf16.mxu0 0
    %2079 = vmatpush1.bf16.xpose.msra.mxu0 0
    %2080 = vmatprep.subr.bf16.mxu0 0
    %2081 = vmatpush1.bf16.xpose.msra.mxu0 0
    %2082 = vmatprep.subr.bf16.mxu0 0
    %2083 = vmatpush1.bf16.xpose.msra.mxu0 0
    %2084 = vmatprep.mubr.bf16.mxu0 0
    %2085 = vmatmul.mubr.bf16.gmra.mrb[0].mxu0 %v2047
    %v2086 = vpop.f32.mrb[0].mxu0
    %v2087 = vadd.f32 0.0, %v2086
    %v2088 = vpop.f32.mrb[0].mxu0
    %v2089 = vpop.f32.mrb[0].mxu0
    %v2090 = vpop.f32.mrb[0].mxu0
    %2091 = vdwg.mxu0
    %v2092 = vsel %vm426, %v2087, -inf
    %2093 = vmax.xlane.f32.xlu0 %v2092
    %v2094 = vpop.xlane.xlu0 %2093
    %v2095 = vsub.f32 %v2087, %v2094
    %v2096 = vmul.f32 %v2095, 1.442695
    %v2097 = vpow.pop %v2096
    %v2098 = vsel %vm426, %v2097, 0.0
    %2099 = vadd.xlane.f32.xlu0 %v2098
    %v2100 = vpop.xlane.xlu0 %2099
    %v2101 = vrcp.pop %v2100
    %v2102 = vmul.f32 %v2097, %v2101
    %v2103 = vpack.c.bf16 %v2102, %v2102
    %2105 = vrot.lane.b32.xlu0 %v2045, 96
    %v2106 = vpop.permute.xlu0 %2105
    %v2108 = vsel %vm426, %v2103, 0
    %v2111 = vsel %vm490, %v2106, 0
    %2113 = vmatprep.subr.bf16.mxu0 0
    %2114 = vmatpush1.bf16.msra.mxu0 %v2111
    %2115 = vmatprep.subr.bf16.mxu0 0
    %2116 = vmatpush1.bf16.msra.mxu0 0
    %2117 = vmatprep.subr.bf16.mxu0 0
    %2118 = vmatpush1.bf16.msra.mxu0 0
    %2119 = vmatprep.subr.bf16.mxu0 0
    %2120 = vmatpush1.bf16.msra.mxu0 0
    %2121 = vmatprep.subr.bf16.mxu0 0
    %2122 = vmatpush1.bf16.msra.mxu0 0
    %2123 = vmatprep.subr.bf16.mxu0 0
    %2124 = vmatpush1.bf16.msra.mxu0 0
    %2125 = vmatprep.subr.bf16.mxu0 0
    %2126 = vmatpush1.bf16.msra.mxu0 0
    %2127 = vmatprep.subr.bf16.mxu0 0
    %2128 = vmatpush1.bf16.msra.mxu0 0
    %2129 = vmatprep.subr.bf16.mxu0 0
    %2130 = vmatpush1.bf16.msra.mxu0 0
    %2131 = vmatprep.subr.bf16.mxu0 0
    %2132 = vmatpush1.bf16.msra.mxu0 0
    %2133 = vmatprep.subr.bf16.mxu0 0
    %2134 = vmatpush1.bf16.msra.mxu0 0
    %2135 = vmatprep.subr.bf16.mxu0 0
    %2136 = vmatpush1.bf16.msra.mxu0 0
    %2137 = vmatprep.subr.bf16.mxu0 0
    %2138 = vmatpush1.bf16.msra.mxu0 0
    %2139 = vmatprep.subr.bf16.mxu0 0
    %2140 = vmatpush1.bf16.msra.mxu0 0
    %2141 = vmatprep.subr.bf16.mxu0 0
    %2142 = vmatpush1.bf16.msra.mxu0 0
    %2143 = vmatprep.subr.bf16.mxu0 0
    %2144 = vmatpush1.bf16.msra.mxu0 0
    %2145 = vmatprep.mubr.bf16.mxu0 0
    %2146 = vmatmul.mubr.bf16.gmra.mrb[0].mxu0 %v2108
    %v2147 = vpop.f32.mrb[0].mxu0
    %v2148 = vadd.f32 0.0, %v2147
    %v2149 = vpop.f32.mrb[0].mxu0
    %v2150 = vpop.f32.mrb[0].mxu0
    %v2151 = vpop.f32.mrb[0].mxu0
    %2152 = vdwg.mxu0
    %2154 = vrot.lane.b32.xlu0 %v2044, 120
    %v2155 = vpop.permute.xlu0 %2154
    %2156 = vrot.lane.b32.xlu0 %v2045, 120
    %v2157 = vpop.permute.xlu0 %2156
    %v2159 = vsel %vm426, %v2155, 0
    %v2162 = vsel %vm426, %v2157, 0
    %2164 = vmatprep.subr.bf16.mxu0 0
    %2165 = vmatpush1.bf16.xpose.msra.mxu0 %v2162
    %2166 = vmatprep.subr.bf16.mxu0 0
    %2167 = vmatpush1.bf16.xpose.msra.mxu0 0
    %2168 = vmatprep.subr.bf16.mxu0 0
    %2169 = vmatpush1.bf16.xpose.msra.mxu0 0
    %2170 = vmatprep.subr.bf16.mxu0 0
    %2171 = vmatpush1.bf16.xpose.msra.mxu0 0
    %2172 = vmatprep.subr.bf16.mxu0 0
    %2173 = vmatpush1.bf16.xpose.msra.mxu0 0
    %2174 = vmatprep.subr.bf16.mxu0 0
    %2175 = vmatpush1.bf16.xpose.msra.mxu0 0
    %2176 = vmatprep.subr.bf16.mxu0 0
    %2177 = vmatpush1.bf16.xpose.msra.mxu0 0
    %2178 = vmatprep.subr.bf16.mxu0 0
    %2179 = vmatpush1.bf16.xpose.msra.mxu0 0
    %2180 = vmatprep.subr.bf16.mxu0 0
    %2181 = vmatpush1.bf16.xpose.msra.mxu0 0
    %2182 = vmatprep.subr.bf16.mxu0 0
    %2183 = vmatpush1.bf16.xpose.msra.mxu0 0
    %2184 = vmatprep.subr.bf16.mxu0 0
    %2185 = vmatpush1.bf16.xpose.msra.mxu0 0
    %2186 = vmatprep.subr.bf16.mxu0 0
    %2187 = vmatpush1.bf16.xpose.msra.mxu0 0
    %2188 = vmatprep.subr.bf16.mxu0 0
    %2189 = vmatpush1.bf16.xpose.msra.mxu0 0
    %2190 = vmatprep.subr.bf16.mxu0 0
    %2191 = vmatpush1.bf16.xpose.msra.mxu0 0
    %2192 = vmatprep.subr.bf16.mxu0 0
    %2193 = vmatpush1.bf16.xpose.msra.mxu0 0
    %2194 = vmatprep.subr.bf16.mxu0 0
    %2195 = vmatpush1.bf16.xpose.msra.mxu0 0
    %2196 = vmatprep.mubr.bf16.mxu0 0
    %2197 = vmatmul.mubr.bf16.gmra.mrb[0].mxu0 %v2159
    %v2198 = vpop.f32.mrb[0].mxu0
    %v2199 = vadd.f32 0.0, %v2198
    %v2200 = vpop.f32.mrb[0].mxu0
    %v2201 = vpop.f32.mrb[0].mxu0
    %v2202 = vpop.f32.mrb[0].mxu0
    %2203 = vdwg.mxu0
    %v2204 = vsel %vm426, %v2199, -inf
    %2205 = vmax.xlane.f32.xlu0 %v2204
    %v2206 = vpop.xlane.xlu0 %2205
    %v2207 = vsub.f32 %v2199, %v2206
    %v2208 = vmul.f32 %v2207, 1.442695
    %v2209 = vpow.pop %v2208
    %v2210 = vsel %vm426, %v2209, 0.0
    %2211 = vadd.xlane.f32.xlu0 %v2210
    %v2212 = vpop.xlane.xlu0 %2211
    %v2213 = vrcp.pop %v2212
    %v2214 = vmul.f32 %v2209, %v2213
    %v2215 = vpack.c.bf16 %v2214, %v2214
    %2216 = vrot.lane.b32.xlu0 %v2045, 88
    %v2217 = vpop.permute.xlu0 %2216
    %v2219 = vsel %vm426, %v2215, 0
    %v2222 = vsel %vm490, %v2217, 0
    %2224 = vmatprep.subr.bf16.mxu0 0
    %2225 = vmatpush1.bf16.msra.mxu0 %v2222
    %2226 = vmatprep.subr.bf16.mxu0 0
    %2227 = vmatpush1.bf16.msra.mxu0 0
    %2228 = vmatprep.subr.bf16.mxu0 0
    %2229 = vmatpush1.bf16.msra.mxu0 0
    %2230 = vmatprep.subr.bf16.mxu0 0
    %2231 = vmatpush1.bf16.msra.mxu0 0
    %2232 = vmatprep.subr.bf16.mxu0 0
    %2233 = vmatpush1.bf16.msra.mxu0 0
    %2234 = vmatprep.subr.bf16.mxu0 0
    %2235 = vmatpush1.bf16.msra.mxu0 0
    %2236 = vmatprep.subr.bf16.mxu0 0
    %2237 = vmatpush1.bf16.msra.mxu0 0
    %2238 = vmatprep.subr.bf16.mxu0 0
    %2239 = vmatpush1.bf16.msra.mxu0 0
    %2240 = vmatprep.subr.bf16.mxu0 0
    %2241 = vmatpush1.bf16.msra.mxu0 0
    %2242 = vmatprep.subr.bf16.mxu0 0
    %2243 = vmatpush1.bf16.msra.mxu0 0
    %2244 = vmatprep.subr.bf16.mxu0 0
    %2245 = vmatpush1.bf16.msra.mxu0 0
    %2246 = vmatprep.subr.bf16.mxu0 0
    %2247 = vmatpush1.bf16.msra.mxu0 0
    %2248 = vmatprep.subr.bf16.mxu0 0
    %2249 = vmatpush1.bf16.msra.mxu0 0
    %2250 = vmatprep.subr.bf16.mxu0 0
    %2251 = vmatpush1.bf16.msra.mxu0 0
    %2252 = vmatprep.subr.bf16.mxu0 0
    %2253 = vmatpush1.bf16.msra.mxu0 0
    %2254 = vmatprep.subr.bf16.mxu0 0
    %2255 = vmatpush1.bf16.msra.mxu0 0
    %2256 = vmatprep.mubr.bf16.mxu0 0
    %2257 = vmatmul.mubr.bf16.gmra.mrb[0].mxu0 %v2219
    %v2258 = vpop.f32.mrb[0].mxu0
    %v2259 = vadd.f32 0.0, %v2258
    %v2260 = vpop.f32.mrb[0].mxu0
    %v2261 = vpop.f32.mrb[0].mxu0
    %v2262 = vpop.f32.mrb[0].mxu0
    %2263 = vdwg.mxu0
    %2264 = vrot.lane.b32.xlu0 %v2044, 112
    %v2265 = vpop.permute.xlu0 %2264
    %2266 = vrot.lane.b32.xlu0 %v2045, 112
    %v2267 = vpop.permute.xlu0 %2266
    %v2269 = vsel %vm426, %v2265, 0
    %v2272 = vsel %vm426, %v2267, 0
    %2274 = vmatprep.subr.bf16.mxu0 0
    %2275 = vmatpush1.bf16.xpose.msra.mxu0 %v2272
    %2276 = vmatprep.subr.bf16.mxu0 0
    %2277 = vmatpush1.bf16.xpose.msra.mxu0 0
    %2278 = vmatprep.subr.bf16.mxu0 0
    %2279 = vmatpush1.bf16.xpose.msra.mxu0 0
    %2280 = vmatprep.subr.bf16.mxu0 0
    %2281 = vmatpush1.bf16.xpose.msra.mxu0 0
    %2282 = vmatprep.subr.bf16.mxu0 0
    %2283 = vmatpush1.bf16.xpose.msra.mxu0 0
    %2284 = vmatprep.subr.bf16.mxu0 0
    %2285 = vmatpush1.bf16.xpose.msra.mxu0 0
    %2286 = vmatprep.subr.bf16.mxu0 0
    %2287 = vmatpush1.bf16.xpose.msra.mxu0 0
    %2288 = vmatprep.subr.bf16.mxu0 0
    %2289 = vmatpush1.bf16.xpose.msra.mxu0 0
    %2290 = vmatprep.subr.bf16.mxu0 0
    %2291 = vmatpush1.bf16.xpose.msra.mxu0 0
    %2292 = vmatprep.subr.bf16.mxu0 0
    %2293 = vmatpush1.bf16.xpose.msra.mxu0 0
    %2294 = vmatprep.subr.bf16.mxu0 0
    %2295 = vmatpush1.bf16.xpose.msra.mxu0 0
    %2296 = vmatprep.subr.bf16.mxu0 0
    %2297 = vmatpush1.bf16.xpose.msra.mxu0 0
    %2298 = vmatprep.subr.bf16.mxu0 0
    %2299 = vmatpush1.bf16.xpose.msra.mxu0 0
    %2300 = vmatprep.subr.bf16.mxu0 0
    %2301 = vmatpush1.bf16.xpose.msra.mxu0 0
    %2302 = vmatprep.subr.bf16.mxu0 0
    %2303 = vmatpush1.bf16.xpose.msra.mxu0 0
    %2304 = vmatprep.subr.bf16.mxu0 0
    %2305 = vmatpush1.bf16.xpose.msra.mxu0 0
    %2306 = vmatprep.mubr.bf16.mxu0 0
    %2307 = vmatmul.mubr.bf16.gmra.mrb[0].mxu0 %v2269
    %v2308 = vpop.f32.mrb[0].mxu0
    %v2309 = vadd.f32 0.0, %v2308
    %v2310 = vpop.f32.mrb[0].mxu0
    %v2311 = vpop.f32.mrb[0].mxu0
    %v2312 = vpop.f32.mrb[0].mxu0
    %2313 = vdwg.mxu0
    %v2314 = vsel %vm426, %v2309, -inf
    %2315 = vmax.xlane.f32.xlu0 %v2314
    %v2316 = vpop.xlane.xlu0 %2315
    %v2317 = vsub.f32 %v2309, %v2316
    %v2318 = vmul.f32 %v2317, 1.442695
    %v2319 = vpow.pop %v2318
    %v2320 = vsel %vm426, %v2319, 0.0
    %2321 = vadd.xlane.f32.xlu0 %v2320
    %v2322 = vpop.xlane.xlu0 %2321
    %v2323 = vrcp.pop %v2322
    %v2324 = vmul.f32 %v2319, %v2323
    %v2325 = vpack.c.bf16 %v2324, %v2324
    %2326 = vrot.lane.b32.xlu0 %v2045, 80
    %v2327 = vpop.permute.xlu0 %2326
    %v2329 = vsel %vm426, %v2325, 0
    %v2332 = vsel %vm490, %v2327, 0
    %2334 = vmatprep.subr.bf16.mxu0 0
    %2335 = vmatpush1.bf16.msra.mxu0 %v2332
    %2336 = vmatprep.subr.bf16.mxu0 0
    %2337 = vmatpush1.bf16.msra.mxu0 0
    %2338 = vmatprep.subr.bf16.mxu0 0
    %2339 = vmatpush1.bf16.msra.mxu0 0
    %2340 = vmatprep.subr.bf16.mxu0 0
    %2341 = vmatpush1.bf16.msra.mxu0 0
    %2342 = vmatprep.subr.bf16.mxu0 0
    %2343 = vmatpush1.bf16.msra.mxu0 0
    %2344 = vmatprep.subr.bf16.mxu0 0
    %2345 = vmatpush1.bf16.msra.mxu0 0
    %2346 = vmatprep.subr.bf16.mxu0 0
    %2347 = vmatpush1.bf16.msra.mxu0 0
    %2348 = vmatprep.subr.bf16.mxu0 0
    %2349 = vmatpush1.bf16.msra.mxu0 0
    %2350 = vmatprep.subr.bf16.mxu0 0
    %2351 = vmatpush1.bf16.msra.mxu0 0
    %2352 = vmatprep.subr.bf16.mxu0 0
    %2353 = vmatpush1.bf16.msra.mxu0 0
    %2354 = vmatprep.subr.bf16.mxu0 0
    %2355 = vmatpush1.bf16.msra.mxu0 0
    %2356 = vmatprep.subr.bf16.mxu0 0
    %2357 = vmatpush1.bf16.msra.mxu0 0
    %2358 = vmatprep.subr.bf16.mxu0 0
    %2359 = vmatpush1.bf16.msra.mxu0 0
    %2360 = vmatprep.subr.bf16.mxu0 0
    %2361 = vmatpush1.bf16.msra.mxu0 0
    %2362 = vmatprep.subr.bf16.mxu0 0
    %2363 = vmatpush1.bf16.msra.mxu0 0
    %2364 = vmatprep.subr.bf16.mxu0 0
    %2365 = vmatpush1.bf16.msra.mxu0 0
    %2366 = vmatprep.mubr.bf16.mxu0 0
    %2367 = vmatmul.mubr.bf16.gmra.mrb[0].mxu0 %v2329
    %v2368 = vpop.f32.mrb[0].mxu0
    %v2369 = vadd.f32 0.0, %v2368
    %v2370 = vpop.f32.mrb[0].mxu0
    %v2371 = vpop.f32.mrb[0].mxu0
    %v2372 = vpop.f32.mrb[0].mxu0
    %2373 = vdwg.mxu0
    %2374 = vrot.lane.b32.xlu0 %v2044, 104
    %v2375 = vpop.permute.xlu0 %2374
    %2376 = vrot.lane.b32.xlu0 %v2045, 104
    %v2377 = vpop.permute.xlu0 %2376
    %v2379 = vsel %vm426, %v2375, 0
    %v2382 = vsel %vm426, %v2377, 0
    %2384 = vmatprep.subr.bf16.mxu0 0
    %2385 = vmatpush1.bf16.xpose.msra.mxu0 %v2382
    %2386 = vmatprep.subr.bf16.mxu0 0
    %2387 = vmatpush1.bf16.xpose.msra.mxu0 0
    %2388 = vmatprep.subr.bf16.mxu0 0
    %2389 = vmatpush1.bf16.xpose.msra.mxu0 0
    %2390 = vmatprep.subr.bf16.mxu0 0
    %2391 = vmatpush1.bf16.xpose.msra.mxu0 0
    %2392 = vmatprep.subr.bf16.mxu0 0
    %2393 = vmatpush1.bf16.xpose.msra.mxu0 0
    %2394 = vmatprep.subr.bf16.mxu0 0
    %2395 = vmatpush1.bf16.xpose.msra.mxu0 0
    %2396 = vmatprep.subr.bf16.mxu0 0
    %2397 = vmatpush1.bf16.xpose.msra.mxu0 0
    %2398 = vmatprep.subr.bf16.mxu0 0
    %2399 = vmatpush1.bf16.xpose.msra.mxu0 0
    %2400 = vmatprep.subr.bf16.mxu0 0
    %2401 = vmatpush1.bf16.xpose.msra.mxu0 0
    %2402 = vmatprep.subr.bf16.mxu0 0
    %2403 = vmatpush1.bf16.xpose.msra.mxu0 0
    %2404 = vmatprep.subr.bf16.mxu0 0
    %2405 = vmatpush1.bf16.xpose.msra.mxu0 0
    %2406 = vmatprep.subr.bf16.mxu0 0
    %2407 = vmatpush1.bf16.xpose.msra.mxu0 0
    %2408 = vmatprep.subr.bf16.mxu0 0
    %2409 = vmatpush1.bf16.xpose.msra.mxu0 0
    %2410 = vmatprep.subr.bf16.mxu0 0
    %2411 = vmatpush1.bf16.xpose.msra.mxu0 0
    %2412 = vmatprep.subr.bf16.mxu0 0
    %2413 = vmatpush1.bf16.xpose.msra.mxu0 0
    %2414 = vmatprep.subr.bf16.mxu0 0
    %2415 = vmatpush1.bf16.xpose.msra.mxu0 0
    %2416 = vmatprep.mubr.bf16.mxu0 0
    %2417 = vmatmul.mubr.bf16.gmra.mrb[0].mxu0 %v2379
    %v2418 = vpop.f32.mrb[0].mxu0
    %v2419 = vadd.f32 0.0, %v2418
    %v2420 = vpop.f32.mrb[0].mxu0
    %v2421 = vpop.f32.mrb[0].mxu0
    %v2422 = vpop.f32.mrb[0].mxu0
    %2423 = vdwg.mxu0
    %v2424 = vsel %vm426, %v2419, -inf
    %2425 = vmax.xlane.f32.xlu0 %v2424
    %v2426 = vpop.xlane.xlu0 %2425
    %v2427 = vsub.f32 %v2419, %v2426
    %v2428 = vmul.f32 %v2427, 1.442695
    %v2429 = vpow.pop %v2428
    %v2430 = vsel %vm426, %v2429, 0.0
    %2431 = vadd.xlane.f32.xlu0 %v2430
    %v2432 = vpop.xlane.xlu0 %2431
    %v2433 = vrcp.pop %v2432
    %v2434 = vmul.f32 %v2429, %v2433
    %v2435 = vpack.c.bf16 %v2434, %v2434
    %2436 = vrot.lane.b32.xlu0 %v2045, 72
    %v2437 = vpop.permute.xlu0 %2436
    %v2439 = vsel %vm426, %v2435, 0
    %v2442 = vsel %vm490, %v2437, 0
    %2444 = vmatprep.subr.bf16.mxu0 0
    %2445 = vmatpush1.bf16.msra.mxu0 %v2442
    %2446 = vmatprep.subr.bf16.mxu0 0
    %2447 = vmatpush1.bf16.msra.mxu0 0
    %2448 = vmatprep.subr.bf16.mxu0 0
    %2449 = vmatpush1.bf16.msra.mxu0 0
    %2450 = vmatprep.subr.bf16.mxu0 0
    %2451 = vmatpush1.bf16.msra.mxu0 0
    %2452 = vmatprep.subr.bf16.mxu0 0
    %2453 = vmatpush1.bf16.msra.mxu0 0
    %2454 = vmatprep.subr.bf16.mxu0 0
    %2455 = vmatpush1.bf16.msra.mxu0 0
    %2456 = vmatprep.subr.bf16.mxu0 0
    %2457 = vmatpush1.bf16.msra.mxu0 0
    %2458 = vmatprep.subr.bf16.mxu0 0
    %2459 = vmatpush1.bf16.msra.mxu0 0
    %2460 = vmatprep.subr.bf16.mxu0 0
    %2461 = vmatpush1.bf16.msra.mxu0 0
    %2462 = vmatprep.subr.bf16.mxu0 0
    %2463 = vmatpush1.bf16.msra.mxu0 0
    %2464 = vmatprep.subr.bf16.mxu0 0
    %2465 = vmatpush1.bf16.msra.mxu0 0
    %2466 = vmatprep.subr.bf16.mxu0 0
    %2467 = vmatpush1.bf16.msra.mxu0 0
    %2468 = vmatprep.subr.bf16.mxu0 0
    %2469 = vmatpush1.bf16.msra.mxu0 0
    %2470 = vmatprep.subr.bf16.mxu0 0
    %2471 = vmatpush1.bf16.msra.mxu0 0
    %2472 = vmatprep.subr.bf16.mxu0 0
    %2473 = vmatpush1.bf16.msra.mxu0 0
    %2474 = vmatprep.subr.bf16.mxu0 0
    %2475 = vmatpush1.bf16.msra.mxu0 0
    %2476 = vmatprep.mubr.bf16.mxu0 0
    %2477 = vmatmul.mubr.bf16.gmra.mrb[0].mxu0 %v2439
    %v2478 = vpop.f32.mrb[0].mxu0
    %v2479 = vadd.f32 0.0, %v2478
    %v2480 = vpop.f32.mrb[0].mxu0
    %v2481 = vpop.f32.mrb[0].mxu0
    %v2482 = vpop.f32.mrb[0].mxu0
    %2483 = vdwg.mxu0
    %2485 = vrot.lane.b32.xlu0 %v2259, 8
    %v2486 = vpop.permute.xlu0 %2485
    %2489 = vrot.lane.b32.xlu0 %v2369, 16
    %v2490 = vpop.permute.xlu0 %2489
    %2493 = vrot.lane.b32.xlu0 %v2479, 24
    %v2494 = vpop.permute.xlu0 %2493
    %v2496 = vsel %vm426, %v2148, %v2486
    %v2497 = vsel %vm877, %v2496, %v2490
    %v2498 = vsel %vm879, %v2497, %v2494
    %v2499 = vpack.c.bf16 %v2498, %v2043
    %v2500 = vld [vmem:[#allocation22] sm:$0xf]
    %v2501 = vld [vmem:[#allocation22 + $0x4] sm:$0xf]
    %v2502 = vld [vmem:[#allocation22 + $0x8] sm:$0xf]
    %v2503 = vld [vmem:[#allocation22 + $0xc] sm:$0xf]
    %v2504 = vld [vmem:[#allocation23] sm:$0x1]
    %v2506 = vlaneseq
    %v2507 = vshrl.u32 %v2506, 7
    %v2508 = vsub.s32 0, %v2507
    %v2509 = vrot.slane %v2504, %v2508
    %v2515 = vunpack.c.l.b16 %v2500
    %v2516 = vunpack.c.l.b16 %v2501
    %v2517 = vunpack.c.l.b16 %v2502
    %v2518 = vunpack.c.l.b16 %v2503
    %v2519 = vpack.c.b16 %v2516, %v2515
    %v2520 = vpack.c.b16 %v2518, %v2517
    %v2524 = vsel %vm377, %v2499, 0
    %2526 = vmatprep.subr.bf16.mxu0 0
    %2527 = vmatpush1.bf16.msra.mxu0 %v2519
    %2528 = vmatprep.subr.bf16.mxu0 0
    %2529 = vmatpush1.bf16.msra.mxu0 %v2520
    %2530 = vmatprep.subr.bf16.mxu0 0
    %2531 = vmatpush1.bf16.msra.mxu0 0
    %2532 = vmatprep.subr.bf16.mxu0 0
    %2533 = vmatpush1.bf16.msra.mxu0 0
    %2534 = vmatprep.subr.bf16.mxu0 0
    %2535 = vmatpush1.bf16.msra.mxu0 0
    %2536 = vmatprep.subr.bf16.mxu0 0
    %2537 = vmatpush1.bf16.msra.mxu0 0
    %2538 = vmatprep.subr.bf16.mxu0 0
    %2539 = vmatpush1.bf16.msra.mxu0 0
    %2540 = vmatprep.subr.bf16.mxu0 0
    %2541 = vmatpush1.bf16.msra.mxu0 0
    %2542 = vmatprep.subr.bf16.mxu0 0
    %2543 = vmatpush1.bf16.msra.mxu0 0
    %2544 = vmatprep.subr.bf16.mxu0 0
    %2545 = vmatpush1.bf16.msra.mxu0 0
    %2546 = vmatprep.subr.bf16.mxu0 0
    %2547 = vmatpush1.bf16.msra.mxu0 0
    %2548 = vmatprep.subr.bf16.mxu0 0
    %2549 = vmatpush1.bf16.msra.mxu0 0
    %2550 = vmatprep.subr.bf16.mxu0 0
    %2551 = vmatpush1.bf16.msra.mxu0 0
    %2552 = vmatprep.subr.bf16.mxu0 0
    %2553 = vmatpush1.bf16.msra.mxu0 0
    %2554 = vmatprep.subr.bf16.mxu0 0
    %2555 = vmatpush1.bf16.msra.mxu0 0
    %2556 = vmatprep.subr.bf16.mxu0 0
    %2557 = vmatpush1.bf16.msra.mxu0 0
    %2558 = vmatprep.mubr.bf16.mxu0 0
    %2559 = vmatmul.mubr.bf16.gmra.mrb[0].mxu0 %v2524
    %v2560 = vpop.f32.mrb[0].mxu0
    %v2561 = vadd.f32 %v2509, %v2560
    %v2562 = vpop.f32.mrb[0].mxu0
    %v2563 = vpop.f32.mrb[0].mxu0
    %v2564 = vadd.f32 %v2509, %v2563
    %v2565 = vpop.f32.mrb[0].mxu0
    %2566 = vdwg.mxu0
    %v2567 = vadd.f32 %v2561, %v1449
    %v2568 = vadd.f32 %v2564, %v1450
    %v2569 = vld [vmem:[#allocation25] sm:$0x1]
    %v2570 = vld [vmem:[#allocation26] sm:$0x1]
    %v2571 = vsel %vm377, %v2567, 0.0
    %2572 = vadd.xlane.f32.xlu0 %v2571
    %v2573 = vpop.xlane.xlu0 %2572
    %v2574 = vsel %vm377, %v2568, 0.0
    %2575 = vadd.xlane.f32.xlu0 %v2574
    %v2576 = vpop.xlane.xlu0 %2575
    %v2577 = vmul.f32 %v2573, %v1414
    %v2578 = vmul.f32 %v2576, %v1414
    %v2579 = vsub.f32 %v2567, %v2577
    %v2580 = vsub.f32 %v2568, %v2578
    %v2581 = vmul.f32 %v2579, %v2579
    %v2582 = vmul.f32 %v2580, %v2580
    %v2583 = vsel %vm377, %v2581, 0.0
    %2584 = vadd.xlane.f32.xlu0 %v2583
    %v2585 = vpop.xlane.xlu0 %2584
    %v2586 = vsel %vm377, %v2582, 0.0
    %2587 = vadd.xlane.f32.xlu0 %v2586
    %v2588 = vpop.xlane.xlu0 %2587
    %v2589 = vmul.f32 %v2585, %v1414
    %v2590 = vmul.f32 %v2588, %v1414
    %v2591 = vadd.f32 %v2589, 1e-05
    %v2592 = vadd.f32 %v2590, 1e-05
    %v2593 = vrsqrt.pop %v2591
    %v2594 = vrsqrt.pop %v2592
    %v2595 = vmul.f32 %v2579, %v2593
    %v2596 = vmul.f32 %v2580, %v2594
    %v2598 = vlaneseq
    %v2599 = vshrl.u32 %v2598, 7
    %v2600 = vsub.s32 0, %v2599
    %v2601 = vrot.slane %v2569, %v2600
    %v2603 = vmul.f32 %v2595, %v2601
    %v2604 = vmul.f32 %v2596, %v2601
    %v2606 = vlaneseq
    %v2607 = vshrl.u32 %v2606, 7
    %v2608 = vsub.s32 0, %v2607
    %v2609 = vrot.slane %v2570, %v2608
    %v2611 = vadd.f32 %v2603, %v2609
    %v2612 = vadd.f32 %v2604, %v2609
    %v2613 = vpack.c.bf16 %v2612, %v2611
    %v2614 = vld [vmem:[#allocation28] sm:$0xf]
    %v2615 = vld [vmem:[#allocation28 + $0x4] sm:$0xf]
    %v2616 = vld [vmem:[#allocation28 + $0x8] sm:$0xf]
    %v2617 = vld [vmem:[#allocation28 + $0xc] sm:$0xf]
    %v2618 = vld [vmem:[#allocation29] sm:$0x1]
    %v2620 = vlaneseq
    %v2621 = vshrl.u32 %v2620, 7
    %v2622 = vsub.s32 0, %v2621
    %v2623 = vrot.slane %v2618, %v2622
    %v2629 = vunpack.c.l.b16 %v2614
    %v2630 = vunpack.c.l.b16 %v2615
    %v2631 = vunpack.c.l.b16 %v2616
    %v2632 = vunpack.c.l.b16 %v2617
    %v2633 = vpack.c.b16 %v2630, %v2629
    %v2634 = vpack.c.b16 %v2632, %v2631
    %v2638 = vsel %vm377, %v2613, 0
    %2640 = vmatprep.subr.bf16.mxu0 0
    %2641 = vmatpush1.bf16.msra.mxu0 %v2633
    %2642 = vmatprep.subr.bf16.mxu0 0
    %2643 = vmatpush1.bf16.msra.mxu0 %v2634
    %2644 = vmatprep.subr.bf16.mxu0 0
    %2645 = vmatpush1.bf16.msra.mxu0 0
    %2646 = vmatprep.subr.bf16.mxu0 0
    %2647 = vmatpush1.bf16.msra.mxu0 0
    %2648 = vmatprep.subr.bf16.mxu0 0
    %2649 = vmatpush1.bf16.msra.mxu0 0
    %2650 = vmatprep.subr.bf16.mxu0 0
    %2651 = vmatpush1.bf16.msra.mxu0 0
    %2652 = vmatprep.subr.bf16.mxu0 0
    %2653 = vmatpush1.bf16.msra.mxu0 0
    %2654 = vmatprep.subr.bf16.mxu0 0
    %2655 = vmatpush1.bf16.msra.mxu0 0
    %2656 = vmatprep.subr.bf16.mxu0 0
    %2657 = vmatpush1.bf16.msra.mxu0 0
    %2658 = vmatprep.subr.bf16.mxu0 0
    %2659 = vmatpush1.bf16.msra.mxu0 0
    %2660 = vmatprep.subr.bf16.mxu0 0
    %2661 = vmatpush1.bf16.msra.mxu0 0
    %2662 = vmatprep.subr.bf16.mxu0 0
    %2663 = vmatpush1.bf16.msra.mxu0 0
    %2664 = vmatprep.subr.bf16.mxu0 0
    %2665 = vmatpush1.bf16.msra.mxu0 0
    %2666 = vmatprep.subr.bf16.mxu0 0
    %2667 = vmatpush1.bf16.msra.mxu0 0
    %2668 = vmatprep.subr.bf16.mxu0 0
    %2669 = vmatpush1.bf16.msra.mxu0 0
    %2670 = vmatprep.subr.bf16.mxu0 0
    %2671 = vmatpush1.bf16.msra.mxu0 0
    %2672 = vmatprep.mubr.bf16.mxu0 0
    %2673 = vmatmul.mubr.bf16.gmra.mrb[0].mxu0 %v2638
    %v2674 = vpop.f32.mrb[0].mxu0
    %v2675 = vadd.f32 %v2623, %v2674
    %v2676 = vpop.f32.mrb[0].mxu0
    %v2677 = vpop.f32.mrb[0].mxu0
    %v2678 = vadd.f32 %v2623, %v2677
    %v2679 = vpop.f32.mrb[0].mxu0
    %2680 = vdwg.mxu0
    %v2681 = vmax.f32 %v2675, 0.0
    %v2682 = vmax.f32 %v2678, 0.0
    %v2683 = vpack.c.bf16 %v2682, %v2681
    %v2684 = vld [vmem:[#allocation31] sm:$0xf]
    %v2685 = vld [vmem:[#allocation31 + $0x4] sm:$0xf]
    %v2686 = vld [vmem:[#allocation31 + $0x8] sm:$0xf]
    %v2687 = vld [vmem:[#allocation31 + $0xc] sm:$0xf]
    %v2688 = vld [vmem:[#allocation31 + $0x10] sm:$0xf]
    %v2689 = vld [vmem:[#allocation31 + $0x14] sm:$0xf]
    %v2690 = vld [vmem:[#allocation31 + $0x18] sm:$0xf]
    %v2691 = vld [vmem:[#allocation31 + $0x1c] sm:$0xf]
    %v2692 = vld [vmem:[#allocation32] sm:$0x1]
    %v2694 = vlaneseq
    %v2695 = vshrl.u32 %v2694, 7
    %v2696 = vsub.s32 0, %v2695
    %v2697 = vrot.slane %v2692, %v2696
    %v2707 = vunpack.c.l.b16 %v2684
    %v2708 = vunpack.c.l.b16 %v2685
    %v2709 = vunpack.c.l.b16 %v2686
    %v2710 = vunpack.c.l.b16 %v2687
    %v2711 = vunpack.c.l.b16 %v2688
    %v2712 = vunpack.c.l.b16 %v2689
    %v2713 = vunpack.c.l.b16 %v2690
    %v2714 = vunpack.c.l.b16 %v2691
    %v2715 = vpack.c.b16 %v2708, %v2707
    %v2716 = vpack.c.b16 %v2710, %v2709
    %v2717 = vpack.c.b16 %v2712, %v2711
    %v2718 = vpack.c.b16 %v2714, %v2713
    %vm2723 = vcmask 523264
    %v2725 = vsel %vm2723, %v2683, 0
    %2727 = vmatprep.subr.bf16.mxu0 0
    %2728 = vmatpush1.bf16.msra.mxu0 %v2715
    %2729 = vmatprep.subr.bf16.mxu0 0
    %2730 = vmatpush1.bf16.msra.mxu0 %v2716
    %2731 = vmatprep.subr.bf16.mxu0 0
    %2732 = vmatpush1.bf16.msra.mxu0 %v2717
    %2733 = vmatprep.subr.bf16.mxu0 0
    %2734 = vmatpush1.bf16.msra.mxu0 %v2718
    %2735 = vmatprep.subr.bf16.mxu0 0
    %2736 = vmatpush1.bf16.msra.mxu0 0
    %2737 = vmatprep.subr.bf16.mxu0 0
    %2738 = vmatpush1.bf16.msra.mxu0 0
    %2739 = vmatprep.subr.bf16.mxu0 0
    %2740 = vmatpush1.bf16.msra.mxu0 0
    %2741 = vmatprep.subr.bf16.mxu0 0
    %2742 = vmatpush1.bf16.msra.mxu0 0
    %2743 = vmatprep.subr.bf16.mxu0 0
    %2744 = vmatpush1.bf16.msra.mxu0 0
    %2745 = vmatprep.subr.bf16.mxu0 0
    %2746 = vmatpush1.bf16.msra.mxu0 0
    %2747 = vmatprep.subr.bf16.mxu0 0
    %2748 = vmatpush1.bf16.msra.mxu0 0
    %2749 = vmatprep.subr.bf16.mxu0 0
    %2750 = vmatpush1.bf16.msra.mxu0 0
    %2751 = vmatprep.subr.bf16.mxu0 0
    %2752 = vmatpush1.bf16.msra.mxu0 0
    %2753 = vmatprep.subr.bf16.mxu0 0
    %2754 = vmatpush1.bf16.msra.mxu0 0
    %2755 = vmatprep.subr.bf16.mxu0 0
    %2756 = vmatpush1.bf16.msra.mxu0 0
    %2757 = vmatprep.subr.bf16.mxu0 0
    %2758 = vmatpush1.bf16.msra.mxu0 0
    %2759 = vmatprep.mubr.bf16.mxu0 0
    %2760 = vmatmul.mubr.bf16.gmra.mrb[0].mxu0 %v2725
    %v2761 = vpop.f32.mrb[0].mxu0
    %v2762 = vadd.f32 %v2697, %v2761
    %v2763 = vpop.f32.mrb[0].mxu0
    %v2764 = vpop.f32.mrb[0].mxu0
    %v2765 = vadd.f32 %v2697, %v2764
    %v2766 = vpop.f32.mrb[0].mxu0
    %2767 = vdwg.mxu0
    %v2768 = vadd.f32 %v2762, %v2611
    %v2769 = vadd.f32 %v2765, %v2612
    %v2770 = vld [vmem:[#allocation34] sm:$0x1]
    %v2771 = vld [vmem:[#allocation35] sm:$0x1]
    %v2772 = vsel %vm377, %v2768, 0.0
    %2773 = vadd.xlane.f32.xlu0 %v2772
    %v2774 = vpop.xlane.xlu0 %2773
    %v2775 = vsel %vm377, %v2769, 0.0
    %2776 = vadd.xlane.f32.xlu0 %v2775
    %v2777 = vpop.xlane.xlu0 %2776
    %v2778 = vmul.f32 %v2774, %v1414
    %v2779 = vmul.f32 %v2777, %v1414
    %v2780 = vsub.f32 %v2768, %v2778
    %v2781 = vsub.f32 %v2769, %v2779
    %v2782 = vmul.f32 %v2780, %v2780
    %v2783 = vmul.f32 %v2781, %v2781
    %v2784 = vsel %vm377, %v2782, 0.0
    %2785 = vadd.xlane.f32.xlu0 %v2784
    %v2786 = vpop.xlane.xlu0 %2785
    %v2787 = vsel %vm377, %v2783, 0.0
    %2788 = vadd.xlane.f32.xlu0 %v2787
    %v2789 = vpop.xlane.xlu0 %2788
    %v2790 = vmul.f32 %v2786, %v1414
    %v2791 = vmul.f32 %v2789, %v1414
    %v2792 = vadd.f32 %v2790, 1e-05
    %v2793 = vadd.f32 %v2791, 1e-05
    %v2794 = vrsqrt.pop %v2792
    %v2795 = vrsqrt.pop %v2793
    %v2796 = vmul.f32 %v2780, %v2794
    %v2797 = vmul.f32 %v2781, %v2795
    %v2799 = vlaneseq
    %v2800 = vshrl.u32 %v2799, 7
    %v2801 = vsub.s32 0, %v2800
    %v2802 = vrot.slane %v2770, %v2801
    %v2804 = vmul.f32 %v2796, %v2802
    %v2805 = vmul.f32 %v2797, %v2802
    %v2807 = vlaneseq
    %v2808 = vshrl.u32 %v2807, 7
    %v2809 = vsub.s32 0, %v2808
    %v2810 = vrot.slane %v2771, %v2809
    %v2812 = vadd.f32 %v2804, %v2810
    %v2813 = vadd.f32 %v2805, %v2810
    %2814 = vst.msk [vmem:[#allocation37] sm:$0xff] %vm377, %v2812
    %2815 = vst.msk [vmem:[#allocation37 + $0x8] sm:$0xff] %vm377, %v2813
    // Predicated region
    $region178: #{decoder_forward.2} parent=1 // pred_check
      _
    $region179: #{decoder_forward.2} parent=1 // pred_check_branch
      %2817 = sbr.rel (0) target = $region181
    $region180: #{decoder_forward.2} parent=1 // pred_region
      %s2819 = ssub.s32 256, 256
      %2820 = vsyncadd [#allocation4], %s2819
      %s2821 = sshll.u32 [#allocation37], 4
      %s2822 = int_to_ptr.vmem [resolvable:$true] %s2821
      %2827 = dma.vmem_to_hbm [thread:$0]  %s2822, 256, %s22, [#allocation4], 128, 128, 8
    $region181: #{decoder_forward.2} parent=1 // pred_fallthru
      _
    // Predicated region
    $region182: #{decoder_forward.2} parent=1 // pred_check
      _
    $region183: #{decoder_forward.2} parent=1 // pred_check_branch
      %2829 = sbr.rel (0) target = $region185
    $region184: #{decoder_forward.2} parent=1 // pred_region
      %2830 = dma.done [#allocation4], 256
    $region185: #{decoder_forward.2} parent=1 // pred_fallthru
      _
    %2831 = vsyncpa [#allocation3], 1
    %2832 = vsyncpa [#allocation6], 1
    %2833 = vsyncpa [#allocation9], 1
    %2834 = vsyncpa [#allocation12], 1
    %2835 = vsyncpa [#allocation15], 1
    %2836 = vsyncpa [#allocation18], 1
    %2837 = vsyncpa [#allocation21], 1
    %2838 = vsyncpa [#allocation24], 1
    %2839 = vsyncpa [#allocation27], 1
    %2840 = vsyncpa [#allocation30], 1
    %2841 = vsyncpa [#allocation33], 1
    %2842 = vsyncpa [#allocation36], 1
    %2843 = vsyncpa [#allocation4], 1

</llo_original>
